<compile_context>
chip_gen: v6e
topology: v6e:2x2x1
jax: 0.10.0
libtpu: 0.0.40
codegen_flags: <defaults>
</compile_context>

<pallas_src>
import functools

import jax
import jax.numpy as jnp
from jax.experimental import pallas as pl
from jax.experimental.pallas import tpu as pltpu


def _pair(v):
    if isinstance(v, (tuple, list)):
        assert len(v) == 2
        return int(v[0]), int(v[1])
    return int(v), int(v)


def _unfold_kernel(x_ref, o_ref, xp_ref, *, h, w, ph, pw, kh, kw, sh, sw,
                   oh, ow, hg, wg):
    """One (batch, channel-block) step of im2col.

    x_ref : (1, cb, h, w)          raw (unpadded) input block in VMEM
    o_ref : (1, cb*kh*kw, oh*ow)   output block, already in final unfold layout
    xp_ref: (cb, hg*sh, wg*sw)     VMEM scratch holding the zero-padded input
    """
    cb = x_ref.shape[1]
    kk = kh * kw
    hp2 = hg * sh
    wp2 = wg * sw

    # --- zero-pad into the VMEM scratch (no HBM round trip for padding) ---
    if (hp2, wp2) != (h, w):
        xp_ref[...] = jnp.zeros(xp_ref.shape, dtype=xp_ref.dtype)
    xp_ref[:, ph:ph + h, pw:pw + w] = x_ref[0]
    xp = xp_ref[...]                                    # (cb, hp2, wp2)

    # --- gather the kh*kw shifted / strided patches (no strided slices) ---
    patches = [None] * kk
    if sh == 1 and sw == 1:
        for i in range(kh):
            for j in range(kw):
                patches[i * kw + j] = xp[:, i:i + oh, j:j + ow]
    else:
        # Split W into (group, phase): selecting a stride phase becomes a
        # plain contiguous slice instead of a lane-strided access.
        xw = xp.reshape(cb, hp2, wg, sw)                # (cb, hp2, wg, sw)
        for j in range(kw):
            qj, rj = divmod(j, sw)
            col = xw[:, :, qj:qj + ow, rj]              # (cb, hp2, ow)
            colh = col.reshape(cb, hg, sh, ow)          # split H by phase
            for i in range(kh):
                qi, ri = divmod(i, sh)
                patches[i * kw + j] = colh[:, qi:qi + oh, ri, :]  # (cb, oh, ow)

    # --- assemble the lane-dense output block in its final layout ---
    stacked = jnp.stack(patches, axis=1)                # (cb, kk, oh, ow)
    o_ref[...] = stacked.reshape(1, cb * kk, oh * ow)


def unfold_nd(x, kernel_size, stride, padding, *, c_block=None,
              vmem_budget_bytes=8 * 1024 * 1024):
    """Pallas equivalent of unfoldNd.unfoldNd / F.unfold for NCHW input."""
    kh, kw = _pair(kernel_size)
    sh, sw = _pair(stride)
    ph, pw = _pair(padding)
    n, c, h, w = x.shape
    hp, wp = h + 2 * ph, w + 2 * pw
    oh = (hp - kh) // sh + 1
    ow = (wp - kw) // sw + 1
    assert oh > 0 and ow > 0, "empty unfold output"
    kk = kh * kw
    L = oh * ow

    # Padded extents rounded up so H/W split exactly into (group, phase) and
    # every (kernel offset, output index) pair stays in range.
    hg = max(pl.cdiv(hp, sh), (kh - 1) // sh + oh)
    wg = max(pl.cdiv(wp, sw), (kw - 1) // sw + ow)
    hp2, wp2 = hg * sh, wg * sw

    # Channel-block size: largest that fits the VMEM budget.  If cb < C, keep
    # the output block's second-to-last dim (cb*kk) divisible by 8.
    itemsize = jnp.dtype(x.dtype).itemsize

    def footprint(cb):  # ~2x for double-buffered in/out blocks + scratch
        return (2 * cb * h * w + 2 * cb * kk * L + cb * hp2 * wp2) * itemsize

    if c_block is None:
        cb = c
        if footprint(cb) > vmem_budget_bytes:
            for cand in range(c - 1, 0, -1):
                if (c % cand == 0 and (cand * kk) % 8 == 0
                        and footprint(cand) <= vmem_budget_bytes):
                    cb = cand
                    break
    else:
        cb = c_block
    assert c % cb == 0

    kernel = functools.partial(
        _unfold_kernel, h=h, w=w, ph=ph, pw=pw, kh=kh, kw=kw, sh=sh, sw=sw,
        oh=oh, ow=ow, hg=hg, wg=wg)

    return pl.pallas_call(
        kernel,
        out_shape=jax.ShapeDtypeStruct((n, c * kk, L), x.dtype),
        grid=(n, c // cb),
        in_specs=[pl.BlockSpec((1, cb, h, w), lambda b, ci: (b, ci, 0, 0))],
        out_specs=pl.BlockSpec((1, cb * kk, L), lambda b, ci: (b, ci, 0)),
        scratch_shapes=[pltpu.VMEM((cb, hp2, wp2), x.dtype)],
        compiler_params=pltpu.CompilerParams(
            dimension_semantics=("parallel", "parallel")),
    )(x)


def _ref_unfold(x, kernel_size, stride, padding):
    """Pure-JAX reference (same semantics as torch F.unfold)."""
    kh, kw = _pair(kernel_size)
    sh, sw = _pair(stride)
    ph, pw = _pair(padding)
    n, c, h, w = x.shape
    xp = jnp.pad(x, ((0, 0), (0, 0), (ph, ph), (pw, pw)))
    oh = (h + 2 * ph - kh) // sh + 1
    ow = (w + 2 * pw - kw) // sw + 1
    cols = []
    for i in range(kh):
        for j in range(kw):
            cols.append(xp[:, :, i:i + sh * oh:sh, j:j + sw * ow:sw])
    ref = jnp.stack(cols, axis=2)  # (N, C, kh*kw, OH, OW)
    return ref.reshape(n, c * kh * kw, oh * ow)


if __name__ == "__main__":
    # Module hyperparameters from the spec (no learnable weights in `unfd`).
    kernel_size, stride, padding = 3, 2, 1

    key = jax.random.PRNGKey(0)
    x = jax.random.normal(key, (2, 4, 16, 16), dtype=jnp.float32)  # NCHW

    out = jax.block_until_ready(unfold_nd(x, kernel_size, stride, padding))
    ref = jax.block_until_ready(_ref_unfold(x, kernel_size, stride, padding))

    assert out.shape == (2, 4 * 3 * 3, 8 * 8), out.shape
    assert jnp.array_equal(out, ref), "mismatch vs reference"

    print("KERNEL_OK")
</pallas_src>

<mosaic_0001>
module attributes {stable_mosaic.version = 11 : i64} {
  func.func @_unfold_kernel(%arg0: i32, %arg1: i32, %arg2: memref<1x4x16x16xf32, #tpu.memory_space<vmem>>, %arg3: memref<1x36x64xf32, #tpu.memory_space<vmem>>, %arg4: memref<4x18x18xf32, #tpu.memory_space<vmem>>) attributes {dimension_semantics = [#tpu.dimension_semantics<parallel>, #tpu.dimension_semantics<parallel>], iteration_bounds = array<i64: 2, 1>, scalar_prefetch = 0 : i64, scratch_operands = 1 : i64, tpu.core_type = #tpu.core_type<tc>, window_params = [{transform_indices = @transform_0, window_bounds = array<i64: 1, 4, 16, 16>}, {transform_indices = @transform_1, window_bounds = array<i64: 1, 36, 64>}]} {
    %cst = arith.constant 0.000000e+00 : f32
    %0 = vector.broadcast %cst : f32 to vector<4x18x18xf32>
    %c0 = arith.constant 0 : index
    %c0_0 = arith.constant 0 : index
    %c0_1 = arith.constant 0 : index
    %1 = vector.load %arg4[%c0, %c0_0, %c0_1] : memref<4x18x18xf32, #tpu.memory_space<vmem>>, vector<4x18x18xf32>
    tpu.vector_store %arg4[%c0, %c0_0, %c0_1], %0 {strides = array<i32>} : memref<4x18x18xf32, #tpu.memory_space<vmem>>, vector<4x18x18xf32>,
    %c0_2 = arith.constant 0 : index
    %c0_3 = arith.constant 0 : index
    %c0_4 = arith.constant 0 : index
    %c0_5 = arith.constant 0 : index
    %2 = vector.load %arg2[%c0_2, %c0_3, %c0_4, %c0_5] : memref<1x4x16x16xf32, #tpu.memory_space<vmem>>, vector<1x4x16x16xf32>
    %3 = vector.shape_cast %2 : vector<1x4x16x16xf32> to vector<4x16x16xf32>
    %c0_6 = arith.constant 0 : index
    %c1 = arith.constant 1 : index
    %c1_7 = arith.constant 1 : index
    %4 = vector.load %arg4[%c0_6, %c1, %c1_7] : memref<4x18x18xf32, #tpu.memory_space<vmem>>, vector<4x16x16xf32>
    tpu.vector_store %arg4[%c0_6, %c1, %c1_7], %3 {strides = array<i32>} : memref<4x18x18xf32, #tpu.memory_space<vmem>>, vector<4x16x16xf32>,
    %c0_8 = arith.constant 0 : index
    %c0_9 = arith.constant 0 : index
    %c0_10 = arith.constant 0 : index
    %5 = vector.load %arg4[%c0_8, %c0_9, %c0_10] : memref<4x18x18xf32, #tpu.memory_space<vmem>>, vector<4x18x18xf32>
    %6 = vector.shape_cast %5 : vector<4x18x18xf32> to vector<4x18x9x2xf32>
    %7 = vector.extract_strided_slice %6 {offsets = [0, 0, 0, 0], sizes = [4, 18, 8, 1], strides = [1, 1, 1, 1]} : vector<4x18x9x2xf32> to vector<4x18x8x1xf32>
    %8 = vector.shape_cast %7 : vector<4x18x8x1xf32> to vector<4x18x8xf32>
    %9 = vector.shape_cast %8 : vector<4x18x8xf32> to vector<4x9x2x8xf32>
    %10 = vector.extract_strided_slice %9 {offsets = [0, 0, 0, 0], sizes = [4, 8, 1, 8], strides = [1, 1, 1, 1]} : vector<4x9x2x8xf32> to vector<4x8x1x8xf32>
    %11 = vector.shape_cast %10 : vector<4x8x1x8xf32> to vector<4x8x8xf32>
    %12 = vector.extract_strided_slice %9 {offsets = [0, 0, 1, 0], sizes = [4, 8, 1, 8], strides = [1, 1, 1, 1]} : vector<4x9x2x8xf32> to vector<4x8x1x8xf32>
    %13 = vector.shape_cast %12 : vector<4x8x1x8xf32> to vector<4x8x8xf32>
    %14 = vector.extract_strided_slice %9 {offsets = [0, 1, 0, 0], sizes = [4, 8, 1, 8], strides = [1, 1, 1, 1]} : vector<4x9x2x8xf32> to vector<4x8x1x8xf32>
    %15 = vector.shape_cast %14 : vector<4x8x1x8xf32> to vector<4x8x8xf32>
    %16 = vector.extract_strided_slice %6 {offsets = [0, 0, 0, 1], sizes = [4, 18, 8, 1], strides = [1, 1, 1, 1]} : vector<4x18x9x2xf32> to vector<4x18x8x1xf32>
    %17 = vector.shape_cast %16 : vector<4x18x8x1xf32> to vector<4x18x8xf32>
    %18 = vector.shape_cast %17 : vector<4x18x8xf32> to vector<4x9x2x8xf32>
    %19 = vector.extract_strided_slice %18 {offsets = [0, 0, 0, 0], sizes = [4, 8, 1, 8], strides = [1, 1, 1, 1]} : vector<4x9x2x8xf32> to vector<4x8x1x8xf32>
    %20 = vector.shape_cast %19 : vector<4x8x1x8xf32> to vector<4x8x8xf32>
    %21 = vector.extract_strided_slice %18 {offsets = [0, 0, 1, 0], sizes = [4, 8, 1, 8], strides = [1, 1, 1, 1]} : vector<4x9x2x8xf32> to vector<4x8x1x8xf32>
    %22 = vector.shape_cast %21 : vector<4x8x1x8xf32> to vector<4x8x8xf32>
    %23 = vector.extract_strided_slice %18 {offsets = [0, 1, 0, 0], sizes = [4, 8, 1, 8], strides = [1, 1, 1, 1]} : vector<4x9x2x8xf32> to vector<4x8x1x8xf32>
    %24 = vector.shape_cast %23 : vector<4x8x1x8xf32> to vector<4x8x8xf32>
    %25 = vector.extract_strided_slice %6 {offsets = [0, 0, 1, 0], sizes = [4, 18, 8, 1], strides = [1, 1, 1, 1]} : vector<4x18x9x2xf32> to vector<4x18x8x1xf32>
    %26 = vector.shape_cast %25 : vector<4x18x8x1xf32> to vector<4x18x8xf32>
    %27 = vector.shape_cast %26 : vector<4x18x8xf32> to vector<4x9x2x8xf32>
    %28 = vector.extract_strided_slice %27 {offsets = [0, 0, 0, 0], sizes = [4, 8, 1, 8], strides = [1, 1, 1, 1]} : vector<4x9x2x8xf32> to vector<4x8x1x8xf32>
    %29 = vector.shape_cast %28 : vector<4x8x1x8xf32> to vector<4x8x8xf32>
    %30 = vector.extract_strided_slice %27 {offsets = [0, 0, 1, 0], sizes = [4, 8, 1, 8], strides = [1, 1, 1, 1]} : vector<4x9x2x8xf32> to vector<4x8x1x8xf32>
    %31 = vector.shape_cast %30 : vector<4x8x1x8xf32> to vector<4x8x8xf32>
    %32 = vector.extract_strided_slice %27 {offsets = [0, 1, 0, 0], sizes = [4, 8, 1, 8], strides = [1, 1, 1, 1]} : vector<4x9x2x8xf32> to vector<4x8x1x8xf32>
    %33 = vector.shape_cast %32 : vector<4x8x1x8xf32> to vector<4x8x8xf32>
    %34 = vector.shape_cast %11 : vector<4x8x8xf32> to vector<4x1x8x8xf32>
    %35 = vector.shape_cast %20 : vector<4x8x8xf32> to vector<4x1x8x8xf32>
    %36 = vector.shape_cast %29 : vector<4x8x8xf32> to vector<4x1x8x8xf32>
    %37 = vector.shape_cast %13 : vector<4x8x8xf32> to vector<4x1x8x8xf32>
    %38 = vector.shape_cast %22 : vector<4x8x8xf32> to vector<4x1x8x8xf32>
    %39 = vector.shape_cast %31 : vector<4x8x8xf32> to vector<4x1x8x8xf32>
    %40 = vector.shape_cast %15 : vector<4x8x8xf32> to vector<4x1x8x8xf32>
    %41 = vector.shape_cast %24 : vector<4x8x8xf32> to vector<4x1x8x8xf32>
    %42 = vector.shape_cast %33 : vector<4x8x8xf32> to vector<4x1x8x8xf32>
    %43 = tpu.concatenate %34, %35, %36, %37, %38, %39, %40, %41, %42 in 1 : vector<4x1x8x8xf32>, vector<4x1x8x8xf32>, vector<4x1x8x8xf32>, vector<4x1x8x8xf32>, vector<4x1x8x8xf32>, vector<4x1x8x8xf32>, vector<4x1x8x8xf32>, vector<4x1x8x8xf32>, vector<4x1x8x8xf32> -> vector<4x9x8x8xf32>
    %44 = vector.shape_cast %43 : vector<4x9x8x8xf32> to vector<1x36x64xf32>
    %c0_11 = arith.constant 0 : index
    %c0_12 = arith.constant 0 : index
    %c0_13 = arith.constant 0 : index
    %45 = vector.load %arg3[%c0_11, %c0_12, %c0_13] : memref<1x36x64xf32, #tpu.memory_space<vmem>>, vector<1x36x64xf32>
    tpu.vector_store %arg3[%c0_11, %c0_12, %c0_13], %44 {strides = array<i32>} : memref<1x36x64xf32, #tpu.memory_space<vmem>>, vector<1x36x64xf32>,
    return
  }
  func.func @transform_0(%arg0: i32, %arg1: i32) -> (i32, i32, i32, i32) {
    %c0_i32 = arith.constant 0 : i32
    %c0_i32_0 = arith.constant 0 : i32
    %c0_i32_1 = arith.constant 0 : i32
    return %arg0, %arg1, %c0_i32, %c0_i32_0 : i32, i32, i32, i32
  }
  func.func @transform_1(%arg0: i32, %arg1: i32) -> (i32, i32, i32) {
    %c0_i32 = arith.constant 0 : i32
    %c0_i32_0 = arith.constant 0 : i32
    return %arg0, %arg1, %c0_i32 : i32, i32, i32
  }
}

</mosaic_0001>

<llo_original>
// kernel: tpu_custom_call.1
$region0: #{tpu_custom_call.1}
  #allocation0 [shape = 'u32[]', space=smem, size = 0x4, offset = 0x4, fixed_abs, tag = 'smem constant byte address 0x4 - core index']
  #allocation1 [shape = 'u32[144,128]{1,0:T(1,128)}', space=vmem, size = 0x12000, scoped, tag = 'internal scratch']
  #allocation2 [shape = 'f32[4,18,18]{2,1,0:T(8,128)}', space=vmem, size = 0xc000, scoped, tag = 'scratch operand']
  %s0 = inlined_call_operand.hbm [shape: f32[2,4,16,16], index: 0, kind: input, shape index: {}]
  %s1 = inlined_call_operand.vmem [shape: f32[2,36,64], index: 1, kind: output, shape index: {}]
  %s2 = sld [smem:[#allocation0]]
  $region41: #{tpu_custom_call.1} parent=0
    _
  %s4 = ssub.s32 1, %s2
  %s5 = scalar_select 0, %s4, %s2
  $region1: #{tpu_custom_call.1} parent=0
    #allocation3 [shape = 'u8[65536]{0}', space=vmem, size = 0x10000, scoped, tag = 'input window, operand 0']
    #allocation4 [shape = 's32[2]{0}', space=sflag, size = 0x8, scoped, tag = 'scoped memory for tpu_custom_call.1']
    %6 = vsyncpa [#allocation4], 0
    %s7 = scalar_lea.sflag [#allocation4], 1
    %8 = vsyncpa %s7, 0
    loop: start=0, step=1, limit=4
    $region2: #{tpu_custom_call.1} parent=1 // loop_pre_header
      _
    $region3: #{tpu_custom_call.1} parent=1 // loop_header
      %s10 = sphi 0, %s14
      %p11 = scmp.ge.s32.totalorder %s10, 4
      %s17 = sphi 0, %s29
      %s18 = sphi 0, %s25
      %s19 = sphi 0, %s17
      %s20 = sphi 0, %s18
      %s21 = sphi 0, %s19
      %s22 = sphi 0, %s20
      %s34 = sphi 0, %s36
      %s37 = sphi 0, %s34
      %s38 = sphi 0, %s37
      %s54 = sphi 0, %s38
      %s62 = sphi 0, %s64
      %s65 = sphi 0, %s62
      %s66 = sphi 0, %s65
      %s82 = sphi 0, %s66
    $region4: #{tpu_custom_call.1} parent=1 // loop_header_branch
      %13 = sbr.rel (%p11) target = $region8
    $region5: #{tpu_custom_call.1} parent=1 // loop_body
      %s15 = ssub.s32 %s10, 1
      %s16 = ssub.s32 %s10, 2
      %s23 = sadd.s32 1, %s18
      %p24 = scmp.ge.s32.totalorder %s23, 1
      %s25 = scalar_select %p24, 0, %s23
      %s26 = sadd.s32 1, %s17
      %s27 = scalar_select %p24, %s26, %s17
      %p28 = scmp.ge.s32.totalorder %s27, 2
      %s29 = scalar_select %p28, 0, %s27
      %s30 = ssub.s32 %s17, %s29
      %s31 = ssub.s32 %s18, %s25
      %s32 = sor.u32 %s30, %s31
      %p33 = scmp.eq.s32.totalorder %s32, 0
      %s35 = sadd.s32 %s34, 1
      %s36 = scalar_select %p33, %s34, %s35
      %p39 = pneg %p33
      %p40 = scmp.eq.s32.totalorder %s10, 1
      %p41 = por %p39, %p40
      %p42 = scmp.ne.s32.totalorder %s34, %s37
      %p43 = scmp.eq.s32.totalorder %s10, 0
      %p44 = por %p42, %p43
      %p45 = scmp.ne.s32.totalorder %s34, %s37
      %p46 = scmp.eq.s32.totalorder %s15, 1
      %p47 = por %p45, %p46
      %p48 = scmp.ne.s32.totalorder %s37, %s38
      %p49 = scmp.eq.s32.totalorder %s15, 0
      %p50 = por %p48, %p49
      %p51 = scmp.ne.s32.totalorder %s37, %s38
      %p52 = scmp.eq.s32.totalorder %s16, 1
      %p53 = por %p51, %p52
      %p55 = scmp.ne.s32.totalorder %s38, %s54
      %p56 = scmp.eq.s32.totalorder %s16, 0
      %p57 = por %p55, %p56
      %s58 = ssub.s32 %s17, %s29
      %s59 = ssub.s32 %s18, %s25
      %s60 = sor.u32 %s58, %s59
      %p61 = scmp.eq.s32.totalorder %s60, 0
      %s63 = sadd.s32 %s62, 1
      %s64 = scalar_select %p61, %s62, %s63
      %p67 = pneg %p61
      %p68 = scmp.eq.s32.totalorder %s10, 1
      %p69 = por %p67, %p68
      %p70 = scmp.ne.s32.totalorder %s62, %s65
      %p71 = scmp.eq.s32.totalorder %s10, 0
      %p72 = por %p70, %p71
      %p73 = scmp.ne.s32.totalorder %s62, %s65
      %p74 = scmp.eq.s32.totalorder %s15, 1
      %p75 = por %p73, %p74
      %p76 = scmp.ne.s32.totalorder %s65, %s66
      %p77 = scmp.eq.s32.totalorder %s15, 0
      %p78 = por %p76, %p77
      %p79 = scmp.ne.s32.totalorder %s65, %s66
      %p80 = scmp.eq.s32.totalorder %s16, 1
      %p81 = por %p79, %p80
      %p83 = scmp.ne.s32.totalorder %s66, %s82
      %p84 = scmp.eq.s32.totalorder %s16, 0
      %p85 = por %p83, %p84
      %p86 = scmp.le.s32.totalorder 1, %s10
      %p87 = scmp.lt.s32.totalorder %s10, 3
      %p88 = pnand %p86, %p87
      %p89 = pneg %p88
      // Predicated region
      $region9: #{tpu_custom_call.1} parent=5 // pred_check
        _
      $region10: #{tpu_custom_call.1} parent=5 // pred_check_branch
        %91 = sbr.rel (%p88) target = $region12
      $region11: #{tpu_custom_call.1} parent=5 // pred_region
        %s92 = ssub.s32 %s10, 1
      $region12: #{tpu_custom_call.1} parent=5 // pred_fallthru
        _
      %p93 = scmp.lt.s32.totalorder %s10, 2
      // Predicated region
      $region13: #{tpu_custom_call.1} parent=5 // pred_check
        %p94 = pneg %p93
      $region14: #{tpu_custom_call.1} parent=5 // pred_check_branch
        %96 = sbr.rel (%p94) target = $region16
      $region15: #{tpu_custom_call.1} parent=5 // pred_region
        // Predicated region
        $region17: #{tpu_custom_call.1} parent=15 // pred_check
          %p97 = pneg %p44
        $region18: #{tpu_custom_call.1} parent=15 // pred_check_branch
          %99 = sbr.rel (%p97) target = $region20
        $region19: #{tpu_custom_call.1} parent=15 // pred_region
          %s100 = sand.u32 %s34, 1
          %s101 = scalar_lea.sflag [#allocation4], %s100
          %s102 = sand.u32 %s34, 1
          %s103 = smul.addr %s102, 64
          %s104 = scalar_lea.vmem [#allocation3], %s103
          %s105 = smul.u32 4, %s18
          %s107 = ssub.s32 1024, 1024
          %108 = vsyncadd %s101, %s107
          %s109 = smul.addr %s105, 2
          %s110 = smul.addr %s17, 8
          %s111 = sadd.s32 %s109, %s110
          %s112 = smul.addr %s111, 128
          %s113 = scalar_lea.hbm %s0, %s112
          %s114 = sshll.u32 %s104, 4
          %s115 = int_to_ptr.vmem [resolvable:$true] %s114
          %120 = dma.hbm_to_vmem [thread:$0]  %s113, 1024, %s115, %s101, 128, 128, 8
        $region20: #{tpu_custom_call.1} parent=15 // pred_fallthru
          _
      $region16: #{tpu_custom_call.1} parent=5 // pred_fallthru
        _
      %p121 = scmp.le.s32.totalorder 1, %s10
      %p122 = scmp.lt.s32.totalorder %s10, 3
      %p123 = pnand %p121, %p122
      %p124 = pneg %p123
      // Predicated region
      $region21: #{tpu_custom_call.1} parent=5 // pred_check
        _
      $region22: #{tpu_custom_call.1} parent=5 // pred_check_branch
        %126 = sbr.rel (%p123) target = $region24
      $region23: #{tpu_custom_call.1} parent=5 // pred_region
        %s127 = ssub.s32 %s10, 1
        %s128 = sand.u32 %s37, 1
        %s129 = scalar_lea.sflag [#allocation4], %s128
        %s130 = sand.u32 %s37, 1
        %s131 = smul.addr %s130, 64
        %s132 = scalar_lea.vmem [#allocation3], %s131
        // Predicated region
        $region25: #{tpu_custom_call.1} parent=23 // pred_check
          %p133 = pneg %p50
        $region26: #{tpu_custom_call.1} parent=23 // pred_check_branch
          %135 = sbr.rel (%p133) target = $region28
        $region27: #{tpu_custom_call.1} parent=23 // pred_region
          %136 = dma.done %s129, 1024
        $region28: #{tpu_custom_call.1} parent=23 // pred_fallthru
          _
        %s137 = sand.u32 %s37, 1
        %s138 = scalar_lea.sflag [#allocation4], %s137
        %s139 = sand.u32 %s37, 1
        %s140 = smul.addr %s139, 64
        %s141 = scalar_lea.vmem [#allocation3], %s140
        %p142 = pneg %p50
        %p143 = pneg %p47
        %p144 = pneg %p78
        %p145 = pneg %p75
        %s146 = smul.u32 5, %s20
        %p147 = scmp.lt.s32.totalorder %s19, 1
        %s148 = scalar_select %p147, %s19, 1
        %p149 = scmp.lt.s32.totalorder %s146, 4
        %s150 = scalar_select %p149, %s146, 4
        %s151 = smul.addr %s148, 5
        %s152 = sadd.s32 %s150, %s151
        %s153 = smul.addr %s152, 8
        %s154 = scalar_lea.vmem %s1, %s153
        %s155 = smul.u32 4, %s20
        %s156 = smul.u32 5, %s20
        %p157 = scmp.lt.s32.totalorder %s19, 1
        %s158 = scalar_select %p157, %s19, 1
        %p159 = scmp.lt.s32.totalorder %s156, 4
        %s160 = scalar_select %p159, %s156, 4
        %s161 = smul.addr %s158, 5
        %s162 = sadd.s32 %s160, %s161
        %s163 = smul.addr %s162, 8
        %s164 = scalar_lea.vmem %s1, %s163
        %s165 = smul.u32 5, %s20
        %vm166 = vcmask 146432
        %167 = vst.msk [vmem:[#allocation2] sm:$0xff] %vm166, 0.0
        %168 = vst.msk [vmem:[#allocation2 + $0x8] sm:$0xff] %vm166, 0.0
        %vm169 = vcmask 140288
        %170 = vst.msk [vmem:[#allocation2 + $0x10] sm:$0x3] %vm169, 0.0
        %171 = vst.msk [vmem:[#allocation2 + $0x18] sm:$0xff] %vm166, 0.0
        %172 = vst.msk [vmem:[#allocation2 + $0x20] sm:$0xff] %vm166, 0.0
        %173 = vst.msk [vmem:[#allocation2 + $0x28] sm:$0x3] %vm169, 0.0
        %174 = vst.msk [vmem:[#allocation2 + $0x30] sm:$0xff] %vm166, 0.0
        %175 = vst.msk [vmem:[#allocation2 + $0x38] sm:$0xff] %vm166, 0.0
        %176 = vst.msk [vmem:[#allocation2 + $0x40] sm:$0x3] %vm169, 0.0
        %177 = vst.msk [vmem:[#allocation2 + $0x48] sm:$0xff] %vm166, 0.0
        %178 = vst.msk [vmem:[#allocation2 + $0x50] sm:$0xff] %vm166, 0.0
        %179 = vst.msk [vmem:[#allocation2 + $0x58] sm:$0x3] %vm169, 0.0
        %v180 = vld [vmem:[%s132] sm:$0xff]
        %v181 = vld [vmem:[%s132 + $0x8] sm:$0xff]
        %v182 = vld [vmem:[%s132 + $0x10] sm:$0xff]
        %v183 = vld [vmem:[%s132 + $0x18] sm:$0xff]
        %v184 = vld [vmem:[%s132 + $0x20] sm:$0xff]
        %v185 = vld [vmem:[%s132 + $0x28] sm:$0xff]
        %v186 = vld [vmem:[%s132 + $0x30] sm:$0xff]
        %v187 = vld [vmem:[%s132 + $0x38] sm:$0xff]
        %196 = vrot.lane.b32.xlu0 %v180, 1
        %v197 = vpop.permute.xlu0 %196
        %198 = vrot.lane.b32.xlu0 %v181, 1
        %v199 = vpop.permute.xlu0 %198
        %200 = vrot.lane.b32.xlu0 %v182, 1
        %v201 = vpop.permute.xlu0 %200
        %202 = vrot.lane.b32.xlu0 %v183, 1
        %v203 = vpop.permute.xlu0 %202
        %204 = vrot.lane.b32.xlu0 %v184, 1
        %v205 = vpop.permute.xlu0 %204
        %206 = vrot.lane.b32.xlu0 %v185, 1
        %v207 = vpop.permute.xlu0 %206
        %208 = vrot.lane.b32.xlu0 %v186, 1
        %v209 = vpop.permute.xlu0 %208
        %210 = vrot.lane.b32.xlu0 %v187, 1
        %v211 = vpop.permute.xlu0 %210
        %vm220 = vcmask 138248
        %221 = vst.msk [vmem:[#allocation2 + $0x1] sm:$0xff] %vm220, %v197
        %222 = vst.msk [vmem:[#allocation2 + $0x9] sm:$0xff] %vm220, %v199
        %223 = vst.msk [vmem:[#allocation2 + $0x19] sm:$0xff] %vm220, %v201
        %224 = vst.msk [vmem:[#allocation2 + $0x21] sm:$0xff] %vm220, %v203
        %225 = vst.msk [vmem:[#allocation2 + $0x31] sm:$0xff] %vm220, %v205
        %226 = vst.msk [vmem:[#allocation2 + $0x39] sm:$0xff] %vm220, %v207
        %227 = vst.msk [vmem:[#allocation2 + $0x49] sm:$0xff] %vm220, %v209
        %228 = vst.msk [vmem:[#allocation2 + $0x51] sm:$0xff] %vm220, %v211
        %v229 = vld [vmem:[#allocation2] sm:$0xff]
        %v230 = vld [vmem:[#allocation2 + $0x8] sm:$0xff]
        %v231 = vld [vmem:[#allocation2 + $0x10] sm:$0x3]
        %v232 = vld [vmem:[#allocation2 + $0x18] sm:$0xff]
        %v233 = vld [vmem:[#allocation2 + $0x20] sm:$0xff]
        %v234 = vld [vmem:[#allocation2 + $0x28] sm:$0x3]
        %v235 = vld [vmem:[#allocation2 + $0x30] sm:$0xff]
        %v236 = vld [vmem:[#allocation2 + $0x38] sm:$0xff]
        %v237 = vld [vmem:[#allocation2 + $0x40] sm:$0x3]
        %v238 = vld [vmem:[#allocation2 + $0x48] sm:$0xff]
        %v239 = vld [vmem:[#allocation2 + $0x50] sm:$0xff]
        %v240 = vld [vmem:[#allocation2 + $0x58] sm:$0x3]
        %253 = vrot.lane.b32.xlu0 %v229, 126
        %v254 = vpop.permute.xlu0 %253
        %255 = vrot.lane.b32.xlu0 %v230, 126
        %v256 = vpop.permute.xlu0 %255
        %257 = vrot.lane.b32.xlu0 %v231, 126
        %v258 = vpop.permute.xlu0 %257
        %259 = vrot.lane.b32.xlu0 %v232, 126
        %v260 = vpop.permute.xlu0 %259
        %261 = vrot.lane.b32.xlu0 %v233, 126
        %v262 = vpop.permute.xlu0 %261
        %263 = vrot.lane.b32.xlu0 %v234, 126
        %v264 = vpop.permute.xlu0 %263
        %265 = vrot.lane.b32.xlu0 %v235, 126
        %v266 = vpop.permute.xlu0 %265
        %267 = vrot.lane.b32.xlu0 %v236, 126
        %v268 = vpop.permute.xlu0 %267
        %269 = vrot.lane.b32.xlu0 %v237, 126
        %v270 = vpop.permute.xlu0 %269
        %271 = vrot.lane.b32.xlu0 %v238, 126
        %v272 = vpop.permute.xlu0 %271
        %273 = vrot.lane.b32.xlu0 %v239, 126
        %v274 = vpop.permute.xlu0 %273
        %275 = vrot.lane.b32.xlu0 %v240, 126
        %v276 = vpop.permute.xlu0 %275
        %289 = vrot.lane.b32.xlu0 %v229, 124
        %v290 = vpop.permute.xlu0 %289
        %291 = vrot.lane.b32.xlu0 %v230, 124
        %v292 = vpop.permute.xlu0 %291
        %293 = vrot.lane.b32.xlu0 %v231, 124
        %v294 = vpop.permute.xlu0 %293
        %295 = vrot.lane.b32.xlu0 %v232, 124
        %v296 = vpop.permute.xlu0 %295
        %297 = vrot.lane.b32.xlu0 %v233, 124
        %v298 = vpop.permute.xlu0 %297
        %299 = vrot.lane.b32.xlu0 %v234, 124
        %v300 = vpop.permute.xlu0 %299
        %301 = vrot.lane.b32.xlu0 %v235, 124
        %v302 = vpop.permute.xlu0 %301
        %303 = vrot.lane.b32.xlu0 %v236, 124
        %v304 = vpop.permute.xlu0 %303
        %305 = vrot.lane.b32.xlu0 %v237, 124
        %v306 = vpop.permute.xlu0 %305
        %307 = vrot.lane.b32.xlu0 %v238, 124
        %v308 = vpop.permute.xlu0 %307
        %309 = vrot.lane.b32.xlu0 %v239, 124
        %v310 = vpop.permute.xlu0 %309
        %311 = vrot.lane.b32.xlu0 %v240, 124
        %v312 = vpop.permute.xlu0 %311
        %325 = vrot.lane.b32.xlu0 %v229, 122
        %v326 = vpop.permute.xlu0 %325
        %327 = vrot.lane.b32.xlu0 %v230, 122
        %v328 = vpop.permute.xlu0 %327
        %329 = vrot.lane.b32.xlu0 %v231, 122
        %v330 = vpop.permute.xlu0 %329
        %331 = vrot.lane.b32.xlu0 %v232, 122
        %v332 = vpop.permute.xlu0 %331
        %333 = vrot.lane.b32.xlu0 %v233, 122
        %v334 = vpop.permute.xlu0 %333
        %335 = vrot.lane.b32.xlu0 %v234, 122
        %v336 = vpop.permute.xlu0 %335
        %337 = vrot.lane.b32.xlu0 %v235, 122
        %v338 = vpop.permute.xlu0 %337
        %339 = vrot.lane.b32.xlu0 %v236, 122
        %v340 = vpop.permute.xlu0 %339
        %341 = vrot.lane.b32.xlu0 %v237, 122
        %v342 = vpop.permute.xlu0 %341
        %343 = vrot.lane.b32.xlu0 %v238, 122
        %v344 = vpop.permute.xlu0 %343
        %345 = vrot.lane.b32.xlu0 %v239, 122
        %v346 = vpop.permute.xlu0 %345
        %347 = vrot.lane.b32.xlu0 %v240, 122
        %v348 = vpop.permute.xlu0 %347
        %361 = vrot.lane.b32.xlu0 %v229, 120
        %v362 = vpop.permute.xlu0 %361
        %363 = vrot.lane.b32.xlu0 %v230, 120
        %v364 = vpop.permute.xlu0 %363
        %365 = vrot.lane.b32.xlu0 %v231, 120
        %v366 = vpop.permute.xlu0 %365
        %367 = vrot.lane.b32.xlu0 %v232, 120
        %v368 = vpop.permute.xlu0 %367
        %369 = vrot.lane.b32.xlu0 %v233, 120
        %v370 = vpop.permute.xlu0 %369
        %371 = vrot.lane.b32.xlu0 %v234, 120
        %v372 = vpop.permute.xlu0 %371
        %373 = vrot.lane.b32.xlu0 %v235, 120
        %v374 = vpop.permute.xlu0 %373
        %375 = vrot.lane.b32.xlu0 %v236, 120
        %v376 = vpop.permute.xlu0 %375
        %377 = vrot.lane.b32.xlu0 %v237, 120
        %v378 = vpop.permute.xlu0 %377
        %379 = vrot.lane.b32.xlu0 %v238, 120
        %v380 = vpop.permute.xlu0 %379
        %381 = vrot.lane.b32.xlu0 %v239, 120
        %v382 = vpop.permute.xlu0 %381
        %383 = vrot.lane.b32.xlu0 %v240, 120
        %v384 = vpop.permute.xlu0 %383
        %397 = vrot.lane.b32.xlu0 %v229, 118
        %v398 = vpop.permute.xlu0 %397
        %399 = vrot.lane.b32.xlu0 %v230, 118
        %v400 = vpop.permute.xlu0 %399
        %401 = vrot.lane.b32.xlu0 %v231, 118
        %v402 = vpop.permute.xlu0 %401
        %403 = vrot.lane.b32.xlu0 %v232, 118
        %v404 = vpop.permute.xlu0 %403
        %405 = vrot.lane.b32.xlu0 %v233, 118
        %v406 = vpop.permute.xlu0 %405
        %407 = vrot.lane.b32.xlu0 %v234, 118
        %v408 = vpop.permute.xlu0 %407
        %409 = vrot.lane.b32.xlu0 %v235, 118
        %v410 = vpop.permute.xlu0 %409
        %411 = vrot.lane.b32.xlu0 %v236, 118
        %v412 = vpop.permute.xlu0 %411
        %413 = vrot.lane.b32.xlu0 %v237, 118
        %v414 = vpop.permute.xlu0 %413
        %415 = vrot.lane.b32.xlu0 %v238, 118
        %v416 = vpop.permute.xlu0 %415
        %417 = vrot.lane.b32.xlu0 %v239, 118
        %v418 = vpop.permute.xlu0 %417
        %419 = vrot.lane.b32.xlu0 %v240, 118
        %v420 = vpop.permute.xlu0 %419
        %433 = vrot.lane.b32.xlu0 %v229, 116
        %v434 = vpop.permute.xlu0 %433
        %435 = vrot.lane.b32.xlu0 %v230, 116
        %v436 = vpop.permute.xlu0 %435
        %437 = vrot.lane.b32.xlu0 %v231, 116
        %v438 = vpop.permute.xlu0 %437
        %439 = vrot.lane.b32.xlu0 %v232, 116
        %v440 = vpop.permute.xlu0 %439
        %441 = vrot.lane.b32.xlu0 %v233, 116
        %v442 = vpop.permute.xlu0 %441
        %443 = vrot.lane.b32.xlu0 %v234, 116
        %v444 = vpop.permute.xlu0 %443
        %445 = vrot.lane.b32.xlu0 %v235, 116
        %v446 = vpop.permute.xlu0 %445
        %447 = vrot.lane.b32.xlu0 %v236, 116
        %v448 = vpop.permute.xlu0 %447
        %449 = vrot.lane.b32.xlu0 %v237, 116
        %v450 = vpop.permute.xlu0 %449
        %451 = vrot.lane.b32.xlu0 %v238, 116
        %v452 = vpop.permute.xlu0 %451
        %453 = vrot.lane.b32.xlu0 %v239, 116
        %v454 = vpop.permute.xlu0 %453
        %455 = vrot.lane.b32.xlu0 %v240, 116
        %v456 = vpop.permute.xlu0 %455
        %469 = vrot.lane.b32.xlu0 %v229, 114
        %v470 = vpop.permute.xlu0 %469
        %471 = vrot.lane.b32.xlu0 %v230, 114
        %v472 = vpop.permute.xlu0 %471
        %473 = vrot.lane.b32.xlu0 %v231, 114
        %v474 = vpop.permute.xlu0 %473
        %475 = vrot.lane.b32.xlu0 %v232, 114
        %v476 = vpop.permute.xlu0 %475
        %477 = vrot.lane.b32.xlu0 %v233, 114
        %v478 = vpop.permute.xlu0 %477
        %479 = vrot.lane.b32.xlu0 %v234, 114
        %v480 = vpop.permute.xlu0 %479
        %481 = vrot.lane.b32.xlu0 %v235, 114
        %v482 = vpop.permute.xlu0 %481
        %483 = vrot.lane.b32.xlu0 %v236, 114
        %v484 = vpop.permute.xlu0 %483
        %485 = vrot.lane.b32.xlu0 %v237, 114
        %v486 = vpop.permute.xlu0 %485
        %487 = vrot.lane.b32.xlu0 %v238, 114
        %v488 = vpop.permute.xlu0 %487
        %489 = vrot.lane.b32.xlu0 %v239, 114
        %v490 = vpop.permute.xlu0 %489
        %491 = vrot.lane.b32.xlu0 %v240, 114
        %v492 = vpop.permute.xlu0 %491
        %505 = vrot.lane.b32.xlu0 %v229, 112
        %v506 = vpop.permute.xlu0 %505
        %507 = vrot.lane.b32.xlu0 %v230, 112
        %v508 = vpop.permute.xlu0 %507
        %509 = vrot.lane.b32.xlu0 %v231, 112
        %v510 = vpop.permute.xlu0 %509
        %511 = vrot.lane.b32.xlu0 %v232, 112
        %v512 = vpop.permute.xlu0 %511
        %513 = vrot.lane.b32.xlu0 %v233, 112
        %v514 = vpop.permute.xlu0 %513
        %515 = vrot.lane.b32.xlu0 %v234, 112
        %v516 = vpop.permute.xlu0 %515
        %517 = vrot.lane.b32.xlu0 %v235, 112
        %v518 = vpop.permute.xlu0 %517
        %519 = vrot.lane.b32.xlu0 %v236, 112
        %v520 = vpop.permute.xlu0 %519
        %521 = vrot.lane.b32.xlu0 %v237, 112
        %v522 = vpop.permute.xlu0 %521
        %523 = vrot.lane.b32.xlu0 %v238, 112
        %v524 = vpop.permute.xlu0 %523
        %525 = vrot.lane.b32.xlu0 %v239, 112
        %v526 = vpop.permute.xlu0 %525
        %527 = vrot.lane.b32.xlu0 %v240, 112
        %v528 = vpop.permute.xlu0 %527
        %v537 = vcombine.low %v229, %v290
        %v538 = vcombine.high %v229, %v290
        %v540 = vunpack.c.l.s4 1983009808
        %v541 = vunpack.c.0.s8 %v540
        %v542 = vlaneseq
        %v543 = vshrl.u32 %v542, 7
        %v544 = vsub.s32 %v541, %v543
        %v545 = vrot.slane %v537, %v544
        %v547 = vunpack.c.l.s4 1983009808
        %v548 = vunpack.c.0.s8 %v547
        %v549 = vlaneseq
        %v550 = vshrl.u32 %v549, 7
        %v551 = vsub.s32 %v548, %v550
        %v552 = vrot.slane %v538, %v551
        %v553 = vcombine.low %v254, %v326
        %v554 = vcombine.high %v254, %v326
        %v556 = vunpack.c.l.s4 1983009808
        %v557 = vunpack.c.0.s8 %v556
        %v558 = vlaneseq
        %v559 = vshrl.u32 %v558, 7
        %v560 = vsub.s32 %v557, %v559
        %v561 = vrot.slane %v553, %v560
        %v563 = vunpack.c.l.s4 1983009808
        %v564 = vunpack.c.0.s8 %v563
        %v565 = vlaneseq
        %v566 = vshrl.u32 %v565, 7
        %v567 = vsub.s32 %v564, %v566
        %v568 = vrot.slane %v554, %v567
        %v569 = vcombine.low %v362, %v434
        %v570 = vcombine.high %v362, %v434
        %v572 = vunpack.c.l.s4 1983009808
        %v573 = vunpack.c.0.s8 %v572
        %v574 = vlaneseq
        %v575 = vshrl.u32 %v574, 7
        %v576 = vsub.s32 %v573, %v575
        %v577 = vrot.slane %v569, %v576
        %v579 = vunpack.c.l.s4 1983009808
        %v580 = vunpack.c.0.s8 %v579
        %v581 = vlaneseq
        %v582 = vshrl.u32 %v581, 7
        %v583 = vsub.s32 %v580, %v582
        %v584 = vrot.slane %v570, %v583
        %v585 = vcombine.low %v398, %v470
        %v586 = vcombine.high %v398, %v470
        %v588 = vunpack.c.l.s4 1983009808
        %v589 = vunpack.c.0.s8 %v588
        %v590 = vlaneseq
        %v591 = vshrl.u32 %v590, 7
        %v592 = vsub.s32 %v589, %v591
        %v593 = vrot.slane %v585, %v592
        %v595 = vunpack.c.l.s4 1983009808
        %v596 = vunpack.c.0.s8 %v595
        %v597 = vlaneseq
        %v598 = vshrl.u32 %v597, 7
        %v599 = vsub.s32 %v596, %v598
        %v600 = vrot.slane %v586, %v599
        %v601 = vcombine.low %v545, %v561
        %v602 = vcombine.high %v545, %v561
        %v604 = vunpack.c.l.s4 1934713408
        %v605 = vunpack.c.0.s8 %v604
        %v606 = vlaneseq
        %v607 = vshrl.u32 %v606, 7
        %v608 = vsub.s32 %v605, %v607
        %v609 = vrot.slane %v601, %v608
        %v611 = vunpack.c.l.s4 1934713408
        %v612 = vunpack.c.0.s8 %v611
        %v613 = vlaneseq
        %v614 = vshrl.u32 %v613, 7
        %v615 = vsub.s32 %v612, %v614
        %v616 = vrot.slane %v602, %v615
        %v617 = vcombine.low %v552, %v568
        %v618 = vcombine.high %v552, %v568
        %v620 = vunpack.c.l.s4 1934713408
        %v621 = vunpack.c.0.s8 %v620
        %v622 = vlaneseq
        %v623 = vshrl.u32 %v622, 7
        %v624 = vsub.s32 %v621, %v623
        %v625 = vrot.slane %v617, %v624
        %v627 = vunpack.c.l.s4 1934713408
        %v628 = vunpack.c.0.s8 %v627
        %v629 = vlaneseq
        %v630 = vshrl.u32 %v629, 7
        %v631 = vsub.s32 %v628, %v630
        %v632 = vrot.slane %v618, %v631
        %v633 = vcombine.low %v577, %v593
        %v634 = vcombine.high %v577, %v593
        %v636 = vunpack.c.l.s4 1934713408
        %v637 = vunpack.c.0.s8 %v636
        %v638 = vlaneseq
        %v639 = vshrl.u32 %v638, 7
        %v640 = vsub.s32 %v637, %v639
        %v641 = vrot.slane %v633, %v640
        %v643 = vunpack.c.l.s4 1934713408
        %v644 = vunpack.c.0.s8 %v643
        %v645 = vlaneseq
        %v646 = vshrl.u32 %v645, 7
        %v647 = vsub.s32 %v644, %v646
        %v648 = vrot.slane %v634, %v647
        %v649 = vcombine.low %v584, %v600
        %v650 = vcombine.high %v584, %v600
        %v652 = vunpack.c.l.s4 1934713408
        %v653 = vunpack.c.0.s8 %v652
        %v654 = vlaneseq
        %v655 = vshrl.u32 %v654, 7
        %v656 = vsub.s32 %v653, %v655
        %v657 = vrot.slane %v649, %v656
        %v659 = vunpack.c.l.s4 1934713408
        %v660 = vunpack.c.0.s8 %v659
        %v661 = vlaneseq
        %v662 = vshrl.u32 %v661, 7
        %v663 = vsub.s32 %v660, %v662
        %v664 = vrot.slane %v650, %v663
        %v665 = vcombine.low %v609, %v641
        %v666 = vcombine.high %v609, %v641
        %v667 = vcombine.low %v616, %v648
        %v668 = vcombine.high %v616, %v648
        %v669 = vcombine.low %v625, %v657
        %v670 = vcombine.high %v625, %v657
        %v671 = vcombine.low %v632, %v664
        %v672 = vcombine.high %v632, %v664
        %v673 = vcombine.high %v506, 0.0
        %v675 = vunpack.c.l.s4 1983009808
        %v676 = vunpack.c.0.s8 %v675
        %v677 = vlaneseq
        %v678 = vshrl.u32 %v677, 7
        %v679 = vsub.s32 %v676, %v678
        %v680 = vrot.slane %v506, %v679
        %v682 = vunpack.c.l.s4 1983009808
        %v683 = vunpack.c.0.s8 %v682
        %v684 = vlaneseq
        %v685 = vshrl.u32 %v684, 7
        %v686 = vsub.s32 %v683, %v685
        %v687 = vrot.slane %v673, %v686
        %v688 = vcombine.high %v680, 0.0
        %v690 = vunpack.c.l.s4 1934713408
        %v691 = vunpack.c.0.s8 %v690
        %v692 = vlaneseq
        %v693 = vshrl.u32 %v692, 7
        %v694 = vsub.s32 %v691, %v693
        %v695 = vrot.slane %v680, %v694
        %v697 = vunpack.c.l.s4 1934713408
        %v698 = vunpack.c.0.s8 %v697
        %v699 = vlaneseq
        %v700 = vshrl.u32 %v699, 7
        %v701 = vsub.s32 %v698, %v700
        %v702 = vrot.slane %v688, %v701
        %v703 = vcombine.high %v687, 0.0
        %v705 = vunpack.c.l.s4 1934713408
        %v706 = vunpack.c.0.s8 %v705
        %v707 = vlaneseq
        %v708 = vshrl.u32 %v707, 7
        %v709 = vsub.s32 %v706, %v708
        %v710 = vrot.slane %v687, %v709
        %v712 = vunpack.c.l.s4 1934713408
        %v713 = vunpack.c.0.s8 %v712
        %v714 = vlaneseq
        %v715 = vshrl.u32 %v714, 7
        %v716 = vsub.s32 %v713, %v715
        %v717 = vrot.slane %v703, %v716
        %v718 = vcombine.high %v695, 0.0
        %v719 = vcombine.high %v702, 0.0
        %v720 = vcombine.high %v710, 0.0
        %v721 = vcombine.high %v717, 0.0
        %v722 = vcombine.low %v230, %v292
        %v723 = vcombine.high %v230, %v292
        %v725 = vunpack.c.l.s4 1983009808
        %v726 = vunpack.c.0.s8 %v725
        %v727 = vlaneseq
        %v728 = vshrl.u32 %v727, 7
        %v729 = vsub.s32 %v726, %v728
        %v730 = vrot.slane %v722, %v729
        %v732 = vunpack.c.l.s4 1983009808
        %v733 = vunpack.c.0.s8 %v732
        %v734 = vlaneseq
        %v735 = vshrl.u32 %v734, 7
        %v736 = vsub.s32 %v733, %v735
        %v737 = vrot.slane %v723, %v736
        %v738 = vcombine.low %v256, %v328
        %v739 = vcombine.high %v256, %v328
        %v741 = vunpack.c.l.s4 1983009808
        %v742 = vunpack.c.0.s8 %v741
        %v743 = vlaneseq
        %v744 = vshrl.u32 %v743, 7
        %v745 = vsub.s32 %v742, %v744
        %v746 = vrot.slane %v738, %v745
        %v748 = vunpack.c.l.s4 1983009808
        %v749 = vunpack.c.0.s8 %v748
        %v750 = vlaneseq
        %v751 = vshrl.u32 %v750, 7
        %v752 = vsub.s32 %v749, %v751
        %v753 = vrot.slane %v739, %v752
        %v754 = vcombine.low %v364, %v436
        %v755 = vcombine.high %v364, %v436
        %v757 = vunpack.c.l.s4 1983009808
        %v758 = vunpack.c.0.s8 %v757
        %v759 = vlaneseq
        %v760 = vshrl.u32 %v759, 7
        %v761 = vsub.s32 %v758, %v760
        %v762 = vrot.slane %v754, %v761
        %v764 = vunpack.c.l.s4 1983009808
        %v765 = vunpack.c.0.s8 %v764
        %v766 = vlaneseq
        %v767 = vshrl.u32 %v766, 7
        %v768 = vsub.s32 %v765, %v767
        %v769 = vrot.slane %v755, %v768
        %v770 = vcombine.low %v400, %v472
        %v771 = vcombine.high %v400, %v472
        %v773 = vunpack.c.l.s4 1983009808
        %v774 = vunpack.c.0.s8 %v773
        %v775 = vlaneseq
        %v776 = vshrl.u32 %v775, 7
        %v777 = vsub.s32 %v774, %v776
        %v778 = vrot.slane %v770, %v777
        %v780 = vunpack.c.l.s4 1983009808
        %v781 = vunpack.c.0.s8 %v780
        %v782 = vlaneseq
        %v783 = vshrl.u32 %v782, 7
        %v784 = vsub.s32 %v781, %v783
        %v785 = vrot.slane %v771, %v784
        %v786 = vcombine.low %v730, %v746
        %v787 = vcombine.high %v730, %v746
        %v789 = vunpack.c.l.s4 1934713408
        %v790 = vunpack.c.0.s8 %v789
        %v791 = vlaneseq
        %v792 = vshrl.u32 %v791, 7
        %v793 = vsub.s32 %v790, %v792
        %v794 = vrot.slane %v786, %v793
        %v796 = vunpack.c.l.s4 1934713408
        %v797 = vunpack.c.0.s8 %v796
        %v798 = vlaneseq
        %v799 = vshrl.u32 %v798, 7
        %v800 = vsub.s32 %v797, %v799
        %v801 = vrot.slane %v787, %v800
        %v802 = vcombine.low %v737, %v753
        %v803 = vcombine.high %v737, %v753
        %v805 = vunpack.c.l.s4 1934713408
        %v806 = vunpack.c.0.s8 %v805
        %v807 = vlaneseq
        %v808 = vshrl.u32 %v807, 7
        %v809 = vsub.s32 %v806, %v808
        %v810 = vrot.slane %v802, %v809
        %v812 = vunpack.c.l.s4 1934713408
        %v813 = vunpack.c.0.s8 %v812
        %v814 = vlaneseq
        %v815 = vshrl.u32 %v814, 7
        %v816 = vsub.s32 %v813, %v815
        %v817 = vrot.slane %v803, %v816
        %v818 = vcombine.low %v762, %v778
        %v819 = vcombine.high %v762, %v778
        %v821 = vunpack.c.l.s4 1934713408
        %v822 = vunpack.c.0.s8 %v821
        %v823 = vlaneseq
        %v824 = vshrl.u32 %v823, 7
        %v825 = vsub.s32 %v822, %v824
        %v826 = vrot.slane %v818, %v825
        %v828 = vunpack.c.l.s4 1934713408
        %v829 = vunpack.c.0.s8 %v828
        %v830 = vlaneseq
        %v831 = vshrl.u32 %v830, 7
        %v832 = vsub.s32 %v829, %v831
        %v833 = vrot.slane %v819, %v832
        %v834 = vcombine.low %v769, %v785
        %v835 = vcombine.high %v769, %v785
        %v837 = vunpack.c.l.s4 1934713408
        %v838 = vunpack.c.0.s8 %v837
        %v839 = vlaneseq
        %v840 = vshrl.u32 %v839, 7
        %v841 = vsub.s32 %v838, %v840
        %v842 = vrot.slane %v834, %v841
        %v844 = vunpack.c.l.s4 1934713408
        %v845 = vunpack.c.0.s8 %v844
        %v846 = vlaneseq
        %v847 = vshrl.u32 %v846, 7
        %v848 = vsub.s32 %v845, %v847
        %v849 = vrot.slane %v835, %v848
        %v850 = vcombine.low %v794, %v826
        %v851 = vcombine.high %v794, %v826
        %v852 = vcombine.low %v801, %v833
        %v853 = vcombine.high %v801, %v833
        %v854 = vcombine.low %v810, %v842
        %v855 = vcombine.high %v810, %v842
        %v856 = vcombine.low %v817, %v849
        %v857 = vcombine.high %v817, %v849
        %v858 = vcombine.high %v508, 0.0
        %v860 = vunpack.c.l.s4 1983009808
        %v861 = vunpack.c.0.s8 %v860
        %v862 = vlaneseq
        %v863 = vshrl.u32 %v862, 7
        %v864 = vsub.s32 %v861, %v863
        %v865 = vrot.slane %v508, %v864
        %v867 = vunpack.c.l.s4 1983009808
        %v868 = vunpack.c.0.s8 %v867
        %v869 = vlaneseq
        %v870 = vshrl.u32 %v869, 7
        %v871 = vsub.s32 %v868, %v870
        %v872 = vrot.slane %v858, %v871
        %v873 = vcombine.high %v865, 0.0
        %v875 = vunpack.c.l.s4 1934713408
        %v876 = vunpack.c.0.s8 %v875
        %v877 = vlaneseq
        %v878 = vshrl.u32 %v877, 7
        %v879 = vsub.s32 %v876, %v878
        %v880 = vrot.slane %v865, %v879
        %v882 = vunpack.c.l.s4 1934713408
        %v883 = vunpack.c.0.s8 %v882
        %v884 = vlaneseq
        %v885 = vshrl.u32 %v884, 7
        %v886 = vsub.s32 %v883, %v885
        %v887 = vrot.slane %v873, %v886
        %v888 = vcombine.high %v872, 0.0
        %v890 = vunpack.c.l.s4 1934713408
        %v891 = vunpack.c.0.s8 %v890
        %v892 = vlaneseq
        %v893 = vshrl.u32 %v892, 7
        %v894 = vsub.s32 %v891, %v893
        %v895 = vrot.slane %v872, %v894
        %v897 = vunpack.c.l.s4 1934713408
        %v898 = vunpack.c.0.s8 %v897
        %v899 = vlaneseq
        %v900 = vshrl.u32 %v899, 7
        %v901 = vsub.s32 %v898, %v900
        %v902 = vrot.slane %v888, %v901
        %v903 = vcombine.high %v880, 0.0
        %v904 = vcombine.high %v887, 0.0
        %v905 = vcombine.high %v895, 0.0
        %v906 = vcombine.high %v902, 0.0
        %v907 = vcombine.low %v231, %v294
        %v909 = vunpack.c.l.s4 1983009808
        %v910 = vunpack.c.0.s8 %v909
        %v911 = vlaneseq
        %v912 = vshrl.u32 %v911, 7
        %v913 = vsub.s32 %v910, %v912
        %v914 = vrot.slane %v907, %v913
        %v915 = vcombine.low %v258, %v330
        %v917 = vunpack.c.l.s4 1983009808
        %v918 = vunpack.c.0.s8 %v917
        %v919 = vlaneseq
        %v920 = vshrl.u32 %v919, 7
        %v921 = vsub.s32 %v918, %v920
        %v922 = vrot.slane %v915, %v921
        %v923 = vcombine.low %v366, %v438
        %v925 = vunpack.c.l.s4 1983009808
        %v926 = vunpack.c.0.s8 %v925
        %v927 = vlaneseq
        %v928 = vshrl.u32 %v927, 7
        %v929 = vsub.s32 %v926, %v928
        %v930 = vrot.slane %v923, %v929
        %v931 = vcombine.low %v402, %v474
        %v933 = vunpack.c.l.s4 1983009808
        %v934 = vunpack.c.0.s8 %v933
        %v935 = vlaneseq
        %v936 = vshrl.u32 %v935, 7
        %v937 = vsub.s32 %v934, %v936
        %v938 = vrot.slane %v931, %v937
        %v939 = vcombine.low %v914, %v922
        %v941 = vunpack.c.l.s4 1934713408
        %v942 = vunpack.c.0.s8 %v941
        %v943 = vlaneseq
        %v944 = vshrl.u32 %v943, 7
        %v945 = vsub.s32 %v942, %v944
        %v946 = vrot.slane %v939, %v945
        %v947 = vcombine.low %v930, %v938
        %v949 = vunpack.c.l.s4 1934713408
        %v950 = vunpack.c.0.s8 %v949
        %v951 = vlaneseq
        %v952 = vshrl.u32 %v951, 7
        %v953 = vsub.s32 %v950, %v952
        %v954 = vrot.slane %v947, %v953
        %v955 = vcombine.low %v946, %v954
        %v958 = vunpack.c.l.s4 1934713408
        %v959 = vunpack.c.0.s8 %v958
        %v960 = vlaneseq
        %v961 = vshrl.u32 %v960, 7
        %v962 = vsub.s32 %v959, %v961
        %v963 = vrot.slane %v510, %v962
        %v964 = vcombine.low %v232, %v296
        %v965 = vcombine.high %v232, %v296
        %v967 = vunpack.c.l.s4 1983009808
        %v968 = vunpack.c.0.s8 %v967
        %v969 = vlaneseq
        %v970 = vshrl.u32 %v969, 7
        %v971 = vsub.s32 %v968, %v970
        %v972 = vrot.slane %v964, %v971
        %v974 = vunpack.c.l.s4 1983009808
        %v975 = vunpack.c.0.s8 %v974
        %v976 = vlaneseq
        %v977 = vshrl.u32 %v976, 7
        %v978 = vsub.s32 %v975, %v977
        %v979 = vrot.slane %v965, %v978
        %v980 = vcombine.low %v260, %v332
        %v981 = vcombine.high %v260, %v332
        %v983 = vunpack.c.l.s4 1983009808
        %v984 = vunpack.c.0.s8 %v983
        %v985 = vlaneseq
        %v986 = vshrl.u32 %v985, 7
        %v987 = vsub.s32 %v984, %v986
        %v988 = vrot.slane %v980, %v987
        %v990 = vunpack.c.l.s4 1983009808
        %v991 = vunpack.c.0.s8 %v990
        %v992 = vlaneseq
        %v993 = vshrl.u32 %v992, 7
        %v994 = vsub.s32 %v991, %v993
        %v995 = vrot.slane %v981, %v994
        %v996 = vcombine.low %v368, %v440
        %v997 = vcombine.high %v368, %v440
        %v999 = vunpack.c.l.s4 1983009808
        %v1000 = vunpack.c.0.s8 %v999
        %v1001 = vlaneseq
        %v1002 = vshrl.u32 %v1001, 7
        %v1003 = vsub.s32 %v1000, %v1002
        %v1004 = vrot.slane %v996, %v1003
        %v1006 = vunpack.c.l.s4 1983009808
        %v1007 = vunpack.c.0.s8 %v1006
        %v1008 = vlaneseq
        %v1009 = vshrl.u32 %v1008, 7
        %v1010 = vsub.s32 %v1007, %v1009
        %v1011 = vrot.slane %v997, %v1010
        %v1012 = vcombine.low %v404, %v476
        %v1013 = vcombine.high %v404, %v476
        %v1015 = vunpack.c.l.s4 1983009808
        %v1016 = vunpack.c.0.s8 %v1015
        %v1017 = vlaneseq
        %v1018 = vshrl.u32 %v1017, 7
        %v1019 = vsub.s32 %v1016, %v1018
        %v1020 = vrot.slane %v1012, %v1019
        %v1022 = vunpack.c.l.s4 1983009808
        %v1023 = vunpack.c.0.s8 %v1022
        %v1024 = vlaneseq
        %v1025 = vshrl.u32 %v1024, 7
        %v1026 = vsub.s32 %v1023, %v1025
        %v1027 = vrot.slane %v1013, %v1026
        %v1028 = vcombine.low %v972, %v988
        %v1029 = vcombine.high %v972, %v988
        %v1031 = vunpack.c.l.s4 1934713408
        %v1032 = vunpack.c.0.s8 %v1031
        %v1033 = vlaneseq
        %v1034 = vshrl.u32 %v1033, 7
        %v1035 = vsub.s32 %v1032, %v1034
        %v1036 = vrot.slane %v1028, %v1035
        %v1038 = vunpack.c.l.s4 1934713408
        %v1039 = vunpack.c.0.s8 %v1038
        %v1040 = vlaneseq
        %v1041 = vshrl.u32 %v1040, 7
        %v1042 = vsub.s32 %v1039, %v1041
        %v1043 = vrot.slane %v1029, %v1042
        %v1044 = vcombine.low %v979, %v995
        %v1045 = vcombine.high %v979, %v995
        %v1047 = vunpack.c.l.s4 1934713408
        %v1048 = vunpack.c.0.s8 %v1047
        %v1049 = vlaneseq
        %v1050 = vshrl.u32 %v1049, 7
        %v1051 = vsub.s32 %v1048, %v1050
        %v1052 = vrot.slane %v1044, %v1051
        %v1054 = vunpack.c.l.s4 1934713408
        %v1055 = vunpack.c.0.s8 %v1054
        %v1056 = vlaneseq
        %v1057 = vshrl.u32 %v1056, 7
        %v1058 = vsub.s32 %v1055, %v1057
        %v1059 = vrot.slane %v1045, %v1058
        %v1060 = vcombine.low %v1004, %v1020
        %v1061 = vcombine.high %v1004, %v1020
        %v1063 = vunpack.c.l.s4 1934713408
        %v1064 = vunpack.c.0.s8 %v1063
        %v1065 = vlaneseq
        %v1066 = vshrl.u32 %v1065, 7
        %v1067 = vsub.s32 %v1064, %v1066
        %v1068 = vrot.slane %v1060, %v1067
        %v1070 = vunpack.c.l.s4 1934713408
        %v1071 = vunpack.c.0.s8 %v1070
        %v1072 = vlaneseq
        %v1073 = vshrl.u32 %v1072, 7
        %v1074 = vsub.s32 %v1071, %v1073
        %v1075 = vrot.slane %v1061, %v1074
        %v1076 = vcombine.low %v1011, %v1027
        %v1077 = vcombine.high %v1011, %v1027
        %v1079 = vunpack.c.l.s4 1934713408
        %v1080 = vunpack.c.0.s8 %v1079
        %v1081 = vlaneseq
        %v1082 = vshrl.u32 %v1081, 7
        %v1083 = vsub.s32 %v1080, %v1082
        %v1084 = vrot.slane %v1076, %v1083
        %v1086 = vunpack.c.l.s4 1934713408
        %v1087 = vunpack.c.0.s8 %v1086
        %v1088 = vlaneseq
        %v1089 = vshrl.u32 %v1088, 7
        %v1090 = vsub.s32 %v1087, %v1089
        %v1091 = vrot.slane %v1077, %v1090
        %v1092 = vcombine.low %v1036, %v1068
        %v1093 = vcombine.high %v1036, %v1068
        %v1094 = vcombine.low %v1043, %v1075
        %v1095 = vcombine.high %v1043, %v1075
        %v1096 = vcombine.low %v1052, %v1084
        %v1097 = vcombine.high %v1052, %v1084
        %v1098 = vcombine.low %v1059, %v1091
        %v1099 = vcombine.high %v1059, %v1091
        %v1100 = vcombine.high %v512, 0.0
        %v1102 = vunpack.c.l.s4 1983009808
        %v1103 = vunpack.c.0.s8 %v1102
        %v1104 = vlaneseq
        %v1105 = vshrl.u32 %v1104, 7
        %v1106 = vsub.s32 %v1103, %v1105
        %v1107 = vrot.slane %v512, %v1106
        %v1109 = vunpack.c.l.s4 1983009808
        %v1110 = vunpack.c.0.s8 %v1109
        %v1111 = vlaneseq
        %v1112 = vshrl.u32 %v1111, 7
        %v1113 = vsub.s32 %v1110, %v1112
        %v1114 = vrot.slane %v1100, %v1113
        %v1115 = vcombine.high %v1107, 0.0
        %v1117 = vunpack.c.l.s4 1934713408
        %v1118 = vunpack.c.0.s8 %v1117
        %v1119 = vlaneseq
        %v1120 = vshrl.u32 %v1119, 7
        %v1121 = vsub.s32 %v1118, %v1120
        %v1122 = vrot.slane %v1107, %v1121
        %v1124 = vunpack.c.l.s4 1934713408
        %v1125 = vunpack.c.0.s8 %v1124
        %v1126 = vlaneseq
        %v1127 = vshrl.u32 %v1126, 7
        %v1128 = vsub.s32 %v1125, %v1127
        %v1129 = vrot.slane %v1115, %v1128
        %v1130 = vcombine.high %v1114, 0.0
        %v1132 = vunpack.c.l.s4 1934713408
        %v1133 = vunpack.c.0.s8 %v1132
        %v1134 = vlaneseq
        %v1135 = vshrl.u32 %v1134, 7
        %v1136 = vsub.s32 %v1133, %v1135
        %v1137 = vrot.slane %v1114, %v1136
        %v1139 = vunpack.c.l.s4 1934713408
        %v1140 = vunpack.c.0.s8 %v1139
        %v1141 = vlaneseq
        %v1142 = vshrl.u32 %v1141, 7
        %v1143 = vsub.s32 %v1140, %v1142
        %v1144 = vrot.slane %v1130, %v1143
        %v1145 = vcombine.high %v1122, 0.0
        %v1146 = vcombine.high %v1129, 0.0
        %v1147 = vcombine.high %v1137, 0.0
        %v1148 = vcombine.high %v1144, 0.0
        %v1149 = vcombine.low %v233, %v298
        %v1150 = vcombine.high %v233, %v298
        %v1152 = vunpack.c.l.s4 1983009808
        %v1153 = vunpack.c.0.s8 %v1152
        %v1154 = vlaneseq
        %v1155 = vshrl.u32 %v1154, 7
        %v1156 = vsub.s32 %v1153, %v1155
        %v1157 = vrot.slane %v1149, %v1156
        %v1159 = vunpack.c.l.s4 1983009808
        %v1160 = vunpack.c.0.s8 %v1159
        %v1161 = vlaneseq
        %v1162 = vshrl.u32 %v1161, 7
        %v1163 = vsub.s32 %v1160, %v1162
        %v1164 = vrot.slane %v1150, %v1163
        %v1165 = vcombine.low %v262, %v334
        %v1166 = vcombine.high %v262, %v334
        %v1168 = vunpack.c.l.s4 1983009808
        %v1169 = vunpack.c.0.s8 %v1168
        %v1170 = vlaneseq
        %v1171 = vshrl.u32 %v1170, 7
        %v1172 = vsub.s32 %v1169, %v1171
        %v1173 = vrot.slane %v1165, %v1172
        %v1175 = vunpack.c.l.s4 1983009808
        %v1176 = vunpack.c.0.s8 %v1175
        %v1177 = vlaneseq
        %v1178 = vshrl.u32 %v1177, 7
        %v1179 = vsub.s32 %v1176, %v1178
        %v1180 = vrot.slane %v1166, %v1179
        %v1181 = vcombine.low %v370, %v442
        %v1182 = vcombine.high %v370, %v442
        %v1184 = vunpack.c.l.s4 1983009808
        %v1185 = vunpack.c.0.s8 %v1184
        %v1186 = vlaneseq
        %v1187 = vshrl.u32 %v1186, 7
        %v1188 = vsub.s32 %v1185, %v1187
        %v1189 = vrot.slane %v1181, %v1188
        %v1191 = vunpack.c.l.s4 1983009808
        %v1192 = vunpack.c.0.s8 %v1191
        %v1193 = vlaneseq
        %v1194 = vshrl.u32 %v1193, 7
        %v1195 = vsub.s32 %v1192, %v1194
        %v1196 = vrot.slane %v1182, %v1195
        %v1197 = vcombine.low %v406, %v478
        %v1198 = vcombine.high %v406, %v478
        %v1200 = vunpack.c.l.s4 1983009808
        %v1201 = vunpack.c.0.s8 %v1200
        %v1202 = vlaneseq
        %v1203 = vshrl.u32 %v1202, 7
        %v1204 = vsub.s32 %v1201, %v1203
        %v1205 = vrot.slane %v1197, %v1204
        %v1207 = vunpack.c.l.s4 1983009808
        %v1208 = vunpack.c.0.s8 %v1207
        %v1209 = vlaneseq
        %v1210 = vshrl.u32 %v1209, 7
        %v1211 = vsub.s32 %v1208, %v1210
        %v1212 = vrot.slane %v1198, %v1211
        %v1213 = vcombine.low %v1157, %v1173
        %v1214 = vcombine.high %v1157, %v1173
        %v1216 = vunpack.c.l.s4 1934713408
        %v1217 = vunpack.c.0.s8 %v1216
        %v1218 = vlaneseq
        %v1219 = vshrl.u32 %v1218, 7
        %v1220 = vsub.s32 %v1217, %v1219
        %v1221 = vrot.slane %v1213, %v1220
        %v1223 = vunpack.c.l.s4 1934713408
        %v1224 = vunpack.c.0.s8 %v1223
        %v1225 = vlaneseq
        %v1226 = vshrl.u32 %v1225, 7
        %v1227 = vsub.s32 %v1224, %v1226
        %v1228 = vrot.slane %v1214, %v1227
        %v1229 = vcombine.low %v1164, %v1180
        %v1230 = vcombine.high %v1164, %v1180
        %v1232 = vunpack.c.l.s4 1934713408
        %v1233 = vunpack.c.0.s8 %v1232
        %v1234 = vlaneseq
        %v1235 = vshrl.u32 %v1234, 7
        %v1236 = vsub.s32 %v1233, %v1235
        %v1237 = vrot.slane %v1229, %v1236
        %v1239 = vunpack.c.l.s4 1934713408
        %v1240 = vunpack.c.0.s8 %v1239
        %v1241 = vlaneseq
        %v1242 = vshrl.u32 %v1241, 7
        %v1243 = vsub.s32 %v1240, %v1242
        %v1244 = vrot.slane %v1230, %v1243
        %v1245 = vcombine.low %v1189, %v1205
        %v1246 = vcombine.high %v1189, %v1205
        %v1248 = vunpack.c.l.s4 1934713408
        %v1249 = vunpack.c.0.s8 %v1248
        %v1250 = vlaneseq
        %v1251 = vshrl.u32 %v1250, 7
        %v1252 = vsub.s32 %v1249, %v1251
        %v1253 = vrot.slane %v1245, %v1252
        %v1255 = vunpack.c.l.s4 1934713408
        %v1256 = vunpack.c.0.s8 %v1255
        %v1257 = vlaneseq
        %v1258 = vshrl.u32 %v1257, 7
        %v1259 = vsub.s32 %v1256, %v1258
        %v1260 = vrot.slane %v1246, %v1259
        %v1261 = vcombine.low %v1196, %v1212
        %v1262 = vcombine.high %v1196, %v1212
        %v1264 = vunpack.c.l.s4 1934713408
        %v1265 = vunpack.c.0.s8 %v1264
        %v1266 = vlaneseq
        %v1267 = vshrl.u32 %v1266, 7
        %v1268 = vsub.s32 %v1265, %v1267
        %v1269 = vrot.slane %v1261, %v1268
        %v1271 = vunpack.c.l.s4 1934713408
        %v1272 = vunpack.c.0.s8 %v1271
        %v1273 = vlaneseq
        %v1274 = vshrl.u32 %v1273, 7
        %v1275 = vsub.s32 %v1272, %v1274
        %v1276 = vrot.slane %v1262, %v1275
        %v1277 = vcombine.low %v1221, %v1253
        %v1278 = vcombine.high %v1221, %v1253
        %v1279 = vcombine.low %v1228, %v1260
        %v1280 = vcombine.high %v1228, %v1260
        %v1281 = vcombine.low %v1237, %v1269
        %v1282 = vcombine.high %v1237, %v1269
        %v1283 = vcombine.low %v1244, %v1276
        %v1284 = vcombine.high %v1244, %v1276
        %v1285 = vcombine.high %v514, 0.0
        %v1287 = vunpack.c.l.s4 1983009808
        %v1288 = vunpack.c.0.s8 %v1287
        %v1289 = vlaneseq
        %v1290 = vshrl.u32 %v1289, 7
        %v1291 = vsub.s32 %v1288, %v1290
        %v1292 = vrot.slane %v514, %v1291
        %v1294 = vunpack.c.l.s4 1983009808
        %v1295 = vunpack.c.0.s8 %v1294
        %v1296 = vlaneseq
        %v1297 = vshrl.u32 %v1296, 7
        %v1298 = vsub.s32 %v1295, %v1297
        %v1299 = vrot.slane %v1285, %v1298
        %v1300 = vcombine.high %v1292, 0.0
        %v1302 = vunpack.c.l.s4 1934713408
        %v1303 = vunpack.c.0.s8 %v1302
        %v1304 = vlaneseq
        %v1305 = vshrl.u32 %v1304, 7
        %v1306 = vsub.s32 %v1303, %v1305
        %v1307 = vrot.slane %v1292, %v1306
        %v1309 = vunpack.c.l.s4 1934713408
        %v1310 = vunpack.c.0.s8 %v1309
        %v1311 = vlaneseq
        %v1312 = vshrl.u32 %v1311, 7
        %v1313 = vsub.s32 %v1310, %v1312
        %v1314 = vrot.slane %v1300, %v1313
        %v1315 = vcombine.high %v1299, 0.0
        %v1317 = vunpack.c.l.s4 1934713408
        %v1318 = vunpack.c.0.s8 %v1317
        %v1319 = vlaneseq
        %v1320 = vshrl.u32 %v1319, 7
        %v1321 = vsub.s32 %v1318, %v1320
        %v1322 = vrot.slane %v1299, %v1321
        %v1324 = vunpack.c.l.s4 1934713408
        %v1325 = vunpack.c.0.s8 %v1324
        %v1326 = vlaneseq
        %v1327 = vshrl.u32 %v1326, 7
        %v1328 = vsub.s32 %v1325, %v1327
        %v1329 = vrot.slane %v1315, %v1328
        %v1330 = vcombine.high %v1307, 0.0
        %v1331 = vcombine.high %v1314, 0.0
        %v1332 = vcombine.high %v1322, 0.0
        %v1333 = vcombine.high %v1329, 0.0
        %v1334 = vcombine.low %v234, %v300
        %v1336 = vunpack.c.l.s4 1983009808
        %v1337 = vunpack.c.0.s8 %v1336
        %v1338 = vlaneseq
        %v1339 = vshrl.u32 %v1338, 7
        %v1340 = vsub.s32 %v1337, %v1339
        %v1341 = vrot.slane %v1334, %v1340
        %v1342 = vcombine.low %v264, %v336
        %v1344 = vunpack.c.l.s4 1983009808
        %v1345 = vunpack.c.0.s8 %v1344
        %v1346 = vlaneseq
        %v1347 = vshrl.u32 %v1346, 7
        %v1348 = vsub.s32 %v1345, %v1347
        %v1349 = vrot.slane %v1342, %v1348
        %v1350 = vcombine.low %v372, %v444
        %v1352 = vunpack.c.l.s4 1983009808
        %v1353 = vunpack.c.0.s8 %v1352
        %v1354 = vlaneseq
        %v1355 = vshrl.u32 %v1354, 7
        %v1356 = vsub.s32 %v1353, %v1355
        %v1357 = vrot.slane %v1350, %v1356
        %v1358 = vcombine.low %v408, %v480
        %v1360 = vunpack.c.l.s4 1983009808
        %v1361 = vunpack.c.0.s8 %v1360
        %v1362 = vlaneseq
        %v1363 = vshrl.u32 %v1362, 7
        %v1364 = vsub.s32 %v1361, %v1363
        %v1365 = vrot.slane %v1358, %v1364
        %v1366 = vcombine.low %v1341, %v1349
        %v1368 = vunpack.c.l.s4 1934713408
        %v1369 = vunpack.c.0.s8 %v1368
        %v1370 = vlaneseq
        %v1371 = vshrl.u32 %v1370, 7
        %v1372 = vsub.s32 %v1369, %v1371
        %v1373 = vrot.slane %v1366, %v1372
        %v1374 = vcombine.low %v1357, %v1365
        %v1376 = vunpack.c.l.s4 1934713408
        %v1377 = vunpack.c.0.s8 %v1376
        %v1378 = vlaneseq
        %v1379 = vshrl.u32 %v1378, 7
        %v1380 = vsub.s32 %v1377, %v1379
        %v1381 = vrot.slane %v1374, %v1380
        %v1382 = vcombine.low %v1373, %v1381
        %v1385 = vunpack.c.l.s4 1934713408
        %v1386 = vunpack.c.0.s8 %v1385
        %v1387 = vlaneseq
        %v1388 = vshrl.u32 %v1387, 7
        %v1389 = vsub.s32 %v1386, %v1388
        %v1390 = vrot.slane %v516, %v1389
        %v1391 = vcombine.low %v235, %v302
        %v1392 = vcombine.high %v235, %v302
        %v1394 = vunpack.c.l.s4 1983009808
        %v1395 = vunpack.c.0.s8 %v1394
        %v1396 = vlaneseq
        %v1397 = vshrl.u32 %v1396, 7
        %v1398 = vsub.s32 %v1395, %v1397
        %v1399 = vrot.slane %v1391, %v1398
        %v1401 = vunpack.c.l.s4 1983009808
        %v1402 = vunpack.c.0.s8 %v1401
        %v1403 = vlaneseq
        %v1404 = vshrl.u32 %v1403, 7
        %v1405 = vsub.s32 %v1402, %v1404
        %v1406 = vrot.slane %v1392, %v1405
        %v1407 = vcombine.low %v266, %v338
        %v1408 = vcombine.high %v266, %v338
        %v1410 = vunpack.c.l.s4 1983009808
        %v1411 = vunpack.c.0.s8 %v1410
        %v1412 = vlaneseq
        %v1413 = vshrl.u32 %v1412, 7
        %v1414 = vsub.s32 %v1411, %v1413
        %v1415 = vrot.slane %v1407, %v1414
        %v1417 = vunpack.c.l.s4 1983009808
        %v1418 = vunpack.c.0.s8 %v1417
        %v1419 = vlaneseq
        %v1420 = vshrl.u32 %v1419, 7
        %v1421 = vsub.s32 %v1418, %v1420
        %v1422 = vrot.slane %v1408, %v1421
        %v1423 = vcombine.low %v374, %v446
        %v1424 = vcombine.high %v374, %v446
        %v1426 = vunpack.c.l.s4 1983009808
        %v1427 = vunpack.c.0.s8 %v1426
        %v1428 = vlaneseq
        %v1429 = vshrl.u32 %v1428, 7
        %v1430 = vsub.s32 %v1427, %v1429
        %v1431 = vrot.slane %v1423, %v1430
        %v1433 = vunpack.c.l.s4 1983009808
        %v1434 = vunpack.c.0.s8 %v1433
        %v1435 = vlaneseq
        %v1436 = vshrl.u32 %v1435, 7
        %v1437 = vsub.s32 %v1434, %v1436
        %v1438 = vrot.slane %v1424, %v1437
        %v1439 = vcombine.low %v410, %v482
        %v1440 = vcombine.high %v410, %v482
        %v1442 = vunpack.c.l.s4 1983009808
        %v1443 = vunpack.c.0.s8 %v1442
        %v1444 = vlaneseq
        %v1445 = vshrl.u32 %v1444, 7
        %v1446 = vsub.s32 %v1443, %v1445
        %v1447 = vrot.slane %v1439, %v1446
        %v1449 = vunpack.c.l.s4 1983009808
        %v1450 = vunpack.c.0.s8 %v1449
        %v1451 = vlaneseq
        %v1452 = vshrl.u32 %v1451, 7
        %v1453 = vsub.s32 %v1450, %v1452
        %v1454 = vrot.slane %v1440, %v1453
        %v1455 = vcombine.low %v1399, %v1415
        %v1456 = vcombine.high %v1399, %v1415
        %v1458 = vunpack.c.l.s4 1934713408
        %v1459 = vunpack.c.0.s8 %v1458
        %v1460 = vlaneseq
        %v1461 = vshrl.u32 %v1460, 7
        %v1462 = vsub.s32 %v1459, %v1461
        %v1463 = vrot.slane %v1455, %v1462
        %v1465 = vunpack.c.l.s4 1934713408
        %v1466 = vunpack.c.0.s8 %v1465
        %v1467 = vlaneseq
        %v1468 = vshrl.u32 %v1467, 7
        %v1469 = vsub.s32 %v1466, %v1468
        %v1470 = vrot.slane %v1456, %v1469
        %v1471 = vcombine.low %v1406, %v1422
        %v1472 = vcombine.high %v1406, %v1422
        %v1474 = vunpack.c.l.s4 1934713408
        %v1475 = vunpack.c.0.s8 %v1474
        %v1476 = vlaneseq
        %v1477 = vshrl.u32 %v1476, 7
        %v1478 = vsub.s32 %v1475, %v1477
        %v1479 = vrot.slane %v1471, %v1478
        %v1481 = vunpack.c.l.s4 1934713408
        %v1482 = vunpack.c.0.s8 %v1481
        %v1483 = vlaneseq
        %v1484 = vshrl.u32 %v1483, 7
        %v1485 = vsub.s32 %v1482, %v1484
        %v1486 = vrot.slane %v1472, %v1485
        %v1487 = vcombine.low %v1431, %v1447
        %v1488 = vcombine.high %v1431, %v1447
        %v1490 = vunpack.c.l.s4 1934713408
        %v1491 = vunpack.c.0.s8 %v1490
        %v1492 = vlaneseq
        %v1493 = vshrl.u32 %v1492, 7
        %v1494 = vsub.s32 %v1491, %v1493
        %v1495 = vrot.slane %v1487, %v1494
        %v1497 = vunpack.c.l.s4 1934713408
        %v1498 = vunpack.c.0.s8 %v1497
        %v1499 = vlaneseq
        %v1500 = vshrl.u32 %v1499, 7
        %v1501 = vsub.s32 %v1498, %v1500
        %v1502 = vrot.slane %v1488, %v1501
        %v1503 = vcombine.low %v1438, %v1454
        %v1504 = vcombine.high %v1438, %v1454
        %v1506 = vunpack.c.l.s4 1934713408
        %v1507 = vunpack.c.0.s8 %v1506
        %v1508 = vlaneseq
        %v1509 = vshrl.u32 %v1508, 7
        %v1510 = vsub.s32 %v1507, %v1509
        %v1511 = vrot.slane %v1503, %v1510
        %v1513 = vunpack.c.l.s4 1934713408
        %v1514 = vunpack.c.0.s8 %v1513
        %v1515 = vlaneseq
        %v1516 = vshrl.u32 %v1515, 7
        %v1517 = vsub.s32 %v1514, %v1516
        %v1518 = vrot.slane %v1504, %v1517
        %v1519 = vcombine.low %v1463, %v1495
        %v1520 = vcombine.high %v1463, %v1495
        %v1521 = vcombine.low %v1470, %v1502
        %v1522 = vcombine.high %v1470, %v1502
        %v1523 = vcombine.low %v1479, %v1511
        %v1524 = vcombine.high %v1479, %v1511
        %v1525 = vcombine.low %v1486, %v1518
        %v1526 = vcombine.high %v1486, %v1518
        %v1527 = vcombine.high %v518, 0.0
        %v1529 = vunpack.c.l.s4 1983009808
        %v1530 = vunpack.c.0.s8 %v1529
        %v1531 = vlaneseq
        %v1532 = vshrl.u32 %v1531, 7
        %v1533 = vsub.s32 %v1530, %v1532
        %v1534 = vrot.slane %v518, %v1533
        %v1536 = vunpack.c.l.s4 1983009808
        %v1537 = vunpack.c.0.s8 %v1536
        %v1538 = vlaneseq
        %v1539 = vshrl.u32 %v1538, 7
        %v1540 = vsub.s32 %v1537, %v1539
        %v1541 = vrot.slane %v1527, %v1540
        %v1542 = vcombine.high %v1534, 0.0
        %v1544 = vunpack.c.l.s4 1934713408
        %v1545 = vunpack.c.0.s8 %v1544
        %v1546 = vlaneseq
        %v1547 = vshrl.u32 %v1546, 7
        %v1548 = vsub.s32 %v1545, %v1547
        %v1549 = vrot.slane %v1534, %v1548
        %v1551 = vunpack.c.l.s4 1934713408
        %v1552 = vunpack.c.0.s8 %v1551
        %v1553 = vlaneseq
        %v1554 = vshrl.u32 %v1553, 7
        %v1555 = vsub.s32 %v1552, %v1554
        %v1556 = vrot.slane %v1542, %v1555
        %v1557 = vcombine.high %v1541, 0.0
        %v1559 = vunpack.c.l.s4 1934713408
        %v1560 = vunpack.c.0.s8 %v1559
        %v1561 = vlaneseq
        %v1562 = vshrl.u32 %v1561, 7
        %v1563 = vsub.s32 %v1560, %v1562
        %v1564 = vrot.slane %v1541, %v1563
        %v1566 = vunpack.c.l.s4 1934713408
        %v1567 = vunpack.c.0.s8 %v1566
        %v1568 = vlaneseq
        %v1569 = vshrl.u32 %v1568, 7
        %v1570 = vsub.s32 %v1567, %v1569
        %v1571 = vrot.slane %v1557, %v1570
        %v1572 = vcombine.high %v1549, 0.0
        %v1573 = vcombine.high %v1556, 0.0
        %v1574 = vcombine.high %v1564, 0.0
        %v1575 = vcombine.high %v1571, 0.0
        %v1576 = vcombine.low %v236, %v304
        %v1577 = vcombine.high %v236, %v304
        %v1579 = vunpack.c.l.s4 1983009808
        %v1580 = vunpack.c.0.s8 %v1579
        %v1581 = vlaneseq
        %v1582 = vshrl.u32 %v1581, 7
        %v1583 = vsub.s32 %v1580, %v1582
        %v1584 = vrot.slane %v1576, %v1583
        %v1586 = vunpack.c.l.s4 1983009808
        %v1587 = vunpack.c.0.s8 %v1586
        %v1588 = vlaneseq
        %v1589 = vshrl.u32 %v1588, 7
        %v1590 = vsub.s32 %v1587, %v1589
        %v1591 = vrot.slane %v1577, %v1590
        %v1592 = vcombine.low %v268, %v340
        %v1593 = vcombine.high %v268, %v340
        %v1595 = vunpack.c.l.s4 1983009808
        %v1596 = vunpack.c.0.s8 %v1595
        %v1597 = vlaneseq
        %v1598 = vshrl.u32 %v1597, 7
        %v1599 = vsub.s32 %v1596, %v1598
        %v1600 = vrot.slane %v1592, %v1599
        %v1602 = vunpack.c.l.s4 1983009808
        %v1603 = vunpack.c.0.s8 %v1602
        %v1604 = vlaneseq
        %v1605 = vshrl.u32 %v1604, 7
        %v1606 = vsub.s32 %v1603, %v1605
        %v1607 = vrot.slane %v1593, %v1606
        %v1608 = vcombine.low %v376, %v448
        %v1609 = vcombine.high %v376, %v448
        %v1611 = vunpack.c.l.s4 1983009808
        %v1612 = vunpack.c.0.s8 %v1611
        %v1613 = vlaneseq
        %v1614 = vshrl.u32 %v1613, 7
        %v1615 = vsub.s32 %v1612, %v1614
        %v1616 = vrot.slane %v1608, %v1615
        %v1618 = vunpack.c.l.s4 1983009808
        %v1619 = vunpack.c.0.s8 %v1618
        %v1620 = vlaneseq
        %v1621 = vshrl.u32 %v1620, 7
        %v1622 = vsub.s32 %v1619, %v1621
        %v1623 = vrot.slane %v1609, %v1622
        %v1624 = vcombine.low %v412, %v484
        %v1625 = vcombine.high %v412, %v484
        %v1627 = vunpack.c.l.s4 1983009808
        %v1628 = vunpack.c.0.s8 %v1627
        %v1629 = vlaneseq
        %v1630 = vshrl.u32 %v1629, 7
        %v1631 = vsub.s32 %v1628, %v1630
        %v1632 = vrot.slane %v1624, %v1631
        %v1634 = vunpack.c.l.s4 1983009808
        %v1635 = vunpack.c.0.s8 %v1634
        %v1636 = vlaneseq
        %v1637 = vshrl.u32 %v1636, 7
        %v1638 = vsub.s32 %v1635, %v1637
        %v1639 = vrot.slane %v1625, %v1638
        %v1640 = vcombine.low %v1584, %v1600
        %v1641 = vcombine.high %v1584, %v1600
        %v1643 = vunpack.c.l.s4 1934713408
        %v1644 = vunpack.c.0.s8 %v1643
        %v1645 = vlaneseq
        %v1646 = vshrl.u32 %v1645, 7
        %v1647 = vsub.s32 %v1644, %v1646
        %v1648 = vrot.slane %v1640, %v1647
        %v1650 = vunpack.c.l.s4 1934713408
        %v1651 = vunpack.c.0.s8 %v1650
        %v1652 = vlaneseq
        %v1653 = vshrl.u32 %v1652, 7
        %v1654 = vsub.s32 %v1651, %v1653
        %v1655 = vrot.slane %v1641, %v1654
        %v1656 = vcombine.low %v1591, %v1607
        %v1657 = vcombine.high %v1591, %v1607
        %v1659 = vunpack.c.l.s4 1934713408
        %v1660 = vunpack.c.0.s8 %v1659
        %v1661 = vlaneseq
        %v1662 = vshrl.u32 %v1661, 7
        %v1663 = vsub.s32 %v1660, %v1662
        %v1664 = vrot.slane %v1656, %v1663
        %v1666 = vunpack.c.l.s4 1934713408
        %v1667 = vunpack.c.0.s8 %v1666
        %v1668 = vlaneseq
        %v1669 = vshrl.u32 %v1668, 7
        %v1670 = vsub.s32 %v1667, %v1669
        %v1671 = vrot.slane %v1657, %v1670
        %v1672 = vcombine.low %v1616, %v1632
        %v1673 = vcombine.high %v1616, %v1632
        %v1675 = vunpack.c.l.s4 1934713408
        %v1676 = vunpack.c.0.s8 %v1675
        %v1677 = vlaneseq
        %v1678 = vshrl.u32 %v1677, 7
        %v1679 = vsub.s32 %v1676, %v1678
        %v1680 = vrot.slane %v1672, %v1679
        %v1682 = vunpack.c.l.s4 1934713408
        %v1683 = vunpack.c.0.s8 %v1682
        %v1684 = vlaneseq
        %v1685 = vshrl.u32 %v1684, 7
        %v1686 = vsub.s32 %v1683, %v1685
        %v1687 = vrot.slane %v1673, %v1686
        %v1688 = vcombine.low %v1623, %v1639
        %v1689 = vcombine.high %v1623, %v1639
        %v1691 = vunpack.c.l.s4 1934713408
        %v1692 = vunpack.c.0.s8 %v1691
        %v1693 = vlaneseq
        %v1694 = vshrl.u32 %v1693, 7
        %v1695 = vsub.s32 %v1692, %v1694
        %v1696 = vrot.slane %v1688, %v1695
        %v1698 = vunpack.c.l.s4 1934713408
        %v1699 = vunpack.c.0.s8 %v1698
        %v1700 = vlaneseq
        %v1701 = vshrl.u32 %v1700, 7
        %v1702 = vsub.s32 %v1699, %v1701
        %v1703 = vrot.slane %v1689, %v1702
        %v1704 = vcombine.low %v1648, %v1680
        %v1705 = vcombine.high %v1648, %v1680
        %v1706 = vcombine.low %v1655, %v1687
        %v1707 = vcombine.high %v1655, %v1687
        %v1708 = vcombine.low %v1664, %v1696
        %v1709 = vcombine.high %v1664, %v1696
        %v1710 = vcombine.low %v1671, %v1703
        %v1711 = vcombine.high %v1671, %v1703
        %v1712 = vcombine.high %v520, 0.0
        %v1714 = vunpack.c.l.s4 1983009808
        %v1715 = vunpack.c.0.s8 %v1714
        %v1716 = vlaneseq
        %v1717 = vshrl.u32 %v1716, 7
        %v1718 = vsub.s32 %v1715, %v1717
        %v1719 = vrot.slane %v520, %v1718
        %v1721 = vunpack.c.l.s4 1983009808
        %v1722 = vunpack.c.0.s8 %v1721
        %v1723 = vlaneseq
        %v1724 = vshrl.u32 %v1723, 7
        %v1725 = vsub.s32 %v1722, %v1724
        %v1726 = vrot.slane %v1712, %v1725
        %v1727 = vcombine.high %v1719, 0.0
        %v1729 = vunpack.c.l.s4 1934713408
        %v1730 = vunpack.c.0.s8 %v1729
        %v1731 = vlaneseq
        %v1732 = vshrl.u32 %v1731, 7
        %v1733 = vsub.s32 %v1730, %v1732
        %v1734 = vrot.slane %v1719, %v1733
        %v1736 = vunpack.c.l.s4 1934713408
        %v1737 = vunpack.c.0.s8 %v1736
        %v1738 = vlaneseq
        %v1739 = vshrl.u32 %v1738, 7
        %v1740 = vsub.s32 %v1737, %v1739
        %v1741 = vrot.slane %v1727, %v1740
        %v1742 = vcombine.high %v1726, 0.0
        %v1744 = vunpack.c.l.s4 1934713408
        %v1745 = vunpack.c.0.s8 %v1744
        %v1746 = vlaneseq
        %v1747 = vshrl.u32 %v1746, 7
        %v1748 = vsub.s32 %v1745, %v1747
        %v1749 = vrot.slane %v1726, %v1748
        %v1751 = vunpack.c.l.s4 1934713408
        %v1752 = vunpack.c.0.s8 %v1751
        %v1753 = vlaneseq
        %v1754 = vshrl.u32 %v1753, 7
        %v1755 = vsub.s32 %v1752, %v1754
        %v1756 = vrot.slane %v1742, %v1755
        %v1757 = vcombine.high %v1734, 0.0
        %v1758 = vcombine.high %v1741, 0.0
        %v1759 = vcombine.high %v1749, 0.0
        %v1760 = vcombine.high %v1756, 0.0
        %v1761 = vcombine.low %v237, %v306
        %v1763 = vunpack.c.l.s4 1983009808
        %v1764 = vunpack.c.0.s8 %v1763
        %v1765 = vlaneseq
        %v1766 = vshrl.u32 %v1765, 7
        %v1767 = vsub.s32 %v1764, %v1766
        %v1768 = vrot.slane %v1761, %v1767
        %v1769 = vcombine.low %v270, %v342
        %v1771 = vunpack.c.l.s4 1983009808
        %v1772 = vunpack.c.0.s8 %v1771
        %v1773 = vlaneseq
        %v1774 = vshrl.u32 %v1773, 7
        %v1775 = vsub.s32 %v1772, %v1774
        %v1776 = vrot.slane %v1769, %v1775
        %v1777 = vcombine.low %v378, %v450
        %v1779 = vunpack.c.l.s4 1983009808
        %v1780 = vunpack.c.0.s8 %v1779
        %v1781 = vlaneseq
        %v1782 = vshrl.u32 %v1781, 7
        %v1783 = vsub.s32 %v1780, %v1782
        %v1784 = vrot.slane %v1777, %v1783
        %v1785 = vcombine.low %v414, %v486
        %v1787 = vunpack.c.l.s4 1983009808
        %v1788 = vunpack.c.0.s8 %v1787
        %v1789 = vlaneseq
        %v1790 = vshrl.u32 %v1789, 7
        %v1791 = vsub.s32 %v1788, %v1790
        %v1792 = vrot.slane %v1785, %v1791
        %v1793 = vcombine.low %v1768, %v1776
        %v1795 = vunpack.c.l.s4 1934713408
        %v1796 = vunpack.c.0.s8 %v1795
        %v1797 = vlaneseq
        %v1798 = vshrl.u32 %v1797, 7
        %v1799 = vsub.s32 %v1796, %v1798
        %v1800 = vrot.slane %v1793, %v1799
        %v1801 = vcombine.low %v1784, %v1792
        %v1803 = vunpack.c.l.s4 1934713408
        %v1804 = vunpack.c.0.s8 %v1803
        %v1805 = vlaneseq
        %v1806 = vshrl.u32 %v1805, 7
        %v1807 = vsub.s32 %v1804, %v1806
        %v1808 = vrot.slane %v1801, %v1807
        %v1809 = vcombine.low %v1800, %v1808
        %v1812 = vunpack.c.l.s4 1934713408
        %v1813 = vunpack.c.0.s8 %v1812
        %v1814 = vlaneseq
        %v1815 = vshrl.u32 %v1814, 7
        %v1816 = vsub.s32 %v1813, %v1815
        %v1817 = vrot.slane %v522, %v1816
        %v1818 = vcombine.low %v238, %v308
        %v1819 = vcombine.high %v238, %v308
        %v1821 = vunpack.c.l.s4 1983009808
        %v1822 = vunpack.c.0.s8 %v1821
        %v1823 = vlaneseq
        %v1824 = vshrl.u32 %v1823, 7
        %v1825 = vsub.s32 %v1822, %v1824
        %v1826 = vrot.slane %v1818, %v1825
        %v1828 = vunpack.c.l.s4 1983009808
        %v1829 = vunpack.c.0.s8 %v1828
        %v1830 = vlaneseq
        %v1831 = vshrl.u32 %v1830, 7
        %v1832 = vsub.s32 %v1829, %v1831
        %v1833 = vrot.slane %v1819, %v1832
        %v1834 = vcombine.low %v272, %v344
        %v1835 = vcombine.high %v272, %v344
        %v1837 = vunpack.c.l.s4 1983009808
        %v1838 = vunpack.c.0.s8 %v1837
        %v1839 = vlaneseq
        %v1840 = vshrl.u32 %v1839, 7
        %v1841 = vsub.s32 %v1838, %v1840
        %v1842 = vrot.slane %v1834, %v1841
        %v1844 = vunpack.c.l.s4 1983009808
        %v1845 = vunpack.c.0.s8 %v1844
        %v1846 = vlaneseq
        %v1847 = vshrl.u32 %v1846, 7
        %v1848 = vsub.s32 %v1845, %v1847
        %v1849 = vrot.slane %v1835, %v1848
        %v1850 = vcombine.low %v380, %v452
        %v1851 = vcombine.high %v380, %v452
        %v1853 = vunpack.c.l.s4 1983009808
        %v1854 = vunpack.c.0.s8 %v1853
        %v1855 = vlaneseq
        %v1856 = vshrl.u32 %v1855, 7
        %v1857 = vsub.s32 %v1854, %v1856
        %v1858 = vrot.slane %v1850, %v1857
        %v1860 = vunpack.c.l.s4 1983009808
        %v1861 = vunpack.c.0.s8 %v1860
        %v1862 = vlaneseq
        %v1863 = vshrl.u32 %v1862, 7
        %v1864 = vsub.s32 %v1861, %v1863
        %v1865 = vrot.slane %v1851, %v1864
        %v1866 = vcombine.low %v416, %v488
        %v1867 = vcombine.high %v416, %v488
        %v1869 = vunpack.c.l.s4 1983009808
        %v1870 = vunpack.c.0.s8 %v1869
        %v1871 = vlaneseq
        %v1872 = vshrl.u32 %v1871, 7
        %v1873 = vsub.s32 %v1870, %v1872
        %v1874 = vrot.slane %v1866, %v1873
        %v1876 = vunpack.c.l.s4 1983009808
        %v1877 = vunpack.c.0.s8 %v1876
        %v1878 = vlaneseq
        %v1879 = vshrl.u32 %v1878, 7
        %v1880 = vsub.s32 %v1877, %v1879
        %v1881 = vrot.slane %v1867, %v1880
        %v1882 = vcombine.low %v1826, %v1842
        %v1883 = vcombine.high %v1826, %v1842
        %v1885 = vunpack.c.l.s4 1934713408
        %v1886 = vunpack.c.0.s8 %v1885
        %v1887 = vlaneseq
        %v1888 = vshrl.u32 %v1887, 7
        %v1889 = vsub.s32 %v1886, %v1888
        %v1890 = vrot.slane %v1882, %v1889
        %v1892 = vunpack.c.l.s4 1934713408
        %v1893 = vunpack.c.0.s8 %v1892
        %v1894 = vlaneseq
        %v1895 = vshrl.u32 %v1894, 7
        %v1896 = vsub.s32 %v1893, %v1895
        %v1897 = vrot.slane %v1883, %v1896
        %v1898 = vcombine.low %v1833, %v1849
        %v1899 = vcombine.high %v1833, %v1849
        %v1901 = vunpack.c.l.s4 1934713408
        %v1902 = vunpack.c.0.s8 %v1901
        %v1903 = vlaneseq
        %v1904 = vshrl.u32 %v1903, 7
        %v1905 = vsub.s32 %v1902, %v1904
        %v1906 = vrot.slane %v1898, %v1905
        %v1908 = vunpack.c.l.s4 1934713408
        %v1909 = vunpack.c.0.s8 %v1908
        %v1910 = vlaneseq
        %v1911 = vshrl.u32 %v1910, 7
        %v1912 = vsub.s32 %v1909, %v1911
        %v1913 = vrot.slane %v1899, %v1912
        %v1914 = vcombine.low %v1858, %v1874
        %v1915 = vcombine.high %v1858, %v1874
        %v1917 = vunpack.c.l.s4 1934713408
        %v1918 = vunpack.c.0.s8 %v1917
        %v1919 = vlaneseq
        %v1920 = vshrl.u32 %v1919, 7
        %v1921 = vsub.s32 %v1918, %v1920
        %v1922 = vrot.slane %v1914, %v1921
        %v1924 = vunpack.c.l.s4 1934713408
        %v1925 = vunpack.c.0.s8 %v1924
        %v1926 = vlaneseq
        %v1927 = vshrl.u32 %v1926, 7
        %v1928 = vsub.s32 %v1925, %v1927
        %v1929 = vrot.slane %v1915, %v1928
        %v1930 = vcombine.low %v1865, %v1881
        %v1931 = vcombine.high %v1865, %v1881
        %v1933 = vunpack.c.l.s4 1934713408
        %v1934 = vunpack.c.0.s8 %v1933
        %v1935 = vlaneseq
        %v1936 = vshrl.u32 %v1935, 7
        %v1937 = vsub.s32 %v1934, %v1936
        %v1938 = vrot.slane %v1930, %v1937
        %v1940 = vunpack.c.l.s4 1934713408
        %v1941 = vunpack.c.0.s8 %v1940
        %v1942 = vlaneseq
        %v1943 = vshrl.u32 %v1942, 7
        %v1944 = vsub.s32 %v1941, %v1943
        %v1945 = vrot.slane %v1931, %v1944
        %v1946 = vcombine.low %v1890, %v1922
        %v1947 = vcombine.high %v1890, %v1922
        %v1948 = vcombine.low %v1897, %v1929
        %v1949 = vcombine.high %v1897, %v1929
        %v1950 = vcombine.low %v1906, %v1938
        %v1951 = vcombine.high %v1906, %v1938
        %v1952 = vcombine.low %v1913, %v1945
        %v1953 = vcombine.high %v1913, %v1945
        %v1954 = vcombine.high %v524, 0.0
        %v1956 = vunpack.c.l.s4 1983009808
        %v1957 = vunpack.c.0.s8 %v1956
        %v1958 = vlaneseq
        %v1959 = vshrl.u32 %v1958, 7
        %v1960 = vsub.s32 %v1957, %v1959
        %v1961 = vrot.slane %v524, %v1960
        %v1963 = vunpack.c.l.s4 1983009808
        %v1964 = vunpack.c.0.s8 %v1963
        %v1965 = vlaneseq
        %v1966 = vshrl.u32 %v1965, 7
        %v1967 = vsub.s32 %v1964, %v1966
        %v1968 = vrot.slane %v1954, %v1967
        %v1969 = vcombine.high %v1961, 0.0
        %v1971 = vunpack.c.l.s4 1934713408
        %v1972 = vunpack.c.0.s8 %v1971
        %v1973 = vlaneseq
        %v1974 = vshrl.u32 %v1973, 7
        %v1975 = vsub.s32 %v1972, %v1974
        %v1976 = vrot.slane %v1961, %v1975
        %v1978 = vunpack.c.l.s4 1934713408
        %v1979 = vunpack.c.0.s8 %v1978
        %v1980 = vlaneseq
        %v1981 = vshrl.u32 %v1980, 7
        %v1982 = vsub.s32 %v1979, %v1981
        %v1983 = vrot.slane %v1969, %v1982
        %v1984 = vcombine.high %v1968, 0.0
        %v1986 = vunpack.c.l.s4 1934713408
        %v1987 = vunpack.c.0.s8 %v1986
        %v1988 = vlaneseq
        %v1989 = vshrl.u32 %v1988, 7
        %v1990 = vsub.s32 %v1987, %v1989
        %v1991 = vrot.slane %v1968, %v1990
        %v1993 = vunpack.c.l.s4 1934713408
        %v1994 = vunpack.c.0.s8 %v1993
        %v1995 = vlaneseq
        %v1996 = vshrl.u32 %v1995, 7
        %v1997 = vsub.s32 %v1994, %v1996
        %v1998 = vrot.slane %v1984, %v1997
        %v1999 = vcombine.high %v1976, 0.0
        %v2000 = vcombine.high %v1983, 0.0
        %v2001 = vcombine.high %v1991, 0.0
        %v2002 = vcombine.high %v1998, 0.0
        %v2003 = vcombine.low %v239, %v310
        %v2004 = vcombine.high %v239, %v310
        %v2006 = vunpack.c.l.s4 1983009808
        %v2007 = vunpack.c.0.s8 %v2006
        %v2008 = vlaneseq
        %v2009 = vshrl.u32 %v2008, 7
        %v2010 = vsub.s32 %v2007, %v2009
        %v2011 = vrot.slane %v2003, %v2010
        %v2013 = vunpack.c.l.s4 1983009808
        %v2014 = vunpack.c.0.s8 %v2013
        %v2015 = vlaneseq
        %v2016 = vshrl.u32 %v2015, 7
        %v2017 = vsub.s32 %v2014, %v2016
        %v2018 = vrot.slane %v2004, %v2017
        %v2019 = vcombine.low %v274, %v346
        %v2020 = vcombine.high %v274, %v346
        %v2022 = vunpack.c.l.s4 1983009808
        %v2023 = vunpack.c.0.s8 %v2022
        %v2024 = vlaneseq
        %v2025 = vshrl.u32 %v2024, 7
        %v2026 = vsub.s32 %v2023, %v2025
        %v2027 = vrot.slane %v2019, %v2026
        %v2029 = vunpack.c.l.s4 1983009808
        %v2030 = vunpack.c.0.s8 %v2029
        %v2031 = vlaneseq
        %v2032 = vshrl.u32 %v2031, 7
        %v2033 = vsub.s32 %v2030, %v2032
        %v2034 = vrot.slane %v2020, %v2033
        %v2035 = vcombine.low %v382, %v454
        %v2036 = vcombine.high %v382, %v454
        %v2038 = vunpack.c.l.s4 1983009808
        %v2039 = vunpack.c.0.s8 %v2038
        %v2040 = vlaneseq
        %v2041 = vshrl.u32 %v2040, 7
        %v2042 = vsub.s32 %v2039, %v2041
        %v2043 = vrot.slane %v2035, %v2042
        %v2045 = vunpack.c.l.s4 1983009808
        %v2046 = vunpack.c.0.s8 %v2045
        %v2047 = vlaneseq
        %v2048 = vshrl.u32 %v2047, 7
        %v2049 = vsub.s32 %v2046, %v2048
        %v2050 = vrot.slane %v2036, %v2049
        %v2051 = vcombine.low %v418, %v490
        %v2052 = vcombine.high %v418, %v490
        %v2054 = vunpack.c.l.s4 1983009808
        %v2055 = vunpack.c.0.s8 %v2054
        %v2056 = vlaneseq
        %v2057 = vshrl.u32 %v2056, 7
        %v2058 = vsub.s32 %v2055, %v2057
        %v2059 = vrot.slane %v2051, %v2058
        %v2061 = vunpack.c.l.s4 1983009808
        %v2062 = vunpack.c.0.s8 %v2061
        %v2063 = vlaneseq
        %v2064 = vshrl.u32 %v2063, 7
        %v2065 = vsub.s32 %v2062, %v2064
        %v2066 = vrot.slane %v2052, %v2065
        %v2067 = vcombine.low %v2011, %v2027
        %v2068 = vcombine.high %v2011, %v2027
        %v2070 = vunpack.c.l.s4 1934713408
        %v2071 = vunpack.c.0.s8 %v2070
        %v2072 = vlaneseq
        %v2073 = vshrl.u32 %v2072, 7
        %v2074 = vsub.s32 %v2071, %v2073
        %v2075 = vrot.slane %v2067, %v2074
        %v2077 = vunpack.c.l.s4 1934713408
        %v2078 = vunpack.c.0.s8 %v2077
        %v2079 = vlaneseq
        %v2080 = vshrl.u32 %v2079, 7
        %v2081 = vsub.s32 %v2078, %v2080
        %v2082 = vrot.slane %v2068, %v2081
        %v2083 = vcombine.low %v2018, %v2034
        %v2084 = vcombine.high %v2018, %v2034
        %v2086 = vunpack.c.l.s4 1934713408
        %v2087 = vunpack.c.0.s8 %v2086
        %v2088 = vlaneseq
        %v2089 = vshrl.u32 %v2088, 7
        %v2090 = vsub.s32 %v2087, %v2089
        %v2091 = vrot.slane %v2083, %v2090
        %v2093 = vunpack.c.l.s4 1934713408
        %v2094 = vunpack.c.0.s8 %v2093
        %v2095 = vlaneseq
        %v2096 = vshrl.u32 %v2095, 7
        %v2097 = vsub.s32 %v2094, %v2096
        %v2098 = vrot.slane %v2084, %v2097
        %v2099 = vcombine.low %v2043, %v2059
        %v2100 = vcombine.high %v2043, %v2059
        %v2102 = vunpack.c.l.s4 1934713408
        %v2103 = vunpack.c.0.s8 %v2102
        %v2104 = vlaneseq
        %v2105 = vshrl.u32 %v2104, 7
        %v2106 = vsub.s32 %v2103, %v2105
        %v2107 = vrot.slane %v2099, %v2106
        %v2109 = vunpack.c.l.s4 1934713408
        %v2110 = vunpack.c.0.s8 %v2109
        %v2111 = vlaneseq
        %v2112 = vshrl.u32 %v2111, 7
        %v2113 = vsub.s32 %v2110, %v2112
        %v2114 = vrot.slane %v2100, %v2113
        %v2115 = vcombine.low %v2050, %v2066
        %v2116 = vcombine.high %v2050, %v2066
        %v2118 = vunpack.c.l.s4 1934713408
        %v2119 = vunpack.c.0.s8 %v2118
        %v2120 = vlaneseq
        %v2121 = vshrl.u32 %v2120, 7
        %v2122 = vsub.s32 %v2119, %v2121
        %v2123 = vrot.slane %v2115, %v2122
        %v2125 = vunpack.c.l.s4 1934713408
        %v2126 = vunpack.c.0.s8 %v2125
        %v2127 = vlaneseq
        %v2128 = vshrl.u32 %v2127, 7
        %v2129 = vsub.s32 %v2126, %v2128
        %v2130 = vrot.slane %v2116, %v2129
        %v2131 = vcombine.low %v2075, %v2107
        %v2132 = vcombine.high %v2075, %v2107
        %v2133 = vcombine.low %v2082, %v2114
        %v2134 = vcombine.high %v2082, %v2114
        %v2135 = vcombine.low %v2091, %v2123
        %v2136 = vcombine.high %v2091, %v2123
        %v2137 = vcombine.low %v2098, %v2130
        %v2138 = vcombine.high %v2098, %v2130
        %v2139 = vcombine.high %v526, 0.0
        %v2141 = vunpack.c.l.s4 1983009808
        %v2142 = vunpack.c.0.s8 %v2141
        %v2143 = vlaneseq
        %v2144 = vshrl.u32 %v2143, 7
        %v2145 = vsub.s32 %v2142, %v2144
        %v2146 = vrot.slane %v526, %v2145
        %v2148 = vunpack.c.l.s4 1983009808
        %v2149 = vunpack.c.0.s8 %v2148
        %v2150 = vlaneseq
        %v2151 = vshrl.u32 %v2150, 7
        %v2152 = vsub.s32 %v2149, %v2151
        %v2153 = vrot.slane %v2139, %v2152
        %v2154 = vcombine.high %v2146, 0.0
        %v2156 = vunpack.c.l.s4 1934713408
        %v2157 = vunpack.c.0.s8 %v2156
        %v2158 = vlaneseq
        %v2159 = vshrl.u32 %v2158, 7
        %v2160 = vsub.s32 %v2157, %v2159
        %v2161 = vrot.slane %v2146, %v2160
        %v2163 = vunpack.c.l.s4 1934713408
        %v2164 = vunpack.c.0.s8 %v2163
        %v2165 = vlaneseq
        %v2166 = vshrl.u32 %v2165, 7
        %v2167 = vsub.s32 %v2164, %v2166
        %v2168 = vrot.slane %v2154, %v2167
        %v2169 = vcombine.high %v2153, 0.0
        %v2171 = vunpack.c.l.s4 1934713408
        %v2172 = vunpack.c.0.s8 %v2171
        %v2173 = vlaneseq
        %v2174 = vshrl.u32 %v2173, 7
        %v2175 = vsub.s32 %v2172, %v2174
        %v2176 = vrot.slane %v2153, %v2175
        %v2178 = vunpack.c.l.s4 1934713408
        %v2179 = vunpack.c.0.s8 %v2178
        %v2180 = vlaneseq
        %v2181 = vshrl.u32 %v2180, 7
        %v2182 = vsub.s32 %v2179, %v2181
        %v2183 = vrot.slane %v2169, %v2182
        %v2184 = vcombine.high %v2161, 0.0
        %v2185 = vcombine.high %v2168, 0.0
        %v2186 = vcombine.high %v2176, 0.0
        %v2187 = vcombine.high %v2183, 0.0
        %v2188 = vcombine.low %v240, %v312
        %v2190 = vunpack.c.l.s4 1983009808
        %v2191 = vunpack.c.0.s8 %v2190
        %v2192 = vlaneseq
        %v2193 = vshrl.u32 %v2192, 7
        %v2194 = vsub.s32 %v2191, %v2193
        %v2195 = vrot.slane %v2188, %v2194
        %v2196 = vcombine.low %v276, %v348
        %v2198 = vunpack.c.l.s4 1983009808
        %v2199 = vunpack.c.0.s8 %v2198
        %v2200 = vlaneseq
        %v2201 = vshrl.u32 %v2200, 7
        %v2202 = vsub.s32 %v2199, %v2201
        %v2203 = vrot.slane %v2196, %v2202
        %v2204 = vcombine.low %v384, %v456
        %v2206 = vunpack.c.l.s4 1983009808
        %v2207 = vunpack.c.0.s8 %v2206
        %v2208 = vlaneseq
        %v2209 = vshrl.u32 %v2208, 7
        %v2210 = vsub.s32 %v2207, %v2209
        %v2211 = vrot.slane %v2204, %v2210
        %v2212 = vcombine.low %v420, %v492
        %v2214 = vunpack.c.l.s4 1983009808
        %v2215 = vunpack.c.0.s8 %v2214
        %v2216 = vlaneseq
        %v2217 = vshrl.u32 %v2216, 7
        %v2218 = vsub.s32 %v2215, %v2217
        %v2219 = vrot.slane %v2212, %v2218
        %v2220 = vcombine.low %v2195, %v2203
        %v2222 = vunpack.c.l.s4 1934713408
        %v2223 = vunpack.c.0.s8 %v2222
        %v2224 = vlaneseq
        %v2225 = vshrl.u32 %v2224, 7
        %v2226 = vsub.s32 %v2223, %v2225
        %v2227 = vrot.slane %v2220, %v2226
        %v2228 = vcombine.low %v2211, %v2219
        %v2230 = vunpack.c.l.s4 1934713408
        %v2231 = vunpack.c.0.s8 %v2230
        %v2232 = vlaneseq
        %v2233 = vshrl.u32 %v2232, 7
        %v2234 = vsub.s32 %v2231, %v2233
        %v2235 = vrot.slane %v2228, %v2234
        %v2236 = vcombine.low %v2227, %v2235
        %v2239 = vunpack.c.l.s4 1934713408
        %v2240 = vunpack.c.0.s8 %v2239
        %v2241 = vlaneseq
        %v2242 = vshrl.u32 %v2241, 7
        %v2243 = vsub.s32 %v2240, %v2242
        %v2244 = vrot.slane %v528, %v2243
        %2277 = vrot.lane.b32.xlu0 %v665, 127
        %v2278 = vpop.permute.xlu0 %2277
        %2279 = vrot.lane.b32.xlu0 %v667, 127
        %v2280 = vpop.permute.xlu0 %2279
        %2281 = vrot.lane.b32.xlu0 %v669, 127
        %v2282 = vpop.permute.xlu0 %2281
        %2283 = vrot.lane.b32.xlu0 %v671, 127
        %v2284 = vpop.permute.xlu0 %2283
        %2285 = vrot.lane.b32.xlu0 %v850, 127
        %v2286 = vpop.permute.xlu0 %2285
        %2287 = vrot.lane.b32.xlu0 %v852, 127
        %v2288 = vpop.permute.xlu0 %2287
        %2289 = vrot.lane.b32.xlu0 %v854, 127
        %v2290 = vpop.permute.xlu0 %2289
        %2291 = vrot.lane.b32.xlu0 %v856, 127
        %v2292 = vpop.permute.xlu0 %2291
        %2293 = vrot.lane.b32.xlu0 %v1092, 127
        %v2294 = vpop.permute.xlu0 %2293
        %2295 = vrot.lane.b32.xlu0 %v1094, 127
        %v2296 = vpop.permute.xlu0 %2295
        %2297 = vrot.lane.b32.xlu0 %v1096, 127
        %v2298 = vpop.permute.xlu0 %2297
        %2299 = vrot.lane.b32.xlu0 %v1098, 127
        %v2300 = vpop.permute.xlu0 %2299
        %2301 = vrot.lane.b32.xlu0 %v1277, 127
        %v2302 = vpop.permute.xlu0 %2301
        %2303 = vrot.lane.b32.xlu0 %v1279, 127
        %v2304 = vpop.permute.xlu0 %2303
        %2305 = vrot.lane.b32.xlu0 %v1281, 127
        %v2306 = vpop.permute.xlu0 %2305
        %2307 = vrot.lane.b32.xlu0 %v1283, 127
        %v2308 = vpop.permute.xlu0 %2307
        %2309 = vrot.lane.b32.xlu0 %v1519, 127
        %v2310 = vpop.permute.xlu0 %2309
        %2311 = vrot.lane.b32.xlu0 %v1521, 127
        %v2312 = vpop.permute.xlu0 %2311
        %2313 = vrot.lane.b32.xlu0 %v1523, 127
        %v2314 = vpop.permute.xlu0 %2313
        %2315 = vrot.lane.b32.xlu0 %v1525, 127
        %v2316 = vpop.permute.xlu0 %2315
        %2317 = vrot.lane.b32.xlu0 %v1704, 127
        %v2318 = vpop.permute.xlu0 %2317
        %2319 = vrot.lane.b32.xlu0 %v1706, 127
        %v2320 = vpop.permute.xlu0 %2319
        %2321 = vrot.lane.b32.xlu0 %v1708, 127
        %v2322 = vpop.permute.xlu0 %2321
        %2323 = vrot.lane.b32.xlu0 %v1710, 127
        %v2324 = vpop.permute.xlu0 %2323
        %2325 = vrot.lane.b32.xlu0 %v1946, 127
        %v2326 = vpop.permute.xlu0 %2325
        %2327 = vrot.lane.b32.xlu0 %v1948, 127
        %v2328 = vpop.permute.xlu0 %2327
        %2329 = vrot.lane.b32.xlu0 %v1950, 127
        %v2330 = vpop.permute.xlu0 %2329
        %2331 = vrot.lane.b32.xlu0 %v1952, 127
        %v2332 = vpop.permute.xlu0 %2331
        %2333 = vrot.lane.b32.xlu0 %v2131, 127
        %v2334 = vpop.permute.xlu0 %2333
        %2335 = vrot.lane.b32.xlu0 %v2133, 127
        %v2336 = vpop.permute.xlu0 %2335
        %2337 = vrot.lane.b32.xlu0 %v2135, 127
        %v2338 = vpop.permute.xlu0 %2337
        %2339 = vrot.lane.b32.xlu0 %v2137, 127
        %v2340 = vpop.permute.xlu0 %2339
        %vm2373 = vcmask 1046528
        %v2374 = vrot.slane %v665, 1
        %v2375 = vrot.slane %v695, 1
        %v2376 = vsel %vm2373, %v2374, %v2375
        %v2377 = vrot.slane %v667, 1
        %v2378 = vrot.slane %v702, 1
        %v2379 = vsel %vm2373, %v2377, %v2378
        %v2380 = vrot.slane %v669, 1
        %v2381 = vrot.slane %v710, 1
        %v2382 = vsel %vm2373, %v2380, %v2381
        %v2383 = vrot.slane %v671, 1
        %v2384 = vrot.slane %v717, 1
        %v2385 = vsel %vm2373, %v2383, %v2384
        %v2386 = vrot.slane %v850, 1
        %v2387 = vrot.slane %v880, 1
        %v2388 = vsel %vm2373, %v2386, %v2387
        %v2389 = vrot.slane %v852, 1
        %v2390 = vrot.slane %v887, 1
        %v2391 = vsel %vm2373, %v2389, %v2390
        %v2392 = vrot.slane %v854, 1
        %v2393 = vrot.slane %v895, 1
        %v2394 = vsel %vm2373, %v2392, %v2393
        %v2395 = vrot.slane %v856, 1
        %v2396 = vrot.slane %v902, 1
        %v2397 = vsel %vm2373, %v2395, %v2396
        %v2398 = vrot.slane %v1092, 1
        %v2399 = vrot.slane %v1122, 1
        %v2400 = vsel %vm2373, %v2398, %v2399
        %v2401 = vrot.slane %v1094, 1
        %v2402 = vrot.slane %v1129, 1
        %v2403 = vsel %vm2373, %v2401, %v2402
        %v2404 = vrot.slane %v1096, 1
        %v2405 = vrot.slane %v1137, 1
        %v2406 = vsel %vm2373, %v2404, %v2405
        %v2407 = vrot.slane %v1098, 1
        %v2408 = vrot.slane %v1144, 1
        %v2409 = vsel %vm2373, %v2407, %v2408
        %v2410 = vrot.slane %v1277, 1
        %v2411 = vrot.slane %v1307, 1
        %v2412 = vsel %vm2373, %v2410, %v2411
        %v2413 = vrot.slane %v1279, 1
        %v2414 = vrot.slane %v1314, 1
        %v2415 = vsel %vm2373, %v2413, %v2414
        %v2416 = vrot.slane %v1281, 1
        %v2417 = vrot.slane %v1322, 1
        %v2418 = vsel %vm2373, %v2416, %v2417
        %v2419 = vrot.slane %v1283, 1
        %v2420 = vrot.slane %v1329, 1
        %v2421 = vsel %vm2373, %v2419, %v2420
        %v2422 = vrot.slane %v1519, 1
        %v2423 = vrot.slane %v1549, 1
        %v2424 = vsel %vm2373, %v2422, %v2423
        %v2425 = vrot.slane %v1521, 1
        %v2426 = vrot.slane %v1556, 1
        %v2427 = vsel %vm2373, %v2425, %v2426
        %v2428 = vrot.slane %v1523, 1
        %v2429 = vrot.slane %v1564, 1
        %v2430 = vsel %vm2373, %v2428, %v2429
        %v2431 = vrot.slane %v1525, 1
        %v2432 = vrot.slane %v1571, 1
        %v2433 = vsel %vm2373, %v2431, %v2432
        %v2434 = vrot.slane %v1704, 1
        %v2435 = vrot.slane %v1734, 1
        %v2436 = vsel %vm2373, %v2434, %v2435
        %v2437 = vrot.slane %v1706, 1
        %v2438 = vrot.slane %v1741, 1
        %v2439 = vsel %vm2373, %v2437, %v2438
        %v2440 = vrot.slane %v1708, 1
        %v2441 = vrot.slane %v1749, 1
        %v2442 = vsel %vm2373, %v2440, %v2441
        %v2443 = vrot.slane %v1710, 1
        %v2444 = vrot.slane %v1756, 1
        %v2445 = vsel %vm2373, %v2443, %v2444
        %v2446 = vrot.slane %v1946, 1
        %v2447 = vrot.slane %v1976, 1
        %v2448 = vsel %vm2373, %v2446, %v2447
        %v2449 = vrot.slane %v1948, 1
        %v2450 = vrot.slane %v1983, 1
        %v2451 = vsel %vm2373, %v2449, %v2450
        %v2452 = vrot.slane %v1950, 1
        %v2453 = vrot.slane %v1991, 1
        %v2454 = vsel %vm2373, %v2452, %v2453
        %v2455 = vrot.slane %v1952, 1
        %v2456 = vrot.slane %v1998, 1
        %v2457 = vsel %vm2373, %v2455, %v2456
        %v2458 = vrot.slane %v2131, 1
        %v2459 = vrot.slane %v2161, 1
        %v2460 = vsel %vm2373, %v2458, %v2459
        %v2461 = vrot.slane %v2133, 1
        %v2462 = vrot.slane %v2168, 1
        %v2463 = vsel %vm2373, %v2461, %v2462
        %v2464 = vrot.slane %v2135, 1
        %v2465 = vrot.slane %v2176, 1
        %v2466 = vsel %vm2373, %v2464, %v2465
        %v2467 = vrot.slane %v2137, 1
        %v2468 = vrot.slane %v2183, 1
        %v2469 = vsel %vm2373, %v2467, %v2468
        %2502 = vrot.lane.b32.xlu0 %v666, 127
        %v2503 = vpop.permute.xlu0 %2502
        %2504 = vrot.lane.b32.xlu0 %v668, 127
        %v2505 = vpop.permute.xlu0 %2504
        %2506 = vrot.lane.b32.xlu0 %v670, 127
        %v2507 = vpop.permute.xlu0 %2506
        %2508 = vrot.lane.b32.xlu0 %v672, 127
        %v2509 = vpop.permute.xlu0 %2508
        %2510 = vrot.lane.b32.xlu0 %v851, 127
        %v2511 = vpop.permute.xlu0 %2510
        %2512 = vrot.lane.b32.xlu0 %v853, 127
        %v2513 = vpop.permute.xlu0 %2512
        %2514 = vrot.lane.b32.xlu0 %v855, 127
        %v2515 = vpop.permute.xlu0 %2514
        %2516 = vrot.lane.b32.xlu0 %v857, 127
        %v2517 = vpop.permute.xlu0 %2516
        %2518 = vrot.lane.b32.xlu0 %v1093, 127
        %v2519 = vpop.permute.xlu0 %2518
        %2520 = vrot.lane.b32.xlu0 %v1095, 127
        %v2521 = vpop.permute.xlu0 %2520
        %2522 = vrot.lane.b32.xlu0 %v1097, 127
        %v2523 = vpop.permute.xlu0 %2522
        %2524 = vrot.lane.b32.xlu0 %v1099, 127
        %v2525 = vpop.permute.xlu0 %2524
        %2526 = vrot.lane.b32.xlu0 %v1278, 127
        %v2527 = vpop.permute.xlu0 %2526
        %2528 = vrot.lane.b32.xlu0 %v1280, 127
        %v2529 = vpop.permute.xlu0 %2528
        %2530 = vrot.lane.b32.xlu0 %v1282, 127
        %v2531 = vpop.permute.xlu0 %2530
        %2532 = vrot.lane.b32.xlu0 %v1284, 127
        %v2533 = vpop.permute.xlu0 %2532
        %2534 = vrot.lane.b32.xlu0 %v1520, 127
        %v2535 = vpop.permute.xlu0 %2534
        %2536 = vrot.lane.b32.xlu0 %v1522, 127
        %v2537 = vpop.permute.xlu0 %2536
        %2538 = vrot.lane.b32.xlu0 %v1524, 127
        %v2539 = vpop.permute.xlu0 %2538
        %2540 = vrot.lane.b32.xlu0 %v1526, 127
        %v2541 = vpop.permute.xlu0 %2540
        %2542 = vrot.lane.b32.xlu0 %v1705, 127
        %v2543 = vpop.permute.xlu0 %2542
        %2544 = vrot.lane.b32.xlu0 %v1707, 127
        %v2545 = vpop.permute.xlu0 %2544
        %2546 = vrot.lane.b32.xlu0 %v1709, 127
        %v2547 = vpop.permute.xlu0 %2546
        %2548 = vrot.lane.b32.xlu0 %v1711, 127
        %v2549 = vpop.permute.xlu0 %2548
        %2550 = vrot.lane.b32.xlu0 %v1947, 127
        %v2551 = vpop.permute.xlu0 %2550
        %2552 = vrot.lane.b32.xlu0 %v1949, 127
        %v2553 = vpop.permute.xlu0 %2552
        %2554 = vrot.lane.b32.xlu0 %v1951, 127
        %v2555 = vpop.permute.xlu0 %2554
        %2556 = vrot.lane.b32.xlu0 %v1953, 127
        %v2557 = vpop.permute.xlu0 %2556
        %2558 = vrot.lane.b32.xlu0 %v2132, 127
        %v2559 = vpop.permute.xlu0 %2558
        %2560 = vrot.lane.b32.xlu0 %v2134, 127
        %v2561 = vpop.permute.xlu0 %2560
        %2562 = vrot.lane.b32.xlu0 %v2136, 127
        %v2563 = vpop.permute.xlu0 %2562
        %2564 = vrot.lane.b32.xlu0 %v2138, 127
        %v2565 = vpop.permute.xlu0 %2564
        %v2598 = vrot.slane %v666, 1
        %v2599 = vrot.slane %v718, 1
        %v2600 = vsel %vm2373, %v2598, %v2599
        %v2601 = vrot.slane %v668, 1
        %v2602 = vrot.slane %v719, 1
        %v2603 = vsel %vm2373, %v2601, %v2602
        %v2604 = vrot.slane %v670, 1
        %v2605 = vrot.slane %v720, 1
        %v2606 = vsel %vm2373, %v2604, %v2605
        %v2607 = vrot.slane %v672, 1
        %v2608 = vrot.slane %v721, 1
        %v2609 = vsel %vm2373, %v2607, %v2608
        %v2610 = vrot.slane %v851, 1
        %v2611 = vrot.slane %v903, 1
        %v2612 = vsel %vm2373, %v2610, %v2611
        %v2613 = vrot.slane %v853, 1
        %v2614 = vrot.slane %v904, 1
        %v2615 = vsel %vm2373, %v2613, %v2614
        %v2616 = vrot.slane %v855, 1
        %v2617 = vrot.slane %v905, 1
        %v2618 = vsel %vm2373, %v2616, %v2617
        %v2619 = vrot.slane %v857, 1
        %v2620 = vrot.slane %v906, 1
        %v2621 = vsel %vm2373, %v2619, %v2620
        %v2622 = vrot.slane %v1093, 1
        %v2623 = vrot.slane %v1145, 1
        %v2624 = vsel %vm2373, %v2622, %v2623
        %v2625 = vrot.slane %v1095, 1
        %v2626 = vrot.slane %v1146, 1
        %v2627 = vsel %vm2373, %v2625, %v2626
        %v2628 = vrot.slane %v1097, 1
        %v2629 = vrot.slane %v1147, 1
        %v2630 = vsel %vm2373, %v2628, %v2629
        %v2631 = vrot.slane %v1099, 1
        %v2632 = vrot.slane %v1148, 1
        %v2633 = vsel %vm2373, %v2631, %v2632
        %v2634 = vrot.slane %v1278, 1
        %v2635 = vrot.slane %v1330, 1
        %v2636 = vsel %vm2373, %v2634, %v2635
        %v2637 = vrot.slane %v1280, 1
        %v2638 = vrot.slane %v1331, 1
        %v2639 = vsel %vm2373, %v2637, %v2638
        %v2640 = vrot.slane %v1282, 1
        %v2641 = vrot.slane %v1332, 1
        %v2642 = vsel %vm2373, %v2640, %v2641
        %v2643 = vrot.slane %v1284, 1
        %v2644 = vrot.slane %v1333, 1
        %v2645 = vsel %vm2373, %v2643, %v2644
        %v2646 = vrot.slane %v1520, 1
        %v2647 = vrot.slane %v1572, 1
        %v2648 = vsel %vm2373, %v2646, %v2647
        %v2649 = vrot.slane %v1522, 1
        %v2650 = vrot.slane %v1573, 1
        %v2651 = vsel %vm2373, %v2649, %v2650
        %v2652 = vrot.slane %v1524, 1
        %v2653 = vrot.slane %v1574, 1
        %v2654 = vsel %vm2373, %v2652, %v2653
        %v2655 = vrot.slane %v1526, 1
        %v2656 = vrot.slane %v1575, 1
        %v2657 = vsel %vm2373, %v2655, %v2656
        %v2658 = vrot.slane %v1705, 1
        %v2659 = vrot.slane %v1757, 1
        %v2660 = vsel %vm2373, %v2658, %v2659
        %v2661 = vrot.slane %v1707, 1
        %v2662 = vrot.slane %v1758, 1
        %v2663 = vsel %vm2373, %v2661, %v2662
        %v2664 = vrot.slane %v1709, 1
        %v2665 = vrot.slane %v1759, 1
        %v2666 = vsel %vm2373, %v2664, %v2665
        %v2667 = vrot.slane %v1711, 1
        %v2668 = vrot.slane %v1760, 1
        %v2669 = vsel %vm2373, %v2667, %v2668
        %v2670 = vrot.slane %v1947, 1
        %v2671 = vrot.slane %v1999, 1
        %v2672 = vsel %vm2373, %v2670, %v2671
        %v2673 = vrot.slane %v1949, 1
        %v2674 = vrot.slane %v2000, 1
        %v2675 = vsel %vm2373, %v2673, %v2674
        %v2676 = vrot.slane %v1951, 1
        %v2677 = vrot.slane %v2001, 1
        %v2678 = vsel %vm2373, %v2676, %v2677
        %v2679 = vrot.slane %v1953, 1
        %v2680 = vrot.slane %v2002, 1
        %v2681 = vsel %vm2373, %v2679, %v2680
        %v2682 = vrot.slane %v2132, 1
        %v2683 = vrot.slane %v2184, 1
        %v2684 = vsel %vm2373, %v2682, %v2683
        %v2685 = vrot.slane %v2134, 1
        %v2686 = vrot.slane %v2185, 1
        %v2687 = vsel %vm2373, %v2685, %v2686
        %v2688 = vrot.slane %v2136, 1
        %v2689 = vrot.slane %v2186, 1
        %v2690 = vsel %vm2373, %v2688, %v2689
        %v2691 = vrot.slane %v2138, 1
        %v2692 = vrot.slane %v2187, 1
        %v2693 = vsel %vm2373, %v2691, %v2692
        %2698 = vrot.lane.b32.xlu0 %v955, 127
        %v2699 = vpop.permute.xlu0 %2698
        %2700 = vrot.lane.b32.xlu0 %v1382, 127
        %v2701 = vpop.permute.xlu0 %2700
        %2702 = vrot.lane.b32.xlu0 %v1809, 127
        %v2703 = vpop.permute.xlu0 %2702
        %2704 = vrot.lane.b32.xlu0 %v2236, 127
        %v2705 = vpop.permute.xlu0 %2704
        %v2710 = vrot.slane %v955, 1
        %v2711 = vrot.slane %v963, 1
        %v2712 = vsel %vm2373, %v2710, %v2711
        %v2713 = vrot.slane %v1382, 1
        %v2714 = vrot.slane %v1390, 1
        %v2715 = vsel %vm2373, %v2713, %v2714
        %v2716 = vrot.slane %v1809, 1
        %v2717 = vrot.slane %v1817, 1
        %v2718 = vsel %vm2373, %v2716, %v2717
        %v2719 = vrot.slane %v2236, 1
        %v2720 = vrot.slane %v2244, 1
        %v2721 = vsel %vm2373, %v2719, %v2720
        %2722 = vset.pattern.permute.xlu0 0
        %2723 = vperm.xlu0 %2722, %v665
        %v2724 = vpop.permute.xlu0 %2723
        %2725 = vset.pattern.permute.xlu0 0
        %2726 = vperm.xlu0 %2725, %v667
        %v2727 = vpop.permute.xlu0 %2726
        %2728 = vset.pattern.permute.xlu0 0
        %2729 = vperm.xlu0 %2728, %v669
        %v2730 = vpop.permute.xlu0 %2729
        %2731 = vset.pattern.permute.xlu0 0
        %2732 = vperm.xlu0 %2731, %v671
        %v2733 = vpop.permute.xlu0 %2732
        %2734 = vset.pattern.permute.xlu0 0
        %2735 = vperm.xlu0 %2734, %v850
        %v2736 = vpop.permute.xlu0 %2735
        %2737 = vset.pattern.permute.xlu0 0
        %2738 = vperm.xlu0 %2737, %v852
        %v2739 = vpop.permute.xlu0 %2738
        %2740 = vset.pattern.permute.xlu0 0
        %2741 = vperm.xlu0 %2740, %v854
        %v2742 = vpop.permute.xlu0 %2741
        %2743 = vset.pattern.permute.xlu0 0
        %2744 = vperm.xlu0 %2743, %v856
        %v2745 = vpop.permute.xlu0 %2744
        %2746 = vset.pattern.permute.xlu0 0
        %2747 = vperm.xlu0 %2746, %v2278
        %v2748 = vpop.permute.xlu0 %2747
        %2749 = vset.pattern.permute.xlu0 0
        %2750 = vperm.xlu0 %2749, %v2280
        %v2751 = vpop.permute.xlu0 %2750
        %2752 = vset.pattern.permute.xlu0 0
        %2753 = vperm.xlu0 %2752, %v2282
        %v2754 = vpop.permute.xlu0 %2753
        %2755 = vset.pattern.permute.xlu0 0
        %2756 = vperm.xlu0 %2755, %v2284
        %v2757 = vpop.permute.xlu0 %2756
        %2758 = vset.pattern.permute.xlu0 0
        %2759 = vperm.xlu0 %2758, %v2286
        %v2760 = vpop.permute.xlu0 %2759
        %2761 = vset.pattern.permute.xlu0 0
        %2762 = vperm.xlu0 %2761, %v2288
        %v2763 = vpop.permute.xlu0 %2762
        %2764 = vset.pattern.permute.xlu0 0
        %2765 = vperm.xlu0 %2764, %v2290
        %v2766 = vpop.permute.xlu0 %2765
        %2767 = vset.pattern.permute.xlu0 0
        %2768 = vperm.xlu0 %2767, %v2292
        %v2769 = vpop.permute.xlu0 %2768
        %2770 = vset.pattern.permute.xlu0 0
        %2771 = vperm.xlu0 %2770, %v2376
        %v2772 = vpop.permute.xlu0 %2771
        %2773 = vset.pattern.permute.xlu0 0
        %2774 = vperm.xlu0 %2773, %v2379
        %v2775 = vpop.permute.xlu0 %2774
        %2776 = vset.pattern.permute.xlu0 0
        %2777 = vperm.xlu0 %2776, %v2382
        %v2778 = vpop.permute.xlu0 %2777
        %2779 = vset.pattern.permute.xlu0 0
        %2780 = vperm.xlu0 %2779, %v2385
        %v2781 = vpop.permute.xlu0 %2780
        %2782 = vset.pattern.permute.xlu0 0
        %2783 = vperm.xlu0 %2782, %v2388
        %v2784 = vpop.permute.xlu0 %2783
        %2785 = vset.pattern.permute.xlu0 0
        %2786 = vperm.xlu0 %2785, %v2391
        %v2787 = vpop.permute.xlu0 %2786
        %2788 = vset.pattern.permute.xlu0 0
        %2789 = vperm.xlu0 %2788, %v2394
        %v2790 = vpop.permute.xlu0 %2789
        %2791 = vset.pattern.permute.xlu0 0
        %2792 = vperm.xlu0 %2791, %v2397
        %v2793 = vpop.permute.xlu0 %2792
        %2794 = vset.pattern.permute.xlu0 0
        %2795 = vperm.xlu0 %2794, %v666
        %v2796 = vpop.permute.xlu0 %2795
        %2797 = vset.pattern.permute.xlu0 0
        %2798 = vperm.xlu0 %2797, %v668
        %v2799 = vpop.permute.xlu0 %2798
        %2800 = vset.pattern.permute.xlu0 0
        %2801 = vperm.xlu0 %2800, %v670
        %v2802 = vpop.permute.xlu0 %2801
        %2803 = vset.pattern.permute.xlu0 0
        %2804 = vperm.xlu0 %2803, %v672
        %v2805 = vpop.permute.xlu0 %2804
        %2806 = vset.pattern.permute.xlu0 0
        %2807 = vperm.xlu0 %2806, %v851
        %v2808 = vpop.permute.xlu0 %2807
        %2809 = vset.pattern.permute.xlu0 0
        %2810 = vperm.xlu0 %2809, %v853
        %v2811 = vpop.permute.xlu0 %2810
        %2812 = vset.pattern.permute.xlu0 0
        %2813 = vperm.xlu0 %2812, %v855
        %v2814 = vpop.permute.xlu0 %2813
        %2815 = vset.pattern.permute.xlu0 0
        %2816 = vperm.xlu0 %2815, %v857
        %v2817 = vpop.permute.xlu0 %2816
        %2818 = vset.pattern.permute.xlu0 0
        %2819 = vperm.xlu0 %2818, %v2503
        %v2820 = vpop.permute.xlu0 %2819
        %2821 = vset.pattern.permute.xlu0 0
        %2822 = vperm.xlu0 %2821, %v2505
        %v2823 = vpop.permute.xlu0 %2822
        %2824 = vset.pattern.permute.xlu0 0
        %2825 = vperm.xlu0 %2824, %v2507
        %v2826 = vpop.permute.xlu0 %2825
        %2827 = vset.pattern.permute.xlu0 0
        %2828 = vperm.xlu0 %2827, %v2509
        %v2829 = vpop.permute.xlu0 %2828
        %2830 = vset.pattern.permute.xlu0 0
        %2831 = vperm.xlu0 %2830, %v2511
        %v2832 = vpop.permute.xlu0 %2831
        %2833 = vset.pattern.permute.xlu0 0
        %2834 = vperm.xlu0 %2833, %v2513
        %v2835 = vpop.permute.xlu0 %2834
        %2836 = vset.pattern.permute.xlu0 0
        %2837 = vperm.xlu0 %2836, %v2515
        %v2838 = vpop.permute.xlu0 %2837
        %2839 = vset.pattern.permute.xlu0 0
        %2840 = vperm.xlu0 %2839, %v2517
        %v2841 = vpop.permute.xlu0 %2840
        %2842 = vset.pattern.permute.xlu0 0
        %2843 = vperm.xlu0 %2842, %v2600
        %v2844 = vpop.permute.xlu0 %2843
        %2845 = vset.pattern.permute.xlu0 0
        %2846 = vperm.xlu0 %2845, %v2603
        %v2847 = vpop.permute.xlu0 %2846
        %2848 = vset.pattern.permute.xlu0 0
        %2849 = vperm.xlu0 %2848, %v2606
        %v2850 = vpop.permute.xlu0 %2849
        %2851 = vset.pattern.permute.xlu0 0
        %2852 = vperm.xlu0 %2851, %v2609
        %v2853 = vpop.permute.xlu0 %2852
        %2854 = vset.pattern.permute.xlu0 0
        %2855 = vperm.xlu0 %2854, %v2612
        %v2856 = vpop.permute.xlu0 %2855
        %2857 = vset.pattern.permute.xlu0 0
        %2858 = vperm.xlu0 %2857, %v2615
        %v2859 = vpop.permute.xlu0 %2858
        %2860 = vset.pattern.permute.xlu0 0
        %2861 = vperm.xlu0 %2860, %v2618
        %v2862 = vpop.permute.xlu0 %2861
        %2863 = vset.pattern.permute.xlu0 0
        %2864 = vperm.xlu0 %2863, %v2621
        %v2865 = vpop.permute.xlu0 %2864
        %2866 = vset.pattern.permute.xlu0 0
        %2867 = vperm.xlu0 %2866, %v955
        %v2868 = vpop.permute.xlu0 %2867
        %2869 = vset.pattern.permute.xlu0 0
        %2870 = vperm.xlu0 %2869, %v2699
        %v2871 = vpop.permute.xlu0 %2870
        %2872 = vset.pattern.permute.xlu0 0
        %2873 = vperm.xlu0 %2872, %v2712
        %v2874 = vpop.permute.xlu0 %2873
        %2875 = vset.pattern.permute.xlu0 0
        %2876 = vperm.xlu0 %2875, %v1092
        %v2877 = vpop.permute.xlu0 %2876
        %2878 = vset.pattern.permute.xlu0 0
        %2879 = vperm.xlu0 %2878, %v1094
        %v2880 = vpop.permute.xlu0 %2879
        %2881 = vset.pattern.permute.xlu0 0
        %2882 = vperm.xlu0 %2881, %v1096
        %v2883 = vpop.permute.xlu0 %2882
        %2884 = vset.pattern.permute.xlu0 0
        %2885 = vperm.xlu0 %2884, %v1098
        %v2886 = vpop.permute.xlu0 %2885
        %2887 = vset.pattern.permute.xlu0 0
        %2888 = vperm.xlu0 %2887, %v1277
        %v2889 = vpop.permute.xlu0 %2888
        %2890 = vset.pattern.permute.xlu0 0
        %2891 = vperm.xlu0 %2890, %v1279
        %v2892 = vpop.permute.xlu0 %2891
        %2893 = vset.pattern.permute.xlu0 0
        %2894 = vperm.xlu0 %2893, %v1281
        %v2895 = vpop.permute.xlu0 %2894
        %2896 = vset.pattern.permute.xlu0 0
        %2897 = vperm.xlu0 %2896, %v1283
        %v2898 = vpop.permute.xlu0 %2897
        %2899 = vset.pattern.permute.xlu0 0
        %2900 = vperm.xlu0 %2899, %v2294
        %v2901 = vpop.permute.xlu0 %2900
        %2902 = vset.pattern.permute.xlu0 0
        %2903 = vperm.xlu0 %2902, %v2296
        %v2904 = vpop.permute.xlu0 %2903
        %2905 = vset.pattern.permute.xlu0 0
        %2906 = vperm.xlu0 %2905, %v2298
        %v2907 = vpop.permute.xlu0 %2906
        %2908 = vset.pattern.permute.xlu0 0
        %2909 = vperm.xlu0 %2908, %v2300
        %v2910 = vpop.permute.xlu0 %2909
        %2911 = vset.pattern.permute.xlu0 0
        %2912 = vperm.xlu0 %2911, %v2302
        %v2913 = vpop.permute.xlu0 %2912
        %2914 = vset.pattern.permute.xlu0 0
        %2915 = vperm.xlu0 %2914, %v2304
        %v2916 = vpop.permute.xlu0 %2915
        %2917 = vset.pattern.permute.xlu0 0
        %2918 = vperm.xlu0 %2917, %v2306
        %v2919 = vpop.permute.xlu0 %2918
        %2920 = vset.pattern.permute.xlu0 0
        %2921 = vperm.xlu0 %2920, %v2308
        %v2922 = vpop.permute.xlu0 %2921
        %2923 = vset.pattern.permute.xlu0 0
        %2924 = vperm.xlu0 %2923, %v2400
        %v2925 = vpop.permute.xlu0 %2924
        %2926 = vset.pattern.permute.xlu0 0
        %2927 = vperm.xlu0 %2926, %v2403
        %v2928 = vpop.permute.xlu0 %2927
        %2929 = vset.pattern.permute.xlu0 0
        %2930 = vperm.xlu0 %2929, %v2406
        %v2931 = vpop.permute.xlu0 %2930
        %2932 = vset.pattern.permute.xlu0 0
        %2933 = vperm.xlu0 %2932, %v2409
        %v2934 = vpop.permute.xlu0 %2933
        %2935 = vset.pattern.permute.xlu0 0
        %2936 = vperm.xlu0 %2935, %v2412
        %v2937 = vpop.permute.xlu0 %2936
        %2938 = vset.pattern.permute.xlu0 0
        %2939 = vperm.xlu0 %2938, %v2415
        %v2940 = vpop.permute.xlu0 %2939
        %2941 = vset.pattern.permute.xlu0 0
        %2942 = vperm.xlu0 %2941, %v2418
        %v2943 = vpop.permute.xlu0 %2942
        %2944 = vset.pattern.permute.xlu0 0
        %2945 = vperm.xlu0 %2944, %v2421
        %v2946 = vpop.permute.xlu0 %2945
        %2947 = vset.pattern.permute.xlu0 0
        %2948 = vperm.xlu0 %2947, %v1093
        %v2949 = vpop.permute.xlu0 %2948
        %2950 = vset.pattern.permute.xlu0 0
        %2951 = vperm.xlu0 %2950, %v1095
        %v2952 = vpop.permute.xlu0 %2951
        %2953 = vset.pattern.permute.xlu0 0
        %2954 = vperm.xlu0 %2953, %v1097
        %v2955 = vpop.permute.xlu0 %2954
        %2956 = vset.pattern.permute.xlu0 0
        %2957 = vperm.xlu0 %2956, %v1099
        %v2958 = vpop.permute.xlu0 %2957
        %2959 = vset.pattern.permute.xlu0 0
        %2960 = vperm.xlu0 %2959, %v1278
        %v2961 = vpop.permute.xlu0 %2960
        %2962 = vset.pattern.permute.xlu0 0
        %2963 = vperm.xlu0 %2962, %v1280
        %v2964 = vpop.permute.xlu0 %2963
        %2965 = vset.pattern.permute.xlu0 0
        %2966 = vperm.xlu0 %2965, %v1282
        %v2967 = vpop.permute.xlu0 %2966
        %2968 = vset.pattern.permute.xlu0 0
        %2969 = vperm.xlu0 %2968, %v1284
        %v2970 = vpop.permute.xlu0 %2969
        %2971 = vset.pattern.permute.xlu0 0
        %2972 = vperm.xlu0 %2971, %v2519
        %v2973 = vpop.permute.xlu0 %2972
        %2974 = vset.pattern.permute.xlu0 0
        %2975 = vperm.xlu0 %2974, %v2521
        %v2976 = vpop.permute.xlu0 %2975
        %2977 = vset.pattern.permute.xlu0 0
        %2978 = vperm.xlu0 %2977, %v2523
        %v2979 = vpop.permute.xlu0 %2978
        %2980 = vset.pattern.permute.xlu0 0
        %2981 = vperm.xlu0 %2980, %v2525
        %v2982 = vpop.permute.xlu0 %2981
        %2983 = vset.pattern.permute.xlu0 0
        %2984 = vperm.xlu0 %2983, %v2527
        %v2985 = vpop.permute.xlu0 %2984
        %2986 = vset.pattern.permute.xlu0 0
        %2987 = vperm.xlu0 %2986, %v2529
        %v2988 = vpop.permute.xlu0 %2987
        %2989 = vset.pattern.permute.xlu0 0
        %2990 = vperm.xlu0 %2989, %v2531
        %v2991 = vpop.permute.xlu0 %2990
        %2992 = vset.pattern.permute.xlu0 0
        %2993 = vperm.xlu0 %2992, %v2533
        %v2994 = vpop.permute.xlu0 %2993
        %2995 = vset.pattern.permute.xlu0 0
        %2996 = vperm.xlu0 %2995, %v2624
        %v2997 = vpop.permute.xlu0 %2996
        %2998 = vset.pattern.permute.xlu0 0
        %2999 = vperm.xlu0 %2998, %v2627
        %v3000 = vpop.permute.xlu0 %2999
        %3001 = vset.pattern.permute.xlu0 0
        %3002 = vperm.xlu0 %3001, %v2630
        %v3003 = vpop.permute.xlu0 %3002
        %3004 = vset.pattern.permute.xlu0 0
        %3005 = vperm.xlu0 %3004, %v2633
        %v3006 = vpop.permute.xlu0 %3005
        %3007 = vset.pattern.permute.xlu0 0
        %3008 = vperm.xlu0 %3007, %v2636
        %v3009 = vpop.permute.xlu0 %3008
        %3010 = vset.pattern.permute.xlu0 0
        %3011 = vperm.xlu0 %3010, %v2639
        %v3012 = vpop.permute.xlu0 %3011
        %3013 = vset.pattern.permute.xlu0 0
        %3014 = vperm.xlu0 %3013, %v2642
        %v3015 = vpop.permute.xlu0 %3014
        %3016 = vset.pattern.permute.xlu0 0
        %3017 = vperm.xlu0 %3016, %v2645
        %v3018 = vpop.permute.xlu0 %3017
        %3019 = vset.pattern.permute.xlu0 0
        %3020 = vperm.xlu0 %3019, %v1382
        %v3021 = vpop.permute.xlu0 %3020
        %3022 = vset.pattern.permute.xlu0 0
        %3023 = vperm.xlu0 %3022, %v2701
        %v3024 = vpop.permute.xlu0 %3023
        %3025 = vset.pattern.permute.xlu0 0
        %3026 = vperm.xlu0 %3025, %v2715
        %v3027 = vpop.permute.xlu0 %3026
        %3028 = vset.pattern.permute.xlu0 0
        %3029 = vperm.xlu0 %3028, %v1519
        %v3030 = vpop.permute.xlu0 %3029
        %3031 = vset.pattern.permute.xlu0 0
        %3032 = vperm.xlu0 %3031, %v1521
        %v3033 = vpop.permute.xlu0 %3032
        %3034 = vset.pattern.permute.xlu0 0
        %3035 = vperm.xlu0 %3034, %v1523
        %v3036 = vpop.permute.xlu0 %3035
        %3037 = vset.pattern.permute.xlu0 0
        %3038 = vperm.xlu0 %3037, %v1525
        %v3039 = vpop.permute.xlu0 %3038
        %3040 = vset.pattern.permute.xlu0 0
        %3041 = vperm.xlu0 %3040, %v1704
        %v3042 = vpop.permute.xlu0 %3041
        %3043 = vset.pattern.permute.xlu0 0
        %3044 = vperm.xlu0 %3043, %v1706
        %v3045 = vpop.permute.xlu0 %3044
        %3046 = vset.pattern.permute.xlu0 0
        %3047 = vperm.xlu0 %3046, %v1708
        %v3048 = vpop.permute.xlu0 %3047
        %3049 = vset.pattern.permute.xlu0 0
        %3050 = vperm.xlu0 %3049, %v1710
        %v3051 = vpop.permute.xlu0 %3050
        %3052 = vset.pattern.permute.xlu0 0
        %3053 = vperm.xlu0 %3052, %v2310
        %v3054 = vpop.permute.xlu0 %3053
        %3055 = vset.pattern.permute.xlu0 0
        %3056 = vperm.xlu0 %3055, %v2312
        %v3057 = vpop.permute.xlu0 %3056
        %3058 = vset.pattern.permute.xlu0 0
        %3059 = vperm.xlu0 %3058, %v2314
        %v3060 = vpop.permute.xlu0 %3059
        %3061 = vset.pattern.permute.xlu0 0
        %3062 = vperm.xlu0 %3061, %v2316
        %v3063 = vpop.permute.xlu0 %3062
        %3064 = vset.pattern.permute.xlu0 0
        %3065 = vperm.xlu0 %3064, %v2318
        %v3066 = vpop.permute.xlu0 %3065
        %3067 = vset.pattern.permute.xlu0 0
        %3068 = vperm.xlu0 %3067, %v2320
        %v3069 = vpop.permute.xlu0 %3068
        %3070 = vset.pattern.permute.xlu0 0
        %3071 = vperm.xlu0 %3070, %v2322
        %v3072 = vpop.permute.xlu0 %3071
        %3073 = vset.pattern.permute.xlu0 0
        %3074 = vperm.xlu0 %3073, %v2324
        %v3075 = vpop.permute.xlu0 %3074
        %3076 = vset.pattern.permute.xlu0 0
        %3077 = vperm.xlu0 %3076, %v2424
        %v3078 = vpop.permute.xlu0 %3077
        %3079 = vset.pattern.permute.xlu0 0
        %3080 = vperm.xlu0 %3079, %v2427
        %v3081 = vpop.permute.xlu0 %3080
        %3082 = vset.pattern.permute.xlu0 0
        %3083 = vperm.xlu0 %3082, %v2430
        %v3084 = vpop.permute.xlu0 %3083
        %3085 = vset.pattern.permute.xlu0 0
        %3086 = vperm.xlu0 %3085, %v2433
        %v3087 = vpop.permute.xlu0 %3086
        %3088 = vset.pattern.permute.xlu0 0
        %3089 = vperm.xlu0 %3088, %v2436
        %v3090 = vpop.permute.xlu0 %3089
        %3091 = vset.pattern.permute.xlu0 0
        %3092 = vperm.xlu0 %3091, %v2439
        %v3093 = vpop.permute.xlu0 %3092
        %3094 = vset.pattern.permute.xlu0 0
        %3095 = vperm.xlu0 %3094, %v2442
        %v3096 = vpop.permute.xlu0 %3095
        %3097 = vset.pattern.permute.xlu0 0
        %3098 = vperm.xlu0 %3097, %v2445
        %v3099 = vpop.permute.xlu0 %3098
        %3100 = vset.pattern.permute.xlu0 0
        %3101 = vperm.xlu0 %3100, %v1520
        %v3102 = vpop.permute.xlu0 %3101
        %3103 = vset.pattern.permute.xlu0 0
        %3104 = vperm.xlu0 %3103, %v1522
        %v3105 = vpop.permute.xlu0 %3104
        %3106 = vset.pattern.permute.xlu0 0
        %3107 = vperm.xlu0 %3106, %v1524
        %v3108 = vpop.permute.xlu0 %3107
        %3109 = vset.pattern.permute.xlu0 0
        %3110 = vperm.xlu0 %3109, %v1526
        %v3111 = vpop.permute.xlu0 %3110
        %3112 = vset.pattern.permute.xlu0 0
        %3113 = vperm.xlu0 %3112, %v1705
        %v3114 = vpop.permute.xlu0 %3113
        %3115 = vset.pattern.permute.xlu0 0
        %3116 = vperm.xlu0 %3115, %v1707
        %v3117 = vpop.permute.xlu0 %3116
        %3118 = vset.pattern.permute.xlu0 0
        %3119 = vperm.xlu0 %3118, %v1709
        %v3120 = vpop.permute.xlu0 %3119
        %3121 = vset.pattern.permute.xlu0 0
        %3122 = vperm.xlu0 %3121, %v1711
        %v3123 = vpop.permute.xlu0 %3122
        %3124 = vset.pattern.permute.xlu0 0
        %3125 = vperm.xlu0 %3124, %v2535
        %v3126 = vpop.permute.xlu0 %3125
        %3127 = vset.pattern.permute.xlu0 0
        %3128 = vperm.xlu0 %3127, %v2537
        %v3129 = vpop.permute.xlu0 %3128
        %3130 = vset.pattern.permute.xlu0 0
        %3131 = vperm.xlu0 %3130, %v2539
        %v3132 = vpop.permute.xlu0 %3131
        %3133 = vset.pattern.permute.xlu0 0
        %3134 = vperm.xlu0 %3133, %v2541
        %v3135 = vpop.permute.xlu0 %3134
        %3136 = vset.pattern.permute.xlu0 0
        %3137 = vperm.xlu0 %3136, %v2543
        %v3138 = vpop.permute.xlu0 %3137
        %3139 = vset.pattern.permute.xlu0 0
        %3140 = vperm.xlu0 %3139, %v2545
        %v3141 = vpop.permute.xlu0 %3140
        %3142 = vset.pattern.permute.xlu0 0
        %3143 = vperm.xlu0 %3142, %v2547
        %v3144 = vpop.permute.xlu0 %3143
        %3145 = vset.pattern.permute.xlu0 0
        %3146 = vperm.xlu0 %3145, %v2549
        %v3147 = vpop.permute.xlu0 %3146
        %3148 = vset.pattern.permute.xlu0 0
        %3149 = vperm.xlu0 %3148, %v2648
        %v3150 = vpop.permute.xlu0 %3149
        %3151 = vset.pattern.permute.xlu0 0
        %3152 = vperm.xlu0 %3151, %v2651
        %v3153 = vpop.permute.xlu0 %3152
        %3154 = vset.pattern.permute.xlu0 0
        %3155 = vperm.xlu0 %3154, %v2654
        %v3156 = vpop.permute.xlu0 %3155
        %3157 = vset.pattern.permute.xlu0 0
        %3158 = vperm.xlu0 %3157, %v2657
        %v3159 = vpop.permute.xlu0 %3158
        %3160 = vset.pattern.permute.xlu0 0
        %3161 = vperm.xlu0 %3160, %v2660
        %v3162 = vpop.permute.xlu0 %3161
        %3163 = vset.pattern.permute.xlu0 0
        %3164 = vperm.xlu0 %3163, %v2663
        %v3165 = vpop.permute.xlu0 %3164
        %3166 = vset.pattern.permute.xlu0 0
        %3167 = vperm.xlu0 %3166, %v2666
        %v3168 = vpop.permute.xlu0 %3167
        %3169 = vset.pattern.permute.xlu0 0
        %3170 = vperm.xlu0 %3169, %v2669
        %v3171 = vpop.permute.xlu0 %3170
        %3172 = vset.pattern.permute.xlu0 0
        %3173 = vperm.xlu0 %3172, %v1809
        %v3174 = vpop.permute.xlu0 %3173
        %3175 = vset.pattern.permute.xlu0 0
        %3176 = vperm.xlu0 %3175, %v2703
        %v3177 = vpop.permute.xlu0 %3176
        %3178 = vset.pattern.permute.xlu0 0
        %3179 = vperm.xlu0 %3178, %v2718
        %v3180 = vpop.permute.xlu0 %3179
        %3181 = vset.pattern.permute.xlu0 0
        %3182 = vperm.xlu0 %3181, %v1946
        %v3183 = vpop.permute.xlu0 %3182
        %3184 = vset.pattern.permute.xlu0 0
        %3185 = vperm.xlu0 %3184, %v1948
        %v3186 = vpop.permute.xlu0 %3185
        %3187 = vset.pattern.permute.xlu0 0
        %3188 = vperm.xlu0 %3187, %v1950
        %v3189 = vpop.permute.xlu0 %3188
        %3190 = vset.pattern.permute.xlu0 0
        %3191 = vperm.xlu0 %3190, %v1952
        %v3192 = vpop.permute.xlu0 %3191
        %3193 = vset.pattern.permute.xlu0 0
        %3194 = vperm.xlu0 %3193, %v2131
        %v3195 = vpop.permute.xlu0 %3194
        %3196 = vset.pattern.permute.xlu0 0
        %3197 = vperm.xlu0 %3196, %v2133
        %v3198 = vpop.permute.xlu0 %3197
        %3199 = vset.pattern.permute.xlu0 0
        %3200 = vperm.xlu0 %3199, %v2135
        %v3201 = vpop.permute.xlu0 %3200
        %3202 = vset.pattern.permute.xlu0 0
        %3203 = vperm.xlu0 %3202, %v2137
        %v3204 = vpop.permute.xlu0 %3203
        %3205 = vset.pattern.permute.xlu0 0
        %3206 = vperm.xlu0 %3205, %v2326
        %v3207 = vpop.permute.xlu0 %3206
        %3208 = vset.pattern.permute.xlu0 0
        %3209 = vperm.xlu0 %3208, %v2328
        %v3210 = vpop.permute.xlu0 %3209
        %3211 = vset.pattern.permute.xlu0 0
        %3212 = vperm.xlu0 %3211, %v2330
        %v3213 = vpop.permute.xlu0 %3212
        %3214 = vset.pattern.permute.xlu0 0
        %3215 = vperm.xlu0 %3214, %v2332
        %v3216 = vpop.permute.xlu0 %3215
        %3217 = vset.pattern.permute.xlu0 0
        %3218 = vperm.xlu0 %3217, %v2334
        %v3219 = vpop.permute.xlu0 %3218
        %3220 = vset.pattern.permute.xlu0 0
        %3221 = vperm.xlu0 %3220, %v2336
        %v3222 = vpop.permute.xlu0 %3221
        %3223 = vset.pattern.permute.xlu0 0
        %3224 = vperm.xlu0 %3223, %v2338
        %v3225 = vpop.permute.xlu0 %3224
        %3226 = vset.pattern.permute.xlu0 0
        %3227 = vperm.xlu0 %3226, %v2340
        %v3228 = vpop.permute.xlu0 %3227
        %3229 = vset.pattern.permute.xlu0 0
        %3230 = vperm.xlu0 %3229, %v2448
        %v3231 = vpop.permute.xlu0 %3230
        %3232 = vset.pattern.permute.xlu0 0
        %3233 = vperm.xlu0 %3232, %v2451
        %v3234 = vpop.permute.xlu0 %3233
        %3235 = vset.pattern.permute.xlu0 0
        %3236 = vperm.xlu0 %3235, %v2454
        %v3237 = vpop.permute.xlu0 %3236
        %3238 = vset.pattern.permute.xlu0 0
        %3239 = vperm.xlu0 %3238, %v2457
        %v3240 = vpop.permute.xlu0 %3239
        %3241 = vset.pattern.permute.xlu0 0
        %3242 = vperm.xlu0 %3241, %v2460
        %v3243 = vpop.permute.xlu0 %3242
        %3244 = vset.pattern.permute.xlu0 0
        %3245 = vperm.xlu0 %3244, %v2463
        %v3246 = vpop.permute.xlu0 %3245
        %3247 = vset.pattern.permute.xlu0 0
        %3248 = vperm.xlu0 %3247, %v2466
        %v3249 = vpop.permute.xlu0 %3248
        %3250 = vset.pattern.permute.xlu0 0
        %3251 = vperm.xlu0 %3250, %v2469
        %v3252 = vpop.permute.xlu0 %3251
        %3253 = vset.pattern.permute.xlu0 0
        %3254 = vperm.xlu0 %3253, %v1947
        %v3255 = vpop.permute.xlu0 %3254
        %3256 = vset.pattern.permute.xlu0 0
        %3257 = vperm.xlu0 %3256, %v1949
        %v3258 = vpop.permute.xlu0 %3257
        %3259 = vset.pattern.permute.xlu0 0
        %3260 = vperm.xlu0 %3259, %v1951
        %v3261 = vpop.permute.xlu0 %3260
        %3262 = vset.pattern.permute.xlu0 0
        %3263 = vperm.xlu0 %3262, %v1953
        %v3264 = vpop.permute.xlu0 %3263
        %3265 = vset.pattern.permute.xlu0 0
        %3266 = vperm.xlu0 %3265, %v2132
        %v3267 = vpop.permute.xlu0 %3266
        %3268 = vset.pattern.permute.xlu0 0
        %3269 = vperm.xlu0 %3268, %v2134
        %v3270 = vpop.permute.xlu0 %3269
        %3271 = vset.pattern.permute.xlu0 0
        %3272 = vperm.xlu0 %3271, %v2136
        %v3273 = vpop.permute.xlu0 %3272
        %3274 = vset.pattern.permute.xlu0 0
        %3275 = vperm.xlu0 %3274, %v2138
        %v3276 = vpop.permute.xlu0 %3275
        %3277 = vset.pattern.permute.xlu0 0
        %3278 = vperm.xlu0 %3277, %v2551
        %v3279 = vpop.permute.xlu0 %3278
        %3280 = vset.pattern.permute.xlu0 0
        %3281 = vperm.xlu0 %3280, %v2553
        %v3282 = vpop.permute.xlu0 %3281
        %3283 = vset.pattern.permute.xlu0 0
        %3284 = vperm.xlu0 %3283, %v2555
        %v3285 = vpop.permute.xlu0 %3284
        %3286 = vset.pattern.permute.xlu0 0
        %3287 = vperm.xlu0 %3286, %v2557
        %v3288 = vpop.permute.xlu0 %3287
        %3289 = vset.pattern.permute.xlu0 0
        %3290 = vperm.xlu0 %3289, %v2559
        %v3291 = vpop.permute.xlu0 %3290
        %3292 = vset.pattern.permute.xlu0 0
        %3293 = vperm.xlu0 %3292, %v2561
        %v3294 = vpop.permute.xlu0 %3293
        %3295 = vset.pattern.permute.xlu0 0
        %3296 = vperm.xlu0 %3295, %v2563
        %v3297 = vpop.permute.xlu0 %3296
        %3298 = vset.pattern.permute.xlu0 0
        %3299 = vperm.xlu0 %3298, %v2565
        %v3300 = vpop.permute.xlu0 %3299
        %3301 = vset.pattern.permute.xlu0 0
        %3302 = vperm.xlu0 %3301, %v2672
        %v3303 = vpop.permute.xlu0 %3302
        %3304 = vset.pattern.permute.xlu0 0
        %3305 = vperm.xlu0 %3304, %v2675
        %v3306 = vpop.permute.xlu0 %3305
        %3307 = vset.pattern.permute.xlu0 0
        %3308 = vperm.xlu0 %3307, %v2678
        %v3309 = vpop.permute.xlu0 %3308
        %3310 = vset.pattern.permute.xlu0 0
        %3311 = vperm.xlu0 %3310, %v2681
        %v3312 = vpop.permute.xlu0 %3311
        %3313 = vset.pattern.permute.xlu0 0
        %3314 = vperm.xlu0 %3313, %v2684
        %v3315 = vpop.permute.xlu0 %3314
        %3316 = vset.pattern.permute.xlu0 0
        %3317 = vperm.xlu0 %3316, %v2687
        %v3318 = vpop.permute.xlu0 %3317
        %3319 = vset.pattern.permute.xlu0 0
        %3320 = vperm.xlu0 %3319, %v2690
        %v3321 = vpop.permute.xlu0 %3320
        %3322 = vset.pattern.permute.xlu0 0
        %3323 = vperm.xlu0 %3322, %v2693
        %v3324 = vpop.permute.xlu0 %3323
        %3325 = vset.pattern.permute.xlu0 0
        %3326 = vperm.xlu0 %3325, %v2236
        %v3327 = vpop.permute.xlu0 %3326
        %3328 = vset.pattern.permute.xlu0 0
        %3329 = vperm.xlu0 %3328, %v2705
        %v3330 = vpop.permute.xlu0 %3329
        %3331 = vset.pattern.permute.xlu0 0
        %3332 = vperm.xlu0 %3331, %v2721
        %v3333 = vpop.permute.xlu0 %3332
        %v3334 = vlaneseq
        %v3335 = vand.u32 %v3334, 127
        %v3336 = vlaneseq
        %v3337 = vshrl.u32 %v3336, 7
        %v3338 = vsub.s32 %v3335, %v3337
        %v3339 = vrot.slane %v2724, %v3338
        %v3340 = vlaneseq
        %v3341 = vshrl.u32 %v3340, 7
        %v3342 = vsub.s32 %v3335, %v3341
        %v3343 = vrot.slane %v2727, %v3342
        %v3344 = vlaneseq
        %v3345 = vshrl.u32 %v3344, 7
        %v3346 = vsub.s32 %v3335, %v3345
        %v3347 = vrot.slane %v2730, %v3346
        %v3348 = vlaneseq
        %v3349 = vshrl.u32 %v3348, 7
        %v3350 = vsub.s32 %v3335, %v3349
        %v3351 = vrot.slane %v2733, %v3350
        %v3352 = vlaneseq
        %v3353 = vshrl.u32 %v3352, 7
        %v3354 = vsub.s32 %v3335, %v3353
        %v3355 = vrot.slane %v2736, %v3354
        %v3356 = vlaneseq
        %v3357 = vshrl.u32 %v3356, 7
        %v3358 = vsub.s32 %v3335, %v3357
        %v3359 = vrot.slane %v2739, %v3358
        %v3360 = vlaneseq
        %v3361 = vshrl.u32 %v3360, 7
        %v3362 = vsub.s32 %v3335, %v3361
        %v3363 = vrot.slane %v2742, %v3362
        %v3364 = vlaneseq
        %v3365 = vshrl.u32 %v3364, 7
        %v3366 = vsub.s32 %v3335, %v3365
        %v3367 = vrot.slane %v2745, %v3366
        %v3368 = vlaneseq
        %v3369 = vshrl.u32 %v3368, 7
        %v3370 = vsub.s32 %v3335, %v3369
        %v3371 = vrot.slane %v2748, %v3370
        %v3372 = vlaneseq
        %v3373 = vshrl.u32 %v3372, 7
        %v3374 = vsub.s32 %v3335, %v3373
        %v3375 = vrot.slane %v2751, %v3374
        %v3376 = vlaneseq
        %v3377 = vshrl.u32 %v3376, 7
        %v3378 = vsub.s32 %v3335, %v3377
        %v3379 = vrot.slane %v2754, %v3378
        %v3380 = vlaneseq
        %v3381 = vshrl.u32 %v3380, 7
        %v3382 = vsub.s32 %v3335, %v3381
        %v3383 = vrot.slane %v2757, %v3382
        %v3384 = vlaneseq
        %v3385 = vshrl.u32 %v3384, 7
        %v3386 = vsub.s32 %v3335, %v3385
        %v3387 = vrot.slane %v2760, %v3386
        %v3388 = vlaneseq
        %v3389 = vshrl.u32 %v3388, 7
        %v3390 = vsub.s32 %v3335, %v3389
        %v3391 = vrot.slane %v2763, %v3390
        %v3392 = vlaneseq
        %v3393 = vshrl.u32 %v3392, 7
        %v3394 = vsub.s32 %v3335, %v3393
        %v3395 = vrot.slane %v2766, %v3394
        %v3396 = vlaneseq
        %v3397 = vshrl.u32 %v3396, 7
        %v3398 = vsub.s32 %v3335, %v3397
        %v3399 = vrot.slane %v2769, %v3398
        %v3400 = vlaneseq
        %v3401 = vshrl.u32 %v3400, 7
        %v3402 = vsub.s32 %v3335, %v3401
        %v3403 = vrot.slane %v2772, %v3402
        %v3404 = vlaneseq
        %v3405 = vshrl.u32 %v3404, 7
        %v3406 = vsub.s32 %v3335, %v3405
        %v3407 = vrot.slane %v2775, %v3406
        %v3408 = vlaneseq
        %v3409 = vshrl.u32 %v3408, 7
        %v3410 = vsub.s32 %v3335, %v3409
        %v3411 = vrot.slane %v2778, %v3410
        %v3412 = vlaneseq
        %v3413 = vshrl.u32 %v3412, 7
        %v3414 = vsub.s32 %v3335, %v3413
        %v3415 = vrot.slane %v2781, %v3414
        %v3416 = vlaneseq
        %v3417 = vshrl.u32 %v3416, 7
        %v3418 = vsub.s32 %v3335, %v3417
        %v3419 = vrot.slane %v2784, %v3418
        %v3420 = vlaneseq
        %v3421 = vshrl.u32 %v3420, 7
        %v3422 = vsub.s32 %v3335, %v3421
        %v3423 = vrot.slane %v2787, %v3422
        %v3424 = vlaneseq
        %v3425 = vshrl.u32 %v3424, 7
        %v3426 = vsub.s32 %v3335, %v3425
        %v3427 = vrot.slane %v2790, %v3426
        %v3428 = vlaneseq
        %v3429 = vshrl.u32 %v3428, 7
        %v3430 = vsub.s32 %v3335, %v3429
        %v3431 = vrot.slane %v2793, %v3430
        %v3432 = vlaneseq
        %v3433 = vshrl.u32 %v3432, 7
        %v3434 = vsub.s32 %v3335, %v3433
        %v3435 = vrot.slane %v2796, %v3434
        %v3436 = vlaneseq
        %v3437 = vshrl.u32 %v3436, 7
        %v3438 = vsub.s32 %v3335, %v3437
        %v3439 = vrot.slane %v2799, %v3438
        %v3440 = vlaneseq
        %v3441 = vshrl.u32 %v3440, 7
        %v3442 = vsub.s32 %v3335, %v3441
        %v3443 = vrot.slane %v2802, %v3442
        %v3444 = vlaneseq
        %v3445 = vshrl.u32 %v3444, 7
        %v3446 = vsub.s32 %v3335, %v3445
        %v3447 = vrot.slane %v2805, %v3446
        %v3448 = vlaneseq
        %v3449 = vshrl.u32 %v3448, 7
        %v3450 = vsub.s32 %v3335, %v3449
        %v3451 = vrot.slane %v2808, %v3450
        %v3452 = vlaneseq
        %v3453 = vshrl.u32 %v3452, 7
        %v3454 = vsub.s32 %v3335, %v3453
        %v3455 = vrot.slane %v2811, %v3454
        %v3456 = vlaneseq
        %v3457 = vshrl.u32 %v3456, 7
        %v3458 = vsub.s32 %v3335, %v3457
        %v3459 = vrot.slane %v2814, %v3458
        %v3460 = vlaneseq
        %v3461 = vshrl.u32 %v3460, 7
        %v3462 = vsub.s32 %v3335, %v3461
        %v3463 = vrot.slane %v2817, %v3462
        %v3464 = vlaneseq
        %v3465 = vshrl.u32 %v3464, 7
        %v3466 = vsub.s32 %v3335, %v3465
        %v3467 = vrot.slane %v2820, %v3466
        %v3468 = vlaneseq
        %v3469 = vshrl.u32 %v3468, 7
        %v3470 = vsub.s32 %v3335, %v3469
        %v3471 = vrot.slane %v2823, %v3470
        %v3472 = vlaneseq
        %v3473 = vshrl.u32 %v3472, 7
        %v3474 = vsub.s32 %v3335, %v3473
        %v3475 = vrot.slane %v2826, %v3474
        %v3476 = vlaneseq
        %v3477 = vshrl.u32 %v3476, 7
        %v3478 = vsub.s32 %v3335, %v3477
        %v3479 = vrot.slane %v2829, %v3478
        %v3480 = vlaneseq
        %v3481 = vshrl.u32 %v3480, 7
        %v3482 = vsub.s32 %v3335, %v3481
        %v3483 = vrot.slane %v2832, %v3482
        %v3484 = vlaneseq
        %v3485 = vshrl.u32 %v3484, 7
        %v3486 = vsub.s32 %v3335, %v3485
        %v3487 = vrot.slane %v2835, %v3486
        %v3488 = vlaneseq
        %v3489 = vshrl.u32 %v3488, 7
        %v3490 = vsub.s32 %v3335, %v3489
        %v3491 = vrot.slane %v2838, %v3490
        %v3492 = vlaneseq
        %v3493 = vshrl.u32 %v3492, 7
        %v3494 = vsub.s32 %v3335, %v3493
        %v3495 = vrot.slane %v2841, %v3494
        %v3496 = vlaneseq
        %v3497 = vshrl.u32 %v3496, 7
        %v3498 = vsub.s32 %v3335, %v3497
        %v3499 = vrot.slane %v2844, %v3498
        %v3500 = vlaneseq
        %v3501 = vshrl.u32 %v3500, 7
        %v3502 = vsub.s32 %v3335, %v3501
        %v3503 = vrot.slane %v2847, %v3502
        %v3504 = vlaneseq
        %v3505 = vshrl.u32 %v3504, 7
        %v3506 = vsub.s32 %v3335, %v3505
        %v3507 = vrot.slane %v2850, %v3506
        %v3508 = vlaneseq
        %v3509 = vshrl.u32 %v3508, 7
        %v3510 = vsub.s32 %v3335, %v3509
        %v3511 = vrot.slane %v2853, %v3510
        %v3512 = vlaneseq
        %v3513 = vshrl.u32 %v3512, 7
        %v3514 = vsub.s32 %v3335, %v3513
        %v3515 = vrot.slane %v2856, %v3514
        %v3516 = vlaneseq
        %v3517 = vshrl.u32 %v3516, 7
        %v3518 = vsub.s32 %v3335, %v3517
        %v3519 = vrot.slane %v2859, %v3518
        %v3520 = vlaneseq
        %v3521 = vshrl.u32 %v3520, 7
        %v3522 = vsub.s32 %v3335, %v3521
        %v3523 = vrot.slane %v2862, %v3522
        %v3524 = vlaneseq
        %v3525 = vshrl.u32 %v3524, 7
        %v3526 = vsub.s32 %v3335, %v3525
        %v3527 = vrot.slane %v2865, %v3526
        %v3528 = vlaneseq
        %v3529 = vshrl.u32 %v3528, 7
        %v3530 = vsub.s32 %v3335, %v3529
        %v3531 = vrot.slane %v2868, %v3530
        %v3532 = vlaneseq
        %v3533 = vshrl.u32 %v3532, 7
        %v3534 = vsub.s32 %v3335, %v3533
        %v3535 = vrot.slane %v2871, %v3534
        %v3536 = vlaneseq
        %v3537 = vshrl.u32 %v3536, 7
        %v3538 = vsub.s32 %v3335, %v3537
        %v3539 = vrot.slane %v2874, %v3538
        %v3540 = vlaneseq
        %v3541 = vshrl.u32 %v3540, 7
        %v3542 = vsub.s32 %v3335, %v3541
        %v3543 = vrot.slane %v2877, %v3542
        %v3544 = vlaneseq
        %v3545 = vshrl.u32 %v3544, 7
        %v3546 = vsub.s32 %v3335, %v3545
        %v3547 = vrot.slane %v2880, %v3546
        %v3548 = vlaneseq
        %v3549 = vshrl.u32 %v3548, 7
        %v3550 = vsub.s32 %v3335, %v3549
        %v3551 = vrot.slane %v2883, %v3550
        %v3552 = vlaneseq
        %v3553 = vshrl.u32 %v3552, 7
        %v3554 = vsub.s32 %v3335, %v3553
        %v3555 = vrot.slane %v2886, %v3554
        %v3556 = vlaneseq
        %v3557 = vshrl.u32 %v3556, 7
        %v3558 = vsub.s32 %v3335, %v3557
        %v3559 = vrot.slane %v2889, %v3558
        %v3560 = vlaneseq
        %v3561 = vshrl.u32 %v3560, 7
        %v3562 = vsub.s32 %v3335, %v3561
        %v3563 = vrot.slane %v2892, %v3562
        %v3564 = vlaneseq
        %v3565 = vshrl.u32 %v3564, 7
        %v3566 = vsub.s32 %v3335, %v3565
        %v3567 = vrot.slane %v2895, %v3566
        %v3568 = vlaneseq
        %v3569 = vshrl.u32 %v3568, 7
        %v3570 = vsub.s32 %v3335, %v3569
        %v3571 = vrot.slane %v2898, %v3570
        %v3572 = vlaneseq
        %v3573 = vshrl.u32 %v3572, 7
        %v3574 = vsub.s32 %v3335, %v3573
        %v3575 = vrot.slane %v2901, %v3574
        %v3576 = vlaneseq
        %v3577 = vshrl.u32 %v3576, 7
        %v3578 = vsub.s32 %v3335, %v3577
        %v3579 = vrot.slane %v2904, %v3578
        %v3580 = vlaneseq
        %v3581 = vshrl.u32 %v3580, 7
        %v3582 = vsub.s32 %v3335, %v3581
        %v3583 = vrot.slane %v2907, %v3582
        %v3584 = vlaneseq
        %v3585 = vshrl.u32 %v3584, 7
        %v3586 = vsub.s32 %v3335, %v3585
        %v3587 = vrot.slane %v2910, %v3586
        %v3588 = vlaneseq
        %v3589 = vshrl.u32 %v3588, 7
        %v3590 = vsub.s32 %v3335, %v3589
        %v3591 = vrot.slane %v2913, %v3590
        %v3592 = vlaneseq
        %v3593 = vshrl.u32 %v3592, 7
        %v3594 = vsub.s32 %v3335, %v3593
        %v3595 = vrot.slane %v2916, %v3594
        %v3596 = vlaneseq
        %v3597 = vshrl.u32 %v3596, 7
        %v3598 = vsub.s32 %v3335, %v3597
        %v3599 = vrot.slane %v2919, %v3598
        %v3600 = vlaneseq
        %v3601 = vshrl.u32 %v3600, 7
        %v3602 = vsub.s32 %v3335, %v3601
        %v3603 = vrot.slane %v2922, %v3602
        %v3604 = vlaneseq
        %v3605 = vshrl.u32 %v3604, 7
        %v3606 = vsub.s32 %v3335, %v3605
        %v3607 = vrot.slane %v2925, %v3606
        %v3608 = vlaneseq
        %v3609 = vshrl.u32 %v3608, 7
        %v3610 = vsub.s32 %v3335, %v3609
        %v3611 = vrot.slane %v2928, %v3610
        %v3612 = vlaneseq
        %v3613 = vshrl.u32 %v3612, 7
        %v3614 = vsub.s32 %v3335, %v3613
        %v3615 = vrot.slane %v2931, %v3614
        %v3616 = vlaneseq
        %v3617 = vshrl.u32 %v3616, 7
        %v3618 = vsub.s32 %v3335, %v3617
        %v3619 = vrot.slane %v2934, %v3618
        %v3620 = vlaneseq
        %v3621 = vshrl.u32 %v3620, 7
        %v3622 = vsub.s32 %v3335, %v3621
        %v3623 = vrot.slane %v2937, %v3622
        %v3624 = vlaneseq
        %v3625 = vshrl.u32 %v3624, 7
        %v3626 = vsub.s32 %v3335, %v3625
        %v3627 = vrot.slane %v2940, %v3626
        %v3628 = vlaneseq
        %v3629 = vshrl.u32 %v3628, 7
        %v3630 = vsub.s32 %v3335, %v3629
        %v3631 = vrot.slane %v2943, %v3630
        %v3632 = vlaneseq
        %v3633 = vshrl.u32 %v3632, 7
        %v3634 = vsub.s32 %v3335, %v3633
        %v3635 = vrot.slane %v2946, %v3634
        %v3636 = vlaneseq
        %v3637 = vshrl.u32 %v3636, 7
        %v3638 = vsub.s32 %v3335, %v3637
        %v3639 = vrot.slane %v2949, %v3638
        %v3640 = vlaneseq
        %v3641 = vshrl.u32 %v3640, 7
        %v3642 = vsub.s32 %v3335, %v3641
        %v3643 = vrot.slane %v2952, %v3642
        %v3644 = vlaneseq
        %v3645 = vshrl.u32 %v3644, 7
        %v3646 = vsub.s32 %v3335, %v3645
        %v3647 = vrot.slane %v2955, %v3646
        %v3648 = vlaneseq
        %v3649 = vshrl.u32 %v3648, 7
        %v3650 = vsub.s32 %v3335, %v3649
        %v3651 = vrot.slane %v2958, %v3650
        %v3652 = vlaneseq
        %v3653 = vshrl.u32 %v3652, 7
        %v3654 = vsub.s32 %v3335, %v3653
        %v3655 = vrot.slane %v2961, %v3654
        %v3656 = vlaneseq
        %v3657 = vshrl.u32 %v3656, 7
        %v3658 = vsub.s32 %v3335, %v3657
        %v3659 = vrot.slane %v2964, %v3658
        %v3660 = vlaneseq
        %v3661 = vshrl.u32 %v3660, 7
        %v3662 = vsub.s32 %v3335, %v3661
        %v3663 = vrot.slane %v2967, %v3662
        %v3664 = vlaneseq
        %v3665 = vshrl.u32 %v3664, 7
        %v3666 = vsub.s32 %v3335, %v3665
        %v3667 = vrot.slane %v2970, %v3666
        %v3668 = vlaneseq
        %v3669 = vshrl.u32 %v3668, 7
        %v3670 = vsub.s32 %v3335, %v3669
        %v3671 = vrot.slane %v2973, %v3670
        %v3672 = vlaneseq
        %v3673 = vshrl.u32 %v3672, 7
        %v3674 = vsub.s32 %v3335, %v3673
        %v3675 = vrot.slane %v2976, %v3674
        %v3676 = vlaneseq
        %v3677 = vshrl.u32 %v3676, 7
        %v3678 = vsub.s32 %v3335, %v3677
        %v3679 = vrot.slane %v2979, %v3678
        %v3680 = vlaneseq
        %v3681 = vshrl.u32 %v3680, 7
        %v3682 = vsub.s32 %v3335, %v3681
        %v3683 = vrot.slane %v2982, %v3682
        %v3684 = vlaneseq
        %v3685 = vshrl.u32 %v3684, 7
        %v3686 = vsub.s32 %v3335, %v3685
        %v3687 = vrot.slane %v2985, %v3686
        %v3688 = vlaneseq
        %v3689 = vshrl.u32 %v3688, 7
        %v3690 = vsub.s32 %v3335, %v3689
        %v3691 = vrot.slane %v2988, %v3690
        %v3692 = vlaneseq
        %v3693 = vshrl.u32 %v3692, 7
        %v3694 = vsub.s32 %v3335, %v3693
        %v3695 = vrot.slane %v2991, %v3694
        %v3696 = vlaneseq
        %v3697 = vshrl.u32 %v3696, 7
        %v3698 = vsub.s32 %v3335, %v3697
        %v3699 = vrot.slane %v2994, %v3698
        %v3700 = vlaneseq
        %v3701 = vshrl.u32 %v3700, 7
        %v3702 = vsub.s32 %v3335, %v3701
        %v3703 = vrot.slane %v2997, %v3702
        %v3704 = vlaneseq
        %v3705 = vshrl.u32 %v3704, 7
        %v3706 = vsub.s32 %v3335, %v3705
        %v3707 = vrot.slane %v3000, %v3706
        %v3708 = vlaneseq
        %v3709 = vshrl.u32 %v3708, 7
        %v3710 = vsub.s32 %v3335, %v3709
        %v3711 = vrot.slane %v3003, %v3710
        %v3712 = vlaneseq
        %v3713 = vshrl.u32 %v3712, 7
        %v3714 = vsub.s32 %v3335, %v3713
        %v3715 = vrot.slane %v3006, %v3714
        %v3716 = vlaneseq
        %v3717 = vshrl.u32 %v3716, 7
        %v3718 = vsub.s32 %v3335, %v3717
        %v3719 = vrot.slane %v3009, %v3718
        %v3720 = vlaneseq
        %v3721 = vshrl.u32 %v3720, 7
        %v3722 = vsub.s32 %v3335, %v3721
        %v3723 = vrot.slane %v3012, %v3722
        %v3724 = vlaneseq
        %v3725 = vshrl.u32 %v3724, 7
        %v3726 = vsub.s32 %v3335, %v3725
        %v3727 = vrot.slane %v3015, %v3726
        %v3728 = vlaneseq
        %v3729 = vshrl.u32 %v3728, 7
        %v3730 = vsub.s32 %v3335, %v3729
        %v3731 = vrot.slane %v3018, %v3730
        %v3732 = vlaneseq
        %v3733 = vshrl.u32 %v3732, 7
        %v3734 = vsub.s32 %v3335, %v3733
        %v3735 = vrot.slane %v3021, %v3734
        %v3736 = vlaneseq
        %v3737 = vshrl.u32 %v3736, 7
        %v3738 = vsub.s32 %v3335, %v3737
        %v3739 = vrot.slane %v3024, %v3738
        %v3740 = vlaneseq
        %v3741 = vshrl.u32 %v3740, 7
        %v3742 = vsub.s32 %v3335, %v3741
        %v3743 = vrot.slane %v3027, %v3742
        %v3744 = vlaneseq
        %v3745 = vshrl.u32 %v3744, 7
        %v3746 = vsub.s32 %v3335, %v3745
        %v3747 = vrot.slane %v3030, %v3746
        %v3748 = vlaneseq
        %v3749 = vshrl.u32 %v3748, 7
        %v3750 = vsub.s32 %v3335, %v3749
        %v3751 = vrot.slane %v3033, %v3750
        %v3752 = vlaneseq
        %v3753 = vshrl.u32 %v3752, 7
        %v3754 = vsub.s32 %v3335, %v3753
        %v3755 = vrot.slane %v3036, %v3754
        %v3756 = vlaneseq
        %v3757 = vshrl.u32 %v3756, 7
        %v3758 = vsub.s32 %v3335, %v3757
        %v3759 = vrot.slane %v3039, %v3758
        %v3760 = vlaneseq
        %v3761 = vshrl.u32 %v3760, 7
        %v3762 = vsub.s32 %v3335, %v3761
        %v3763 = vrot.slane %v3042, %v3762
        %v3764 = vlaneseq
        %v3765 = vshrl.u32 %v3764, 7
        %v3766 = vsub.s32 %v3335, %v3765
        %v3767 = vrot.slane %v3045, %v3766
        %v3768 = vlaneseq
        %v3769 = vshrl.u32 %v3768, 7
        %v3770 = vsub.s32 %v3335, %v3769
        %v3771 = vrot.slane %v3048, %v3770
        %v3772 = vlaneseq
        %v3773 = vshrl.u32 %v3772, 7
        %v3774 = vsub.s32 %v3335, %v3773
        %v3775 = vrot.slane %v3051, %v3774
        %v3776 = vlaneseq
        %v3777 = vshrl.u32 %v3776, 7
        %v3778 = vsub.s32 %v3335, %v3777
        %v3779 = vrot.slane %v3054, %v3778
        %v3780 = vlaneseq
        %v3781 = vshrl.u32 %v3780, 7
        %v3782 = vsub.s32 %v3335, %v3781
        %v3783 = vrot.slane %v3057, %v3782
        %v3784 = vlaneseq
        %v3785 = vshrl.u32 %v3784, 7
        %v3786 = vsub.s32 %v3335, %v3785
        %v3787 = vrot.slane %v3060, %v3786
        %v3788 = vlaneseq
        %v3789 = vshrl.u32 %v3788, 7
        %v3790 = vsub.s32 %v3335, %v3789
        %v3791 = vrot.slane %v3063, %v3790
        %v3792 = vlaneseq
        %v3793 = vshrl.u32 %v3792, 7
        %v3794 = vsub.s32 %v3335, %v3793
        %v3795 = vrot.slane %v3066, %v3794
        %v3796 = vlaneseq
        %v3797 = vshrl.u32 %v3796, 7
        %v3798 = vsub.s32 %v3335, %v3797
        %v3799 = vrot.slane %v3069, %v3798
        %v3800 = vlaneseq
        %v3801 = vshrl.u32 %v3800, 7
        %v3802 = vsub.s32 %v3335, %v3801
        %v3803 = vrot.slane %v3072, %v3802
        %v3804 = vlaneseq
        %v3805 = vshrl.u32 %v3804, 7
        %v3806 = vsub.s32 %v3335, %v3805
        %v3807 = vrot.slane %v3075, %v3806
        %v3808 = vlaneseq
        %v3809 = vshrl.u32 %v3808, 7
        %v3810 = vsub.s32 %v3335, %v3809
        %v3811 = vrot.slane %v3078, %v3810
        %v3812 = vlaneseq
        %v3813 = vshrl.u32 %v3812, 7
        %v3814 = vsub.s32 %v3335, %v3813
        %v3815 = vrot.slane %v3081, %v3814
        %v3816 = vlaneseq
        %v3817 = vshrl.u32 %v3816, 7
        %v3818 = vsub.s32 %v3335, %v3817
        %v3819 = vrot.slane %v3084, %v3818
        %v3820 = vlaneseq
        %v3821 = vshrl.u32 %v3820, 7
        %v3822 = vsub.s32 %v3335, %v3821
        %v3823 = vrot.slane %v3087, %v3822
        %v3824 = vlaneseq
        %v3825 = vshrl.u32 %v3824, 7
        %v3826 = vsub.s32 %v3335, %v3825
        %v3827 = vrot.slane %v3090, %v3826
        %v3828 = vlaneseq
        %v3829 = vshrl.u32 %v3828, 7
        %v3830 = vsub.s32 %v3335, %v3829
        %v3831 = vrot.slane %v3093, %v3830
        %v3832 = vlaneseq
        %v3833 = vshrl.u32 %v3832, 7
        %v3834 = vsub.s32 %v3335, %v3833
        %v3835 = vrot.slane %v3096, %v3834
        %v3836 = vlaneseq
        %v3837 = vshrl.u32 %v3836, 7
        %v3838 = vsub.s32 %v3335, %v3837
        %v3839 = vrot.slane %v3099, %v3838
        %v3840 = vlaneseq
        %v3841 = vshrl.u32 %v3840, 7
        %v3842 = vsub.s32 %v3335, %v3841
        %v3843 = vrot.slane %v3102, %v3842
        %v3844 = vlaneseq
        %v3845 = vshrl.u32 %v3844, 7
        %v3846 = vsub.s32 %v3335, %v3845
        %v3847 = vrot.slane %v3105, %v3846
        %v3848 = vlaneseq
        %v3849 = vshrl.u32 %v3848, 7
        %v3850 = vsub.s32 %v3335, %v3849
        %v3851 = vrot.slane %v3108, %v3850
        %v3852 = vlaneseq
        %v3853 = vshrl.u32 %v3852, 7
        %v3854 = vsub.s32 %v3335, %v3853
        %v3855 = vrot.slane %v3111, %v3854
        %v3856 = vlaneseq
        %v3857 = vshrl.u32 %v3856, 7
        %v3858 = vsub.s32 %v3335, %v3857
        %v3859 = vrot.slane %v3114, %v3858
        %v3860 = vlaneseq
        %v3861 = vshrl.u32 %v3860, 7
        %v3862 = vsub.s32 %v3335, %v3861
        %v3863 = vrot.slane %v3117, %v3862
        %v3864 = vlaneseq
        %v3865 = vshrl.u32 %v3864, 7
        %v3866 = vsub.s32 %v3335, %v3865
        %v3867 = vrot.slane %v3120, %v3866
        %v3868 = vlaneseq
        %v3869 = vshrl.u32 %v3868, 7
        %v3870 = vsub.s32 %v3335, %v3869
        %v3871 = vrot.slane %v3123, %v3870
        %v3872 = vlaneseq
        %v3873 = vshrl.u32 %v3872, 7
        %v3874 = vsub.s32 %v3335, %v3873
        %v3875 = vrot.slane %v3126, %v3874
        %v3876 = vlaneseq
        %v3877 = vshrl.u32 %v3876, 7
        %v3878 = vsub.s32 %v3335, %v3877
        %v3879 = vrot.slane %v3129, %v3878
        %v3880 = vlaneseq
        %v3881 = vshrl.u32 %v3880, 7
        %v3882 = vsub.s32 %v3335, %v3881
        %v3883 = vrot.slane %v3132, %v3882
        %v3884 = vlaneseq
        %v3885 = vshrl.u32 %v3884, 7
        %v3886 = vsub.s32 %v3335, %v3885
        %v3887 = vrot.slane %v3135, %v3886
        %v3888 = vlaneseq
        %v3889 = vshrl.u32 %v3888, 7
        %v3890 = vsub.s32 %v3335, %v3889
        %v3891 = vrot.slane %v3138, %v3890
        %v3892 = vlaneseq
        %v3893 = vshrl.u32 %v3892, 7
        %v3894 = vsub.s32 %v3335, %v3893
        %v3895 = vrot.slane %v3141, %v3894
        %v3896 = vlaneseq
        %v3897 = vshrl.u32 %v3896, 7
        %v3898 = vsub.s32 %v3335, %v3897
        %v3899 = vrot.slane %v3144, %v3898
        %v3900 = vlaneseq
        %v3901 = vshrl.u32 %v3900, 7
        %v3902 = vsub.s32 %v3335, %v3901
        %v3903 = vrot.slane %v3147, %v3902
        %v3904 = vlaneseq
        %v3905 = vshrl.u32 %v3904, 7
        %v3906 = vsub.s32 %v3335, %v3905
        %v3907 = vrot.slane %v3150, %v3906
        %v3908 = vlaneseq
        %v3909 = vshrl.u32 %v3908, 7
        %v3910 = vsub.s32 %v3335, %v3909
        %v3911 = vrot.slane %v3153, %v3910
        %v3912 = vlaneseq
        %v3913 = vshrl.u32 %v3912, 7
        %v3914 = vsub.s32 %v3335, %v3913
        %v3915 = vrot.slane %v3156, %v3914
        %v3916 = vlaneseq
        %v3917 = vshrl.u32 %v3916, 7
        %v3918 = vsub.s32 %v3335, %v3917
        %v3919 = vrot.slane %v3159, %v3918
        %v3920 = vlaneseq
        %v3921 = vshrl.u32 %v3920, 7
        %v3922 = vsub.s32 %v3335, %v3921
        %v3923 = vrot.slane %v3162, %v3922
        %v3924 = vlaneseq
        %v3925 = vshrl.u32 %v3924, 7
        %v3926 = vsub.s32 %v3335, %v3925
        %v3927 = vrot.slane %v3165, %v3926
        %v3928 = vlaneseq
        %v3929 = vshrl.u32 %v3928, 7
        %v3930 = vsub.s32 %v3335, %v3929
        %v3931 = vrot.slane %v3168, %v3930
        %v3932 = vlaneseq
        %v3933 = vshrl.u32 %v3932, 7
        %v3934 = vsub.s32 %v3335, %v3933
        %v3935 = vrot.slane %v3171, %v3934
        %v3936 = vlaneseq
        %v3937 = vshrl.u32 %v3936, 7
        %v3938 = vsub.s32 %v3335, %v3937
        %v3939 = vrot.slane %v3174, %v3938
        %v3940 = vlaneseq
        %v3941 = vshrl.u32 %v3940, 7
        %v3942 = vsub.s32 %v3335, %v3941
        %v3943 = vrot.slane %v3177, %v3942
        %v3944 = vlaneseq
        %v3945 = vshrl.u32 %v3944, 7
        %v3946 = vsub.s32 %v3335, %v3945
        %v3947 = vrot.slane %v3180, %v3946
        %v3948 = vlaneseq
        %v3949 = vshrl.u32 %v3948, 7
        %v3950 = vsub.s32 %v3335, %v3949
        %v3951 = vrot.slane %v3183, %v3950
        %v3952 = vlaneseq
        %v3953 = vshrl.u32 %v3952, 7
        %v3954 = vsub.s32 %v3335, %v3953
        %v3955 = vrot.slane %v3186, %v3954
        %v3956 = vlaneseq
        %v3957 = vshrl.u32 %v3956, 7
        %v3958 = vsub.s32 %v3335, %v3957
        %v3959 = vrot.slane %v3189, %v3958
        %v3960 = vlaneseq
        %v3961 = vshrl.u32 %v3960, 7
        %v3962 = vsub.s32 %v3335, %v3961
        %v3963 = vrot.slane %v3192, %v3962
        %v3964 = vlaneseq
        %v3965 = vshrl.u32 %v3964, 7
        %v3966 = vsub.s32 %v3335, %v3965
        %v3967 = vrot.slane %v3195, %v3966
        %v3968 = vlaneseq
        %v3969 = vshrl.u32 %v3968, 7
        %v3970 = vsub.s32 %v3335, %v3969
        %v3971 = vrot.slane %v3198, %v3970
        %v3972 = vlaneseq
        %v3973 = vshrl.u32 %v3972, 7
        %v3974 = vsub.s32 %v3335, %v3973
        %v3975 = vrot.slane %v3201, %v3974
        %v3976 = vlaneseq
        %v3977 = vshrl.u32 %v3976, 7
        %v3978 = vsub.s32 %v3335, %v3977
        %v3979 = vrot.slane %v3204, %v3978
        %v3980 = vlaneseq
        %v3981 = vshrl.u32 %v3980, 7
        %v3982 = vsub.s32 %v3335, %v3981
        %v3983 = vrot.slane %v3207, %v3982
        %v3984 = vlaneseq
        %v3985 = vshrl.u32 %v3984, 7
        %v3986 = vsub.s32 %v3335, %v3985
        %v3987 = vrot.slane %v3210, %v3986
        %v3988 = vlaneseq
        %v3989 = vshrl.u32 %v3988, 7
        %v3990 = vsub.s32 %v3335, %v3989
        %v3991 = vrot.slane %v3213, %v3990
        %v3992 = vlaneseq
        %v3993 = vshrl.u32 %v3992, 7
        %v3994 = vsub.s32 %v3335, %v3993
        %v3995 = vrot.slane %v3216, %v3994
        %v3996 = vlaneseq
        %v3997 = vshrl.u32 %v3996, 7
        %v3998 = vsub.s32 %v3335, %v3997
        %v3999 = vrot.slane %v3219, %v3998
        %v4000 = vlaneseq
        %v4001 = vshrl.u32 %v4000, 7
        %v4002 = vsub.s32 %v3335, %v4001
        %v4003 = vrot.slane %v3222, %v4002
        %v4004 = vlaneseq
        %v4005 = vshrl.u32 %v4004, 7
        %v4006 = vsub.s32 %v3335, %v4005
        %v4007 = vrot.slane %v3225, %v4006
        %v4008 = vlaneseq
        %v4009 = vshrl.u32 %v4008, 7
        %v4010 = vsub.s32 %v3335, %v4009
        %v4011 = vrot.slane %v3228, %v4010
        %v4012 = vlaneseq
        %v4013 = vshrl.u32 %v4012, 7
        %v4014 = vsub.s32 %v3335, %v4013
        %v4015 = vrot.slane %v3231, %v4014
        %v4016 = vlaneseq
        %v4017 = vshrl.u32 %v4016, 7
        %v4018 = vsub.s32 %v3335, %v4017
        %v4019 = vrot.slane %v3234, %v4018
        %v4020 = vlaneseq
        %v4021 = vshrl.u32 %v4020, 7
        %v4022 = vsub.s32 %v3335, %v4021
        %v4023 = vrot.slane %v3237, %v4022
        %v4024 = vlaneseq
        %v4025 = vshrl.u32 %v4024, 7
        %v4026 = vsub.s32 %v3335, %v4025
        %v4027 = vrot.slane %v3240, %v4026
        %v4028 = vlaneseq
        %v4029 = vshrl.u32 %v4028, 7
        %v4030 = vsub.s32 %v3335, %v4029
        %v4031 = vrot.slane %v3243, %v4030
        %v4032 = vlaneseq
        %v4033 = vshrl.u32 %v4032, 7
        %v4034 = vsub.s32 %v3335, %v4033
        %v4035 = vrot.slane %v3246, %v4034
        %v4036 = vlaneseq
        %v4037 = vshrl.u32 %v4036, 7
        %v4038 = vsub.s32 %v3335, %v4037
        %v4039 = vrot.slane %v3249, %v4038
        %v4040 = vlaneseq
        %v4041 = vshrl.u32 %v4040, 7
        %v4042 = vsub.s32 %v3335, %v4041
        %v4043 = vrot.slane %v3252, %v4042
        %v4044 = vlaneseq
        %v4045 = vshrl.u32 %v4044, 7
        %v4046 = vsub.s32 %v3335, %v4045
        %v4047 = vrot.slane %v3255, %v4046
        %v4048 = vlaneseq
        %v4049 = vshrl.u32 %v4048, 7
        %v4050 = vsub.s32 %v3335, %v4049
        %v4051 = vrot.slane %v3258, %v4050
        %v4052 = vlaneseq
        %v4053 = vshrl.u32 %v4052, 7
        %v4054 = vsub.s32 %v3335, %v4053
        %v4055 = vrot.slane %v3261, %v4054
        %v4056 = vlaneseq
        %v4057 = vshrl.u32 %v4056, 7
        %v4058 = vsub.s32 %v3335, %v4057
        %v4059 = vrot.slane %v3264, %v4058
        %v4060 = vlaneseq
        %v4061 = vshrl.u32 %v4060, 7
        %v4062 = vsub.s32 %v3335, %v4061
        %v4063 = vrot.slane %v3267, %v4062
        %v4064 = vlaneseq
        %v4065 = vshrl.u32 %v4064, 7
        %v4066 = vsub.s32 %v3335, %v4065
        %v4067 = vrot.slane %v3270, %v4066
        %v4068 = vlaneseq
        %v4069 = vshrl.u32 %v4068, 7
        %v4070 = vsub.s32 %v3335, %v4069
        %v4071 = vrot.slane %v3273, %v4070
        %v4072 = vlaneseq
        %v4073 = vshrl.u32 %v4072, 7
        %v4074 = vsub.s32 %v3335, %v4073
        %v4075 = vrot.slane %v3276, %v4074
        %v4076 = vlaneseq
        %v4077 = vshrl.u32 %v4076, 7
        %v4078 = vsub.s32 %v3335, %v4077
        %v4079 = vrot.slane %v3279, %v4078
        %v4080 = vlaneseq
        %v4081 = vshrl.u32 %v4080, 7
        %v4082 = vsub.s32 %v3335, %v4081
        %v4083 = vrot.slane %v3282, %v4082
        %v4084 = vlaneseq
        %v4085 = vshrl.u32 %v4084, 7
        %v4086 = vsub.s32 %v3335, %v4085
        %v4087 = vrot.slane %v3285, %v4086
        %v4088 = vlaneseq
        %v4089 = vshrl.u32 %v4088, 7
        %v4090 = vsub.s32 %v3335, %v4089
        %v4091 = vrot.slane %v3288, %v4090
        %v4092 = vlaneseq
        %v4093 = vshrl.u32 %v4092, 7
        %v4094 = vsub.s32 %v3335, %v4093
        %v4095 = vrot.slane %v3291, %v4094
        %v4096 = vlaneseq
        %v4097 = vshrl.u32 %v4096, 7
        %v4098 = vsub.s32 %v3335, %v4097
        %v4099 = vrot.slane %v3294, %v4098
        %v4100 = vlaneseq
        %v4101 = vshrl.u32 %v4100, 7
        %v4102 = vsub.s32 %v3335, %v4101
        %v4103 = vrot.slane %v3297, %v4102
        %v4104 = vlaneseq
        %v4105 = vshrl.u32 %v4104, 7
        %v4106 = vsub.s32 %v3335, %v4105
        %v4107 = vrot.slane %v3300, %v4106
        %v4108 = vlaneseq
        %v4109 = vshrl.u32 %v4108, 7
        %v4110 = vsub.s32 %v3335, %v4109
        %v4111 = vrot.slane %v3303, %v4110
        %v4112 = vlaneseq
        %v4113 = vshrl.u32 %v4112, 7
        %v4114 = vsub.s32 %v3335, %v4113
        %v4115 = vrot.slane %v3306, %v4114
        %v4116 = vlaneseq
        %v4117 = vshrl.u32 %v4116, 7
        %v4118 = vsub.s32 %v3335, %v4117
        %v4119 = vrot.slane %v3309, %v4118
        %v4120 = vlaneseq
        %v4121 = vshrl.u32 %v4120, 7
        %v4122 = vsub.s32 %v3335, %v4121
        %v4123 = vrot.slane %v3312, %v4122
        %v4124 = vlaneseq
        %v4125 = vshrl.u32 %v4124, 7
        %v4126 = vsub.s32 %v3335, %v4125
        %v4127 = vrot.slane %v3315, %v4126
        %v4128 = vlaneseq
        %v4129 = vshrl.u32 %v4128, 7
        %v4130 = vsub.s32 %v3335, %v4129
        %v4131 = vrot.slane %v3318, %v4130
        %v4132 = vlaneseq
        %v4133 = vshrl.u32 %v4132, 7
        %v4134 = vsub.s32 %v3335, %v4133
        %v4135 = vrot.slane %v3321, %v4134
        %v4136 = vlaneseq
        %v4137 = vshrl.u32 %v4136, 7
        %v4138 = vsub.s32 %v3335, %v4137
        %v4139 = vrot.slane %v3324, %v4138
        %v4140 = vlaneseq
        %v4141 = vshrl.u32 %v4140, 7
        %v4142 = vsub.s32 %v3335, %v4141
        %v4143 = vrot.slane %v3327, %v4142
        %v4144 = vlaneseq
        %v4145 = vshrl.u32 %v4144, 7
        %v4146 = vsub.s32 %v3335, %v4145
        %v4147 = vrot.slane %v3330, %v4146
        %v4148 = vlaneseq
        %v4149 = vshrl.u32 %v4148, 7
        %v4150 = vsub.s32 %v3335, %v4149
        %v4151 = vrot.slane %v3333, %v4150
        %vm4152 = vcmask 1041409
        %v4153 = vsel %vm4152, %v3343, %v3339
        %vm4154 = vcmask 1042434
        %v4155 = vsel %vm4154, %v3347, %v4153
        %vm4156 = vcmask 1043459
        %v4157 = vsel %vm4156, %v3351, %v4155
        %vm4158 = vcmask 1044484
        %v4159 = vsel %vm4158, %v3355, %v4157
        %vm4160 = vcmask 1045509
        %v4161 = vsel %vm4160, %v3359, %v4159
        %vm4162 = vcmask 1046534
        %v4163 = vsel %vm4162, %v3363, %v4161
        %vm4164 = vcmask 1047559
        %v4165 = vsel %vm4164, %v3367, %v4163
        %v4166 = vsel %vm4152, %v3375, %v3371
        %v4167 = vsel %vm4154, %v3379, %v4166
        %v4168 = vsel %vm4156, %v3383, %v4167
        %v4169 = vsel %vm4158, %v3387, %v4168
        %v4170 = vsel %vm4160, %v3391, %v4169
        %v4171 = vsel %vm4162, %v3395, %v4170
        %v4172 = vsel %vm4164, %v3399, %v4171
        %v4173 = vsel %vm4152, %v3407, %v3403
        %v4174 = vsel %vm4154, %v3411, %v4173
        %v4175 = vsel %vm4156, %v3415, %v4174
        %v4176 = vsel %vm4158, %v3419, %v4175
        %v4177 = vsel %vm4160, %v3423, %v4176
        %v4178 = vsel %vm4162, %v3427, %v4177
        %v4179 = vsel %vm4164, %v3431, %v4178
        %v4180 = vsel %vm4152, %v3439, %v3435
        %v4181 = vsel %vm4154, %v3443, %v4180
        %v4182 = vsel %vm4156, %v3447, %v4181
        %v4183 = vsel %vm4158, %v3451, %v4182
        %v4184 = vsel %vm4160, %v3455, %v4183
        %v4185 = vsel %vm4162, %v3459, %v4184
        %v4186 = vsel %vm4164, %v3463, %v4185
        %v4187 = vsel %vm4152, %v3471, %v3467
        %v4188 = vsel %vm4154, %v3475, %v4187
        %v4189 = vsel %vm4156, %v3479, %v4188
        %v4190 = vsel %vm4158, %v3483, %v4189
        %v4191 = vsel %vm4160, %v3487, %v4190
        %v4192 = vsel %vm4162, %v3491, %v4191
        %v4193 = vsel %vm4164, %v3495, %v4192
        %v4194 = vsel %vm4152, %v3503, %v3499
        %v4195 = vsel %vm4154, %v3507, %v4194
        %v4196 = vsel %vm4156, %v3511, %v4195
        %v4197 = vsel %vm4158, %v3515, %v4196
        %v4198 = vsel %vm4160, %v3519, %v4197
        %v4199 = vsel %vm4162, %v3523, %v4198
        %v4200 = vsel %vm4164, %v3527, %v4199
        %v4201 = vsel %vm4152, %v3347, %v3343
        %v4202 = vsel %vm4154, %v3351, %v4201
        %v4203 = vsel %vm4156, %v3355, %v4202
        %v4204 = vsel %vm4158, %v3359, %v4203
        %v4205 = vsel %vm4160, %v3363, %v4204
        %v4206 = vsel %vm4162, %v3367, %v4205
        %v4207 = vsel %vm4164, %v3531, %v4206
        %v4208 = vsel %vm4152, %v3379, %v3375
        %v4209 = vsel %vm4154, %v3383, %v4208
        %v4210 = vsel %vm4156, %v3387, %v4209
        %v4211 = vsel %vm4158, %v3391, %v4210
        %v4212 = vsel %vm4160, %v3395, %v4211
        %v4213 = vsel %vm4162, %v3399, %v4212
        %v4214 = vsel %vm4164, %v3535, %v4213
        %v4215 = vsel %vm4152, %v3411, %v3407
        %v4216 = vsel %vm4154, %v3415, %v4215
        %v4217 = vsel %vm4156, %v3419, %v4216
        %v4218 = vsel %vm4158, %v3423, %v4217
        %v4219 = vsel %vm4160, %v3427, %v4218
        %v4220 = vsel %vm4162, %v3431, %v4219
        %v4221 = vsel %vm4164, %v3539, %v4220
        %v4222 = vsel %vm4152, %v3547, %v3543
        %v4223 = vsel %vm4154, %v3551, %v4222
        %v4224 = vsel %vm4156, %v3555, %v4223
        %v4225 = vsel %vm4158, %v3559, %v4224
        %v4226 = vsel %vm4160, %v3563, %v4225
        %v4227 = vsel %vm4162, %v3567, %v4226
        %v4228 = vsel %vm4164, %v3571, %v4227
        %v4229 = vsel %vm4152, %v3579, %v3575
        %v4230 = vsel %vm4154, %v3583, %v4229
        %v4231 = vsel %vm4156, %v3587, %v4230
        %v4232 = vsel %vm4158, %v3591, %v4231
        %v4233 = vsel %vm4160, %v3595, %v4232
        %v4234 = vsel %vm4162, %v3599, %v4233
        %v4235 = vsel %vm4164, %v3603, %v4234
        %v4236 = vsel %vm4152, %v3611, %v3607
        %v4237 = vsel %vm4154, %v3615, %v4236
        %v4238 = vsel %vm4156, %v3619, %v4237
        %v4239 = vsel %vm4158, %v3623, %v4238
        %v4240 = vsel %vm4160, %v3627, %v4239
        %v4241 = vsel %vm4162, %v3631, %v4240
        %v4242 = vsel %vm4164, %v3635, %v4241
        %v4243 = vsel %vm4152, %v3643, %v3639
        %v4244 = vsel %vm4154, %v3647, %v4243
        %v4245 = vsel %vm4156, %v3651, %v4244
        %v4246 = vsel %vm4158, %v3655, %v4245
        %v4247 = vsel %vm4160, %v3659, %v4246
        %v4248 = vsel %vm4162, %v3663, %v4247
        %v4249 = vsel %vm4164, %v3667, %v4248
        %v4250 = vsel %vm4152, %v3675, %v3671
        %v4251 = vsel %vm4154, %v3679, %v4250
        %v4252 = vsel %vm4156, %v3683, %v4251
        %v4253 = vsel %vm4158, %v3687, %v4252
        %v4254 = vsel %vm4160, %v3691, %v4253
        %v4255 = vsel %vm4162, %v3695, %v4254
        %v4256 = vsel %vm4164, %v3699, %v4255
        %v4257 = vsel %vm4152, %v3707, %v3703
        %v4258 = vsel %vm4154, %v3711, %v4257
        %v4259 = vsel %vm4156, %v3715, %v4258
        %v4260 = vsel %vm4158, %v3719, %v4259
        %v4261 = vsel %vm4160, %v3723, %v4260
        %v4262 = vsel %vm4162, %v3727, %v4261
        %v4263 = vsel %vm4164, %v3731, %v4262
        %v4264 = vsel %vm4152, %v3551, %v3547
        %v4265 = vsel %vm4154, %v3555, %v4264
        %v4266 = vsel %vm4156, %v3559, %v4265
        %v4267 = vsel %vm4158, %v3563, %v4266
        %v4268 = vsel %vm4160, %v3567, %v4267
        %v4269 = vsel %vm4162, %v3571, %v4268
        %v4270 = vsel %vm4164, %v3735, %v4269
        %v4271 = vsel %vm4152, %v3583, %v3579
        %v4272 = vsel %vm4154, %v3587, %v4271
        %v4273 = vsel %vm4156, %v3591, %v4272
        %v4274 = vsel %vm4158, %v3595, %v4273
        %v4275 = vsel %vm4160, %v3599, %v4274
        %v4276 = vsel %vm4162, %v3603, %v4275
        %v4277 = vsel %vm4164, %v3739, %v4276
        %v4278 = vsel %vm4152, %v3615, %v3611
        %v4279 = vsel %vm4154, %v3619, %v4278
        %v4280 = vsel %vm4156, %v3623, %v4279
        %v4281 = vsel %vm4158, %v3627, %v4280
        %v4282 = vsel %vm4160, %v3631, %v4281
        %v4283 = vsel %vm4162, %v3635, %v4282
        %v4284 = vsel %vm4164, %v3743, %v4283
        %v4285 = vsel %vm4152, %v3751, %v3747
        %v4286 = vsel %vm4154, %v3755, %v4285
        %v4287 = vsel %vm4156, %v3759, %v4286
        %v4288 = vsel %vm4158, %v3763, %v4287
        %v4289 = vsel %vm4160, %v3767, %v4288
        %v4290 = vsel %vm4162, %v3771, %v4289
        %v4291 = vsel %vm4164, %v3775, %v4290
        %v4292 = vsel %vm4152, %v3783, %v3779
        %v4293 = vsel %vm4154, %v3787, %v4292
        %v4294 = vsel %vm4156, %v3791, %v4293
        %v4295 = vsel %vm4158, %v3795, %v4294
        %v4296 = vsel %vm4160, %v3799, %v4295
        %v4297 = vsel %vm4162, %v3803, %v4296
        %v4298 = vsel %vm4164, %v3807, %v4297
        %v4299 = vsel %vm4152, %v3815, %v3811
        %v4300 = vsel %vm4154, %v3819, %v4299
        %v4301 = vsel %vm4156, %v3823, %v4300
        %v4302 = vsel %vm4158, %v3827, %v4301
        %v4303 = vsel %vm4160, %v3831, %v4302
        %v4304 = vsel %vm4162, %v3835, %v4303
        %v4305 = vsel %vm4164, %v3839, %v4304
        %v4306 = vsel %vm4152, %v3847, %v3843
        %v4307 = vsel %vm4154, %v3851, %v4306
        %v4308 = vsel %vm4156, %v3855, %v4307
        %v4309 = vsel %vm4158, %v3859, %v4308
        %v4310 = vsel %vm4160, %v3863, %v4309
        %v4311 = vsel %vm4162, %v3867, %v4310
        %v4312 = vsel %vm4164, %v3871, %v4311
        %v4313 = vsel %vm4152, %v3879, %v3875
        %v4314 = vsel %vm4154, %v3883, %v4313
        %v4315 = vsel %vm4156, %v3887, %v4314
        %v4316 = vsel %vm4158, %v3891, %v4315
        %v4317 = vsel %vm4160, %v3895, %v4316
        %v4318 = vsel %vm4162, %v3899, %v4317
        %v4319 = vsel %vm4164, %v3903, %v4318
        %v4320 = vsel %vm4152, %v3911, %v3907
        %v4321 = vsel %vm4154, %v3915, %v4320
        %v4322 = vsel %vm4156, %v3919, %v4321
        %v4323 = vsel %vm4158, %v3923, %v4322
        %v4324 = vsel %vm4160, %v3927, %v4323
        %v4325 = vsel %vm4162, %v3931, %v4324
        %v4326 = vsel %vm4164, %v3935, %v4325
        %v4327 = vsel %vm4152, %v3755, %v3751
        %v4328 = vsel %vm4154, %v3759, %v4327
        %v4329 = vsel %vm4156, %v3763, %v4328
        %v4330 = vsel %vm4158, %v3767, %v4329
        %v4331 = vsel %vm4160, %v3771, %v4330
        %v4332 = vsel %vm4162, %v3775, %v4331
        %v4333 = vsel %vm4164, %v3939, %v4332
        %v4334 = vsel %vm4152, %v3787, %v3783
        %v4335 = vsel %vm4154, %v3791, %v4334
        %v4336 = vsel %vm4156, %v3795, %v4335
        %v4337 = vsel %vm4158, %v3799, %v4336
        %v4338 = vsel %vm4160, %v3803, %v4337
        %v4339 = vsel %vm4162, %v3807, %v4338
        %v4340 = vsel %vm4164, %v3943, %v4339
        %v4341 = vsel %vm4152, %v3819, %v3815
        %v4342 = vsel %vm4154, %v3823, %v4341
        %v4343 = vsel %vm4156, %v3827, %v4342
        %v4344 = vsel %vm4158, %v3831, %v4343
        %v4345 = vsel %vm4160, %v3835, %v4344
        %v4346 = vsel %vm4162, %v3839, %v4345
        %v4347 = vsel %vm4164, %v3947, %v4346
        %v4348 = vsel %vm4152, %v3955, %v3951
        %v4349 = vsel %vm4154, %v3959, %v4348
        %v4350 = vsel %vm4156, %v3963, %v4349
        %v4351 = vsel %vm4158, %v3967, %v4350
        %v4352 = vsel %vm4160, %v3971, %v4351
        %v4353 = vsel %vm4162, %v3975, %v4352
        %v4354 = vsel %vm4164, %v3979, %v4353
        %v4355 = vsel %vm4152, %v3987, %v3983
        %v4356 = vsel %vm4154, %v3991, %v4355
        %v4357 = vsel %vm4156, %v3995, %v4356
        %v4358 = vsel %vm4158, %v3999, %v4357
        %v4359 = vsel %vm4160, %v4003, %v4358
        %v4360 = vsel %vm4162, %v4007, %v4359
        %v4361 = vsel %vm4164, %v4011, %v4360
        %v4362 = vsel %vm4152, %v4019, %v4015
        %v4363 = vsel %vm4154, %v4023, %v4362
        %v4364 = vsel %vm4156, %v4027, %v4363
        %v4365 = vsel %vm4158, %v4031, %v4364
        %v4366 = vsel %vm4160, %v4035, %v4365
        %v4367 = vsel %vm4162, %v4039, %v4366
        %v4368 = vsel %vm4164, %v4043, %v4367
        %v4369 = vsel %vm4152, %v4051, %v4047
        %v4370 = vsel %vm4154, %v4055, %v4369
        %v4371 = vsel %vm4156, %v4059, %v4370
        %v4372 = vsel %vm4158, %v4063, %v4371
        %v4373 = vsel %vm4160, %v4067, %v4372
        %v4374 = vsel %vm4162, %v4071, %v4373
        %v4375 = vsel %vm4164, %v4075, %v4374
        %v4376 = vsel %vm4152, %v4083, %v4079
        %v4377 = vsel %vm4154, %v4087, %v4376
        %v4378 = vsel %vm4156, %v4091, %v4377
        %v4379 = vsel %vm4158, %v4095, %v4378
        %v4380 = vsel %vm4160, %v4099, %v4379
        %v4381 = vsel %vm4162, %v4103, %v4380
        %v4382 = vsel %vm4164, %v4107, %v4381
        %v4383 = vsel %vm4152, %v4115, %v4111
        %v4384 = vsel %vm4154, %v4119, %v4383
        %v4385 = vsel %vm4156, %v4123, %v4384
        %v4386 = vsel %vm4158, %v4127, %v4385
        %v4387 = vsel %vm4160, %v4131, %v4386
        %v4388 = vsel %vm4162, %v4135, %v4387
        %v4389 = vsel %vm4164, %v4139, %v4388
        %v4390 = vsel %vm4152, %v3959, %v3955
        %v4391 = vsel %vm4154, %v3963, %v4390
        %v4392 = vsel %vm4156, %v3967, %v4391
        %v4393 = vsel %vm4158, %v3971, %v4392
        %v4394 = vsel %vm4160, %v3975, %v4393
        %v4395 = vsel %vm4162, %v3979, %v4394
        %v4396 = vsel %vm4164, %v4143, %v4395
        %v4397 = vsel %vm4152, %v3991, %v3987
        %v4398 = vsel %vm4154, %v3995, %v4397
        %v4399 = vsel %vm4156, %v3999, %v4398
        %v4400 = vsel %vm4158, %v4003, %v4399
        %v4401 = vsel %vm4160, %v4007, %v4400
        %v4402 = vsel %vm4162, %v4011, %v4401
        %v4403 = vsel %vm4164, %v4147, %v4402
        %v4404 = vsel %vm4152, %v4023, %v4019
        %v4405 = vsel %vm4154, %v4027, %v4404
        %v4406 = vsel %vm4156, %v4031, %v4405
        %v4407 = vsel %vm4158, %v4035, %v4406
        %v4408 = vsel %vm4160, %v4039, %v4407
        %v4409 = vsel %vm4162, %v4043, %v4408
        %v4410 = vsel %vm4164, %v4151, %v4409
        %v4447 = vcombine.low %v4165, %v4179
        %v4448 = vcombine.high %v4165, %v4179
        %v4450 = vunpack.c.l.s4 1983009808
        %v4451 = vunpack.c.0.s8 %v4450
        %v4452 = vlaneseq
        %v4453 = vshrl.u32 %v4452, 7
        %v4454 = vsub.s32 %v4451, %v4453
        %v4455 = vrot.slane %v4447, %v4454
        %v4457 = vunpack.c.l.s4 1983009808
        %v4458 = vunpack.c.0.s8 %v4457
        %v4459 = vlaneseq
        %v4460 = vshrl.u32 %v4459, 7
        %v4461 = vsub.s32 %v4458, %v4460
        %v4462 = vrot.slane %v4448, %v4461
        %v4463 = vcombine.low %v4172, %v4186
        %v4464 = vcombine.high %v4172, %v4186
        %v4466 = vunpack.c.l.s4 1983009808
        %v4467 = vunpack.c.0.s8 %v4466
        %v4468 = vlaneseq
        %v4469 = vshrl.u32 %v4468, 7
        %v4470 = vsub.s32 %v4467, %v4469
        %v4471 = vrot.slane %v4463, %v4470
        %v4473 = vunpack.c.l.s4 1983009808
        %v4474 = vunpack.c.0.s8 %v4473
        %v4475 = vlaneseq
        %v4476 = vshrl.u32 %v4475, 7
        %v4477 = vsub.s32 %v4474, %v4476
        %v4478 = vrot.slane %v4464, %v4477
        %v4479 = vcombine.low %v4193, %v4207
        %v4480 = vcombine.high %v4193, %v4207
        %v4482 = vunpack.c.l.s4 1983009808
        %v4483 = vunpack.c.0.s8 %v4482
        %v4484 = vlaneseq
        %v4485 = vshrl.u32 %v4484, 7
        %v4486 = vsub.s32 %v4483, %v4485
        %v4487 = vrot.slane %v4479, %v4486
        %v4489 = vunpack.c.l.s4 1983009808
        %v4490 = vunpack.c.0.s8 %v4489
        %v4491 = vlaneseq
        %v4492 = vshrl.u32 %v4491, 7
        %v4493 = vsub.s32 %v4490, %v4492
        %v4494 = vrot.slane %v4480, %v4493
        %v4495 = vcombine.low %v4200, %v4214
        %v4496 = vcombine.high %v4200, %v4214
        %v4498 = vunpack.c.l.s4 1983009808
        %v4499 = vunpack.c.0.s8 %v4498
        %v4500 = vlaneseq
        %v4501 = vshrl.u32 %v4500, 7
        %v4502 = vsub.s32 %v4499, %v4501
        %v4503 = vrot.slane %v4495, %v4502
        %v4505 = vunpack.c.l.s4 1983009808
        %v4506 = vunpack.c.0.s8 %v4505
        %v4507 = vlaneseq
        %v4508 = vshrl.u32 %v4507, 7
        %v4509 = vsub.s32 %v4506, %v4508
        %v4510 = vrot.slane %v4496, %v4509
        %v4511 = vcombine.low %v4455, %v4471
        %v4512 = vcombine.high %v4455, %v4471
        %v4514 = vunpack.c.l.s4 1934713408
        %v4515 = vunpack.c.0.s8 %v4514
        %v4516 = vlaneseq
        %v4517 = vshrl.u32 %v4516, 7
        %v4518 = vsub.s32 %v4515, %v4517
        %v4519 = vrot.slane %v4511, %v4518
        %v4521 = vunpack.c.l.s4 1934713408
        %v4522 = vunpack.c.0.s8 %v4521
        %v4523 = vlaneseq
        %v4524 = vshrl.u32 %v4523, 7
        %v4525 = vsub.s32 %v4522, %v4524
        %v4526 = vrot.slane %v4512, %v4525
        %v4527 = vcombine.low %v4462, %v4478
        %v4528 = vcombine.high %v4462, %v4478
        %v4530 = vunpack.c.l.s4 1934713408
        %v4531 = vunpack.c.0.s8 %v4530
        %v4532 = vlaneseq
        %v4533 = vshrl.u32 %v4532, 7
        %v4534 = vsub.s32 %v4531, %v4533
        %v4535 = vrot.slane %v4527, %v4534
        %v4537 = vunpack.c.l.s4 1934713408
        %v4538 = vunpack.c.0.s8 %v4537
        %v4539 = vlaneseq
        %v4540 = vshrl.u32 %v4539, 7
        %v4541 = vsub.s32 %v4538, %v4540
        %v4542 = vrot.slane %v4528, %v4541
        %v4543 = vcombine.low %v4487, %v4503
        %v4544 = vcombine.high %v4487, %v4503
        %v4546 = vunpack.c.l.s4 1934713408
        %v4547 = vunpack.c.0.s8 %v4546
        %v4548 = vlaneseq
        %v4549 = vshrl.u32 %v4548, 7
        %v4550 = vsub.s32 %v4547, %v4549
        %v4551 = vrot.slane %v4543, %v4550
        %v4553 = vunpack.c.l.s4 1934713408
        %v4554 = vunpack.c.0.s8 %v4553
        %v4555 = vlaneseq
        %v4556 = vshrl.u32 %v4555, 7
        %v4557 = vsub.s32 %v4554, %v4556
        %v4558 = vrot.slane %v4544, %v4557
        %v4559 = vcombine.low %v4494, %v4510
        %v4560 = vcombine.high %v4494, %v4510
        %v4562 = vunpack.c.l.s4 1934713408
        %v4563 = vunpack.c.0.s8 %v4562
        %v4564 = vlaneseq
        %v4565 = vshrl.u32 %v4564, 7
        %v4566 = vsub.s32 %v4563, %v4565
        %v4567 = vrot.slane %v4559, %v4566
        %v4569 = vunpack.c.l.s4 1934713408
        %v4570 = vunpack.c.0.s8 %v4569
        %v4571 = vlaneseq
        %v4572 = vshrl.u32 %v4571, 7
        %v4573 = vsub.s32 %v4570, %v4572
        %v4574 = vrot.slane %v4560, %v4573
        %v4575 = vcombine.low %v4519, %v4551
        %v4576 = vcombine.high %v4519, %v4551
        %v4577 = vcombine.low %v4526, %v4558
        %v4578 = vcombine.high %v4526, %v4558
        %v4579 = vcombine.low %v4535, %v4567
        %v4580 = vcombine.high %v4535, %v4567
        %v4581 = vcombine.low %v4542, %v4574
        %v4582 = vcombine.high %v4542, %v4574
        %v4583 = vcombine.low %v4221, %v4235
        %v4584 = vcombine.high %v4221, %v4235
        %v4586 = vunpack.c.l.s4 1983009808
        %v4587 = vunpack.c.0.s8 %v4586
        %v4588 = vlaneseq
        %v4589 = vshrl.u32 %v4588, 7
        %v4590 = vsub.s32 %v4587, %v4589
        %v4591 = vrot.slane %v4583, %v4590
        %v4593 = vunpack.c.l.s4 1983009808
        %v4594 = vunpack.c.0.s8 %v4593
        %v4595 = vlaneseq
        %v4596 = vshrl.u32 %v4595, 7
        %v4597 = vsub.s32 %v4594, %v4596
        %v4598 = vrot.slane %v4584, %v4597
        %v4599 = vcombine.low %v4228, %v4242
        %v4600 = vcombine.high %v4228, %v4242
        %v4602 = vunpack.c.l.s4 1983009808
        %v4603 = vunpack.c.0.s8 %v4602
        %v4604 = vlaneseq
        %v4605 = vshrl.u32 %v4604, 7
        %v4606 = vsub.s32 %v4603, %v4605
        %v4607 = vrot.slane %v4599, %v4606
        %v4609 = vunpack.c.l.s4 1983009808
        %v4610 = vunpack.c.0.s8 %v4609
        %v4611 = vlaneseq
        %v4612 = vshrl.u32 %v4611, 7
        %v4613 = vsub.s32 %v4610, %v4612
        %v4614 = vrot.slane %v4600, %v4613
        %v4615 = vcombine.low %v4249, %v4263
        %v4616 = vcombine.high %v4249, %v4263
        %v4618 = vunpack.c.l.s4 1983009808
        %v4619 = vunpack.c.0.s8 %v4618
        %v4620 = vlaneseq
        %v4621 = vshrl.u32 %v4620, 7
        %v4622 = vsub.s32 %v4619, %v4621
        %v4623 = vrot.slane %v4615, %v4622
        %v4625 = vunpack.c.l.s4 1983009808
        %v4626 = vunpack.c.0.s8 %v4625
        %v4627 = vlaneseq
        %v4628 = vshrl.u32 %v4627, 7
        %v4629 = vsub.s32 %v4626, %v4628
        %v4630 = vrot.slane %v4616, %v4629
        %v4631 = vcombine.low %v4256, %v4270
        %v4632 = vcombine.high %v4256, %v4270
        %v4634 = vunpack.c.l.s4 1983009808
        %v4635 = vunpack.c.0.s8 %v4634
        %v4636 = vlaneseq
        %v4637 = vshrl.u32 %v4636, 7
        %v4638 = vsub.s32 %v4635, %v4637
        %v4639 = vrot.slane %v4631, %v4638
        %v4641 = vunpack.c.l.s4 1983009808
        %v4642 = vunpack.c.0.s8 %v4641
        %v4643 = vlaneseq
        %v4644 = vshrl.u32 %v4643, 7
        %v4645 = vsub.s32 %v4642, %v4644
        %v4646 = vrot.slane %v4632, %v4645
        %v4647 = vcombine.low %v4591, %v4607
        %v4648 = vcombine.high %v4591, %v4607
        %v4650 = vunpack.c.l.s4 1934713408
        %v4651 = vunpack.c.0.s8 %v4650
        %v4652 = vlaneseq
        %v4653 = vshrl.u32 %v4652, 7
        %v4654 = vsub.s32 %v4651, %v4653
        %v4655 = vrot.slane %v4647, %v4654
        %v4657 = vunpack.c.l.s4 1934713408
        %v4658 = vunpack.c.0.s8 %v4657
        %v4659 = vlaneseq
        %v4660 = vshrl.u32 %v4659, 7
        %v4661 = vsub.s32 %v4658, %v4660
        %v4662 = vrot.slane %v4648, %v4661
        %v4663 = vcombine.low %v4598, %v4614
        %v4664 = vcombine.high %v4598, %v4614
        %v4666 = vunpack.c.l.s4 1934713408
        %v4667 = vunpack.c.0.s8 %v4666
        %v4668 = vlaneseq
        %v4669 = vshrl.u32 %v4668, 7
        %v4670 = vsub.s32 %v4667, %v4669
        %v4671 = vrot.slane %v4663, %v4670
        %v4673 = vunpack.c.l.s4 1934713408
        %v4674 = vunpack.c.0.s8 %v4673
        %v4675 = vlaneseq
        %v4676 = vshrl.u32 %v4675, 7
        %v4677 = vsub.s32 %v4674, %v4676
        %v4678 = vrot.slane %v4664, %v4677
        %v4679 = vcombine.low %v4623, %v4639
        %v4680 = vcombine.high %v4623, %v4639
        %v4682 = vunpack.c.l.s4 1934713408
        %v4683 = vunpack.c.0.s8 %v4682
        %v4684 = vlaneseq
        %v4685 = vshrl.u32 %v4684, 7
        %v4686 = vsub.s32 %v4683, %v4685
        %v4687 = vrot.slane %v4679, %v4686
        %v4689 = vunpack.c.l.s4 1934713408
        %v4690 = vunpack.c.0.s8 %v4689
        %v4691 = vlaneseq
        %v4692 = vshrl.u32 %v4691, 7
        %v4693 = vsub.s32 %v4690, %v4692
        %v4694 = vrot.slane %v4680, %v4693
        %v4695 = vcombine.low %v4630, %v4646
        %v4696 = vcombine.high %v4630, %v4646
        %v4698 = vunpack.c.l.s4 1934713408
        %v4699 = vunpack.c.0.s8 %v4698
        %v4700 = vlaneseq
        %v4701 = vshrl.u32 %v4700, 7
        %v4702 = vsub.s32 %v4699, %v4701
        %v4703 = vrot.slane %v4695, %v4702
        %v4705 = vunpack.c.l.s4 1934713408
        %v4706 = vunpack.c.0.s8 %v4705
        %v4707 = vlaneseq
        %v4708 = vshrl.u32 %v4707, 7
        %v4709 = vsub.s32 %v4706, %v4708
        %v4710 = vrot.slane %v4696, %v4709
        %v4711 = vcombine.low %v4655, %v4687
        %v4712 = vcombine.high %v4655, %v4687
        %v4713 = vcombine.low %v4662, %v4694
        %v4714 = vcombine.high %v4662, %v4694
        %v4715 = vcombine.low %v4671, %v4703
        %v4716 = vcombine.high %v4671, %v4703
        %v4717 = vcombine.low %v4678, %v4710
        %v4718 = vcombine.high %v4678, %v4710
        %v4719 = vcombine.low %v4277, %v4291
        %v4720 = vcombine.high %v4277, %v4291
        %v4722 = vunpack.c.l.s4 1983009808
        %v4723 = vunpack.c.0.s8 %v4722
        %v4724 = vlaneseq
        %v4725 = vshrl.u32 %v4724, 7
        %v4726 = vsub.s32 %v4723, %v4725
        %v4727 = vrot.slane %v4719, %v4726
        %v4729 = vunpack.c.l.s4 1983009808
        %v4730 = vunpack.c.0.s8 %v4729
        %v4731 = vlaneseq
        %v4732 = vshrl.u32 %v4731, 7
        %v4733 = vsub.s32 %v4730, %v4732
        %v4734 = vrot.slane %v4720, %v4733
        %v4735 = vcombine.low %v4284, %v4298
        %v4736 = vcombine.high %v4284, %v4298
        %v4738 = vunpack.c.l.s4 1983009808
        %v4739 = vunpack.c.0.s8 %v4738
        %v4740 = vlaneseq
        %v4741 = vshrl.u32 %v4740, 7
        %v4742 = vsub.s32 %v4739, %v4741
        %v4743 = vrot.slane %v4735, %v4742
        %v4745 = vunpack.c.l.s4 1983009808
        %v4746 = vunpack.c.0.s8 %v4745
        %v4747 = vlaneseq
        %v4748 = vshrl.u32 %v4747, 7
        %v4749 = vsub.s32 %v4746, %v4748
        %v4750 = vrot.slane %v4736, %v4749
        %v4751 = vcombine.low %v4305, %v4319
        %v4752 = vcombine.high %v4305, %v4319
        %v4754 = vunpack.c.l.s4 1983009808
        %v4755 = vunpack.c.0.s8 %v4754
        %v4756 = vlaneseq
        %v4757 = vshrl.u32 %v4756, 7
        %v4758 = vsub.s32 %v4755, %v4757
        %v4759 = vrot.slane %v4751, %v4758
        %v4761 = vunpack.c.l.s4 1983009808
        %v4762 = vunpack.c.0.s8 %v4761
        %v4763 = vlaneseq
        %v4764 = vshrl.u32 %v4763, 7
        %v4765 = vsub.s32 %v4762, %v4764
        %v4766 = vrot.slane %v4752, %v4765
        %v4767 = vcombine.low %v4312, %v4326
        %v4768 = vcombine.high %v4312, %v4326
        %v4770 = vunpack.c.l.s4 1983009808
        %v4771 = vunpack.c.0.s8 %v4770
        %v4772 = vlaneseq
        %v4773 = vshrl.u32 %v4772, 7
        %v4774 = vsub.s32 %v4771, %v4773
        %v4775 = vrot.slane %v4767, %v4774
        %v4777 = vunpack.c.l.s4 1983009808
        %v4778 = vunpack.c.0.s8 %v4777
        %v4779 = vlaneseq
        %v4780 = vshrl.u32 %v4779, 7
        %v4781 = vsub.s32 %v4778, %v4780
        %v4782 = vrot.slane %v4768, %v4781
        %v4783 = vcombine.low %v4727, %v4743
        %v4784 = vcombine.high %v4727, %v4743
        %v4786 = vunpack.c.l.s4 1934713408
        %v4787 = vunpack.c.0.s8 %v4786
        %v4788 = vlaneseq
        %v4789 = vshrl.u32 %v4788, 7
        %v4790 = vsub.s32 %v4787, %v4789
        %v4791 = vrot.slane %v4783, %v4790
        %v4793 = vunpack.c.l.s4 1934713408
        %v4794 = vunpack.c.0.s8 %v4793
        %v4795 = vlaneseq
        %v4796 = vshrl.u32 %v4795, 7
        %v4797 = vsub.s32 %v4794, %v4796
        %v4798 = vrot.slane %v4784, %v4797
        %v4799 = vcombine.low %v4734, %v4750
        %v4800 = vcombine.high %v4734, %v4750
        %v4802 = vunpack.c.l.s4 1934713408
        %v4803 = vunpack.c.0.s8 %v4802
        %v4804 = vlaneseq
        %v4805 = vshrl.u32 %v4804, 7
        %v4806 = vsub.s32 %v4803, %v4805
        %v4807 = vrot.slane %v4799, %v4806
        %v4809 = vunpack.c.l.s4 1934713408
        %v4810 = vunpack.c.0.s8 %v4809
        %v4811 = vlaneseq
        %v4812 = vshrl.u32 %v4811, 7
        %v4813 = vsub.s32 %v4810, %v4812
        %v4814 = vrot.slane %v4800, %v4813
        %v4815 = vcombine.low %v4759, %v4775
        %v4816 = vcombine.high %v4759, %v4775
        %v4818 = vunpack.c.l.s4 1934713408
        %v4819 = vunpack.c.0.s8 %v4818
        %v4820 = vlaneseq
        %v4821 = vshrl.u32 %v4820, 7
        %v4822 = vsub.s32 %v4819, %v4821
        %v4823 = vrot.slane %v4815, %v4822
        %v4825 = vunpack.c.l.s4 1934713408
        %v4826 = vunpack.c.0.s8 %v4825
        %v4827 = vlaneseq
        %v4828 = vshrl.u32 %v4827, 7
        %v4829 = vsub.s32 %v4826, %v4828
        %v4830 = vrot.slane %v4816, %v4829
        %v4831 = vcombine.low %v4766, %v4782
        %v4832 = vcombine.high %v4766, %v4782
        %v4834 = vunpack.c.l.s4 1934713408
        %v4835 = vunpack.c.0.s8 %v4834
        %v4836 = vlaneseq
        %v4837 = vshrl.u32 %v4836, 7
        %v4838 = vsub.s32 %v4835, %v4837
        %v4839 = vrot.slane %v4831, %v4838
        %v4841 = vunpack.c.l.s4 1934713408
        %v4842 = vunpack.c.0.s8 %v4841
        %v4843 = vlaneseq
        %v4844 = vshrl.u32 %v4843, 7
        %v4845 = vsub.s32 %v4842, %v4844
        %v4846 = vrot.slane %v4832, %v4845
        %v4847 = vcombine.low %v4791, %v4823
        %v4848 = vcombine.high %v4791, %v4823
        %v4849 = vcombine.low %v4798, %v4830
        %v4850 = vcombine.high %v4798, %v4830
        %v4851 = vcombine.low %v4807, %v4839
        %v4852 = vcombine.high %v4807, %v4839
        %v4853 = vcombine.low %v4814, %v4846
        %v4854 = vcombine.high %v4814, %v4846
        %v4855 = vcombine.low %v4333, %v4347
        %v4856 = vcombine.high %v4333, %v4347
        %v4858 = vunpack.c.l.s4 1983009808
        %v4859 = vunpack.c.0.s8 %v4858
        %v4860 = vlaneseq
        %v4861 = vshrl.u32 %v4860, 7
        %v4862 = vsub.s32 %v4859, %v4861
        %v4863 = vrot.slane %v4855, %v4862
        %v4865 = vunpack.c.l.s4 1983009808
        %v4866 = vunpack.c.0.s8 %v4865
        %v4867 = vlaneseq
        %v4868 = vshrl.u32 %v4867, 7
        %v4869 = vsub.s32 %v4866, %v4868
        %v4870 = vrot.slane %v4856, %v4869
        %v4871 = vcombine.low %v4340, %v4354
        %v4872 = vcombine.high %v4340, %v4354
        %v4874 = vunpack.c.l.s4 1983009808
        %v4875 = vunpack.c.0.s8 %v4874
        %v4876 = vlaneseq
        %v4877 = vshrl.u32 %v4876, 7
        %v4878 = vsub.s32 %v4875, %v4877
        %v4879 = vrot.slane %v4871, %v4878
        %v4881 = vunpack.c.l.s4 1983009808
        %v4882 = vunpack.c.0.s8 %v4881
        %v4883 = vlaneseq
        %v4884 = vshrl.u32 %v4883, 7
        %v4885 = vsub.s32 %v4882, %v4884
        %v4886 = vrot.slane %v4872, %v4885
        %v4887 = vcombine.low %v4361, %v4375
        %v4888 = vcombine.high %v4361, %v4375
        %v4890 = vunpack.c.l.s4 1983009808
        %v4891 = vunpack.c.0.s8 %v4890
        %v4892 = vlaneseq
        %v4893 = vshrl.u32 %v4892, 7
        %v4894 = vsub.s32 %v4891, %v4893
        %v4895 = vrot.slane %v4887, %v4894
        %v4897 = vunpack.c.l.s4 1983009808
        %v4898 = vunpack.c.0.s8 %v4897
        %v4899 = vlaneseq
        %v4900 = vshrl.u32 %v4899, 7
        %v4901 = vsub.s32 %v4898, %v4900
        %v4902 = vrot.slane %v4888, %v4901
        %v4903 = vcombine.low %v4368, %v4382
        %v4904 = vcombine.high %v4368, %v4382
        %v4906 = vunpack.c.l.s4 1983009808
        %v4907 = vunpack.c.0.s8 %v4906
        %v4908 = vlaneseq
        %v4909 = vshrl.u32 %v4908, 7
        %v4910 = vsub.s32 %v4907, %v4909
        %v4911 = vrot.slane %v4903, %v4910
        %v4913 = vunpack.c.l.s4 1983009808
        %v4914 = vunpack.c.0.s8 %v4913
        %v4915 = vlaneseq
        %v4916 = vshrl.u32 %v4915, 7
        %v4917 = vsub.s32 %v4914, %v4916
        %v4918 = vrot.slane %v4904, %v4917
        %v4919 = vcombine.low %v4863, %v4879
        %v4920 = vcombine.high %v4863, %v4879
        %v4922 = vunpack.c.l.s4 1934713408
        %v4923 = vunpack.c.0.s8 %v4922
        %v4924 = vlaneseq
        %v4925 = vshrl.u32 %v4924, 7
        %v4926 = vsub.s32 %v4923, %v4925
        %v4927 = vrot.slane %v4919, %v4926
        %v4929 = vunpack.c.l.s4 1934713408
        %v4930 = vunpack.c.0.s8 %v4929
        %v4931 = vlaneseq
        %v4932 = vshrl.u32 %v4931, 7
        %v4933 = vsub.s32 %v4930, %v4932
        %v4934 = vrot.slane %v4920, %v4933
        %v4935 = vcombine.low %v4870, %v4886
        %v4936 = vcombine.high %v4870, %v4886
        %v4938 = vunpack.c.l.s4 1934713408
        %v4939 = vunpack.c.0.s8 %v4938
        %v4940 = vlaneseq
        %v4941 = vshrl.u32 %v4940, 7
        %v4942 = vsub.s32 %v4939, %v4941
        %v4943 = vrot.slane %v4935, %v4942
        %v4945 = vunpack.c.l.s4 1934713408
        %v4946 = vunpack.c.0.s8 %v4945
        %v4947 = vlaneseq
        %v4948 = vshrl.u32 %v4947, 7
        %v4949 = vsub.s32 %v4946, %v4948
        %v4950 = vrot.slane %v4936, %v4949
        %v4951 = vcombine.low %v4895, %v4911
        %v4952 = vcombine.high %v4895, %v4911
        %v4954 = vunpack.c.l.s4 1934713408
        %v4955 = vunpack.c.0.s8 %v4954
        %v4956 = vlaneseq
        %v4957 = vshrl.u32 %v4956, 7
        %v4958 = vsub.s32 %v4955, %v4957
        %v4959 = vrot.slane %v4951, %v4958
        %v4961 = vunpack.c.l.s4 1934713408
        %v4962 = vunpack.c.0.s8 %v4961
        %v4963 = vlaneseq
        %v4964 = vshrl.u32 %v4963, 7
        %v4965 = vsub.s32 %v4962, %v4964
        %v4966 = vrot.slane %v4952, %v4965
        %v4967 = vcombine.low %v4902, %v4918
        %v4968 = vcombine.high %v4902, %v4918
        %v4970 = vunpack.c.l.s4 1934713408
        %v4971 = vunpack.c.0.s8 %v4970
        %v4972 = vlaneseq
        %v4973 = vshrl.u32 %v4972, 7
        %v4974 = vsub.s32 %v4971, %v4973
        %v4975 = vrot.slane %v4967, %v4974
        %v4977 = vunpack.c.l.s4 1934713408
        %v4978 = vunpack.c.0.s8 %v4977
        %v4979 = vlaneseq
        %v4980 = vshrl.u32 %v4979, 7
        %v4981 = vsub.s32 %v4978, %v4980
        %v4982 = vrot.slane %v4968, %v4981
        %v4983 = vcombine.low %v4927, %v4959
        %v4984 = vcombine.high %v4927, %v4959
        %v4985 = vcombine.low %v4934, %v4966
        %v4986 = vcombine.high %v4934, %v4966
        %v4987 = vcombine.low %v4943, %v4975
        %v4988 = vcombine.high %v4943, %v4975
        %v4989 = vcombine.low %v4950, %v4982
        %v4990 = vcombine.high %v4950, %v4982
        %v4991 = vcombine.low %v4389, %v4403
        %v4992 = vcombine.high %v4389, %v4403
        %v4994 = vunpack.c.l.s4 1983009808
        %v4995 = vunpack.c.0.s8 %v4994
        %v4996 = vlaneseq
        %v4997 = vshrl.u32 %v4996, 7
        %v4998 = vsub.s32 %v4995, %v4997
        %v4999 = vrot.slane %v4991, %v4998
        %v5001 = vunpack.c.l.s4 1983009808
        %v5002 = vunpack.c.0.s8 %v5001
        %v5003 = vlaneseq
        %v5004 = vshrl.u32 %v5003, 7
        %v5005 = vsub.s32 %v5002, %v5004
        %v5006 = vrot.slane %v4992, %v5005
        %v5007 = vcombine.low %v4396, %v4410
        %v5008 = vcombine.high %v4396, %v4410
        %v5010 = vunpack.c.l.s4 1983009808
        %v5011 = vunpack.c.0.s8 %v5010
        %v5012 = vlaneseq
        %v5013 = vshrl.u32 %v5012, 7
        %v5014 = vsub.s32 %v5011, %v5013
        %v5015 = vrot.slane %v5007, %v5014
        %v5017 = vunpack.c.l.s4 1983009808
        %v5018 = vunpack.c.0.s8 %v5017
        %v5019 = vlaneseq
        %v5020 = vshrl.u32 %v5019, 7
        %v5021 = vsub.s32 %v5018, %v5020
        %v5022 = vrot.slane %v5008, %v5021
        %v5023 = vcombine.low %v4999, %v5015
        %v5024 = vcombine.high %v4999, %v5015
        %v5026 = vunpack.c.l.s4 1934713408
        %v5027 = vunpack.c.0.s8 %v5026
        %v5028 = vlaneseq
        %v5029 = vshrl.u32 %v5028, 7
        %v5030 = vsub.s32 %v5027, %v5029
        %v5031 = vrot.slane %v5023, %v5030
        %v5033 = vunpack.c.l.s4 1934713408
        %v5034 = vunpack.c.0.s8 %v5033
        %v5035 = vlaneseq
        %v5036 = vshrl.u32 %v5035, 7
        %v5037 = vsub.s32 %v5034, %v5036
        %v5038 = vrot.slane %v5024, %v5037
        %v5039 = vcombine.low %v5006, %v5022
        %v5040 = vcombine.high %v5006, %v5022
        %v5042 = vunpack.c.l.s4 1934713408
        %v5043 = vunpack.c.0.s8 %v5042
        %v5044 = vlaneseq
        %v5045 = vshrl.u32 %v5044, 7
        %v5046 = vsub.s32 %v5043, %v5045
        %v5047 = vrot.slane %v5039, %v5046
        %v5049 = vunpack.c.l.s4 1934713408
        %v5050 = vunpack.c.0.s8 %v5049
        %v5051 = vlaneseq
        %v5052 = vshrl.u32 %v5051, 7
        %v5053 = vsub.s32 %v5050, %v5052
        %v5054 = vrot.slane %v5040, %v5053
        %v5055 = vcombine.high %v5031, 0.0
        %v5056 = vcombine.high %v5038, 0.0
        %v5057 = vcombine.high %v5047, 0.0
        %v5058 = vcombine.high %v5054, 0.0
        %5064 = vrot.lane.b32.xlu0 %v4576, 8
        %v5065 = vpop.permute.xlu0 %5064
        %5066 = vrot.lane.b32.xlu0 %v4712, 8
        %v5067 = vpop.permute.xlu0 %5066
        %5068 = vrot.lane.b32.xlu0 %v4848, 8
        %v5069 = vpop.permute.xlu0 %5068
        %5070 = vrot.lane.b32.xlu0 %v4984, 8
        %v5071 = vpop.permute.xlu0 %5070
        %5072 = vrot.lane.b32.xlu0 %v5055, 8
        %v5073 = vpop.permute.xlu0 %5072
        %5084 = vrot.lane.b32.xlu0 %v4577, 16
        %v5085 = vpop.permute.xlu0 %5084
        %5086 = vrot.lane.b32.xlu0 %v4713, 16
        %v5087 = vpop.permute.xlu0 %5086
        %5088 = vrot.lane.b32.xlu0 %v4849, 16
        %v5089 = vpop.permute.xlu0 %5088
        %5090 = vrot.lane.b32.xlu0 %v4985, 16
        %v5091 = vpop.permute.xlu0 %5090
        %5092 = vrot.lane.b32.xlu0 %v5038, 16
        %v5093 = vpop.permute.xlu0 %5092
        %5104 = vrot.lane.b32.xlu0 %v4578, 24
        %v5105 = vpop.permute.xlu0 %5104
        %5106 = vrot.lane.b32.xlu0 %v4714, 24
        %v5107 = vpop.permute.xlu0 %5106
        %5108 = vrot.lane.b32.xlu0 %v4850, 24
        %v5109 = vpop.permute.xlu0 %5108
        %5110 = vrot.lane.b32.xlu0 %v4986, 24
        %v5111 = vpop.permute.xlu0 %5110
        %5112 = vrot.lane.b32.xlu0 %v5056, 24
        %v5113 = vpop.permute.xlu0 %5112
        %5124 = vrot.lane.b32.xlu0 %v4579, 32
        %v5125 = vpop.permute.xlu0 %5124
        %5126 = vrot.lane.b32.xlu0 %v4715, 32
        %v5127 = vpop.permute.xlu0 %5126
        %5128 = vrot.lane.b32.xlu0 %v4851, 32
        %v5129 = vpop.permute.xlu0 %5128
        %5130 = vrot.lane.b32.xlu0 %v4987, 32
        %v5131 = vpop.permute.xlu0 %5130
        %5132 = vrot.lane.b32.xlu0 %v5047, 32
        %v5133 = vpop.permute.xlu0 %5132
        %5144 = vrot.lane.b32.xlu0 %v4580, 40
        %v5145 = vpop.permute.xlu0 %5144
        %5146 = vrot.lane.b32.xlu0 %v4716, 40
        %v5147 = vpop.permute.xlu0 %5146
        %5148 = vrot.lane.b32.xlu0 %v4852, 40
        %v5149 = vpop.permute.xlu0 %5148
        %5150 = vrot.lane.b32.xlu0 %v4988, 40
        %v5151 = vpop.permute.xlu0 %5150
        %5152 = vrot.lane.b32.xlu0 %v5057, 40
        %v5153 = vpop.permute.xlu0 %5152
        %5164 = vrot.lane.b32.xlu0 %v4581, 48
        %v5165 = vpop.permute.xlu0 %5164
        %5166 = vrot.lane.b32.xlu0 %v4717, 48
        %v5167 = vpop.permute.xlu0 %5166
        %5168 = vrot.lane.b32.xlu0 %v4853, 48
        %v5169 = vpop.permute.xlu0 %5168
        %5170 = vrot.lane.b32.xlu0 %v4989, 48
        %v5171 = vpop.permute.xlu0 %5170
        %5172 = vrot.lane.b32.xlu0 %v5054, 48
        %v5173 = vpop.permute.xlu0 %5172
        %5184 = vrot.lane.b32.xlu0 %v4582, 56
        %v5185 = vpop.permute.xlu0 %5184
        %5186 = vrot.lane.b32.xlu0 %v4718, 56
        %v5187 = vpop.permute.xlu0 %5186
        %5188 = vrot.lane.b32.xlu0 %v4854, 56
        %v5189 = vpop.permute.xlu0 %5188
        %5190 = vrot.lane.b32.xlu0 %v4990, 56
        %v5191 = vpop.permute.xlu0 %5190
        %5192 = vrot.lane.b32.xlu0 %v5058, 56
        %v5193 = vpop.permute.xlu0 %5192
        %vm5199 = vcmask 64512
        %v5200 = vsel %vm5199, %v4575, %v5065
        %v5201 = vsel %vm5199, %v4711, %v5067
        %v5202 = vsel %vm5199, %v4847, %v5069
        %v5203 = vsel %vm5199, %v4983, %v5071
        %v5204 = vsel %vm5199, %v5031, %v5073
        %vm5205 = vcmask 130048
        %v5206 = vsel %vm5205, %v5200, %v5085
        %v5207 = vsel %vm5205, %v5201, %v5087
        %v5208 = vsel %vm5205, %v5202, %v5089
        %v5209 = vsel %vm5205, %v5203, %v5091
        %v5210 = vsel %vm5205, %v5204, %v5093
        %vm5211 = vcmask 195584
        %v5212 = vsel %vm5211, %v5206, %v5105
        %v5213 = vsel %vm5211, %v5207, %v5107
        %v5214 = vsel %vm5211, %v5208, %v5109
        %v5215 = vsel %vm5211, %v5209, %v5111
        %v5216 = vsel %vm5211, %v5210, %v5113
        %vm5217 = vcmask 261120
        %v5218 = vsel %vm5217, %v5212, %v5125
        %v5219 = vsel %vm5217, %v5213, %v5127
        %v5220 = vsel %vm5217, %v5214, %v5129
        %v5221 = vsel %vm5217, %v5215, %v5131
        %v5222 = vsel %vm5217, %v5216, %v5133
        %vm5223 = vcmask 326656
        %v5224 = vsel %vm5223, %v5218, %v5145
        %v5225 = vsel %vm5223, %v5219, %v5147
        %v5226 = vsel %vm5223, %v5220, %v5149
        %v5227 = vsel %vm5223, %v5221, %v5151
        %v5228 = vsel %vm5223, %v5222, %v5153
        %vm5229 = vcmask 392192
        %v5230 = vsel %vm5229, %v5224, %v5165
        %v5231 = vsel %vm5229, %v5225, %v5167
        %v5232 = vsel %vm5229, %v5226, %v5169
        %v5233 = vsel %vm5229, %v5227, %v5171
        %v5234 = vsel %vm5229, %v5228, %v5173
        %vm5235 = vcmask 457728
        %v5236 = vsel %vm5235, %v5230, %v5185
        %v5237 = vsel %vm5235, %v5231, %v5187
        %v5238 = vsel %vm5235, %v5232, %v5189
        %v5239 = vsel %vm5235, %v5233, %v5191
        %v5240 = vsel %vm5235, %v5234, %v5193
        %vm5241 = vcmask 523264
        %5242 = vst.msk [vmem:[%s164] sm:$0xff] %vm5241, %v5236
        %5243 = vst.msk [vmem:[%s164 + $0x8] sm:$0xff] %vm5241, %v5237
        %5244 = vst.msk [vmem:[%s164 + $0x10] sm:$0xff] %vm5241, %v5238
        %5245 = vst.msk [vmem:[%s164 + $0x18] sm:$0xff] %vm5241, %v5239
        %vm5246 = vcmask 519168
        %5247 = vst.msk [vmem:[%s164 + $0x20] sm:$0xf] %vm5246, %v5240
        %s5248 = smul.u32 5, %s20
        %p5249 = scmp.lt.s32.totalorder %s19, 1
        %s5250 = scalar_select %p5249, %s19, 1
        %p5251 = scmp.lt.s32.totalorder %s5248, 4
        %s5252 = scalar_select %p5251, %s5248, 4
        %s5253 = smul.addr %s5250, 5
        %s5254 = sadd.s32 %s5252, %s5253
        %s5255 = smul.addr %s5254, 8
        %s5256 = scalar_lea.vmem %s1, %s5255
        // Predicated region
        $region29: #{tpu_custom_call.1} parent=23 // pred_check
          %p5257 = pneg %p75
        $region30: #{tpu_custom_call.1} parent=23 // pred_check_branch
          %5259 = sbr.rel (%p5257) target = $region32
        $region31: #{tpu_custom_call.1} parent=23 // pred_region
          %s5260 = smul.u32 5, %s20
        $region32: #{tpu_custom_call.1} parent=23 // pred_fallthru
          _
      $region24: #{tpu_custom_call.1} parent=5 // pred_fallthru
        _
      %p5261 = scmp.le.s32.totalorder 2, %s10
      // Predicated region
      $region33: #{tpu_custom_call.1} parent=5 // pred_check
        %p5262 = pneg %p5261
      $region34: #{tpu_custom_call.1} parent=5 // pred_check_branch
        %5264 = sbr.rel (%p5262) target = $region36
      $region35: #{tpu_custom_call.1} parent=5 // pred_region
        %s5265 = ssub.s32 %s10, 2
        // Predicated region
        $region37: #{tpu_custom_call.1} parent=35 // pred_check
          %p5266 = pneg %p81
        $region38: #{tpu_custom_call.1} parent=35 // pred_check_branch
          %5268 = sbr.rel (%p5266) target = $region40
        $region39: #{tpu_custom_call.1} parent=35 // pred_region
          %s5269 = smul.u32 5, %s22
          %p5270 = scmp.lt.s32.totalorder %s21, 1
          %s5271 = scalar_select %p5270, %s21, 1
          %p5272 = scmp.lt.s32.totalorder %s5269, 4
          %s5273 = scalar_select %p5272, %s5269, 4
          %s5274 = smul.addr %s5271, 5
          %s5275 = sadd.s32 %s5273, %s5274
          %s5276 = smul.addr %s5275, 8
          %s5277 = scalar_lea.vmem %s1, %s5276
        $region40: #{tpu_custom_call.1} parent=35 // pred_fallthru
          _
      $region36: #{tpu_custom_call.1} parent=5 // pred_fallthru
        _
    $region6: #{tpu_custom_call.1} parent=1 // loop_footer
      %s14 = sadd.s32 1, %s10
    $region7: #{tpu_custom_call.1} parent=1 // loop_footer_branch
      %9 = sbr.rel target = $region3
    $region8: #{tpu_custom_call.1} parent=1 // loop_exit
      _
    %5278 = vsyncpa [#allocation4], 1
    %s5279 = scalar_lea.sflag [#allocation4], 1
    %5280 = vsyncpa %s5279, 1

</llo_original>
